<compile_context>
chip_gen: v7x
topology: tpu7x:2x2x1
jax: 0.10.0
libtpu: 0.0.40
codegen_flags: <defaults>
</compile_context>

<pallas_src>
import math
from functools import partial

import jax
import jax.numpy as jnp
from jax.experimental import pallas as pl
from jax.experimental.pallas import tpu as pltpu

K_HEADS = 8


# ----------------------------------------------------------------- kernel ---

def _htsa_fused_kernel(q_ref, k_ref, v_ref, mask_ref,
                       wk_ref, bk_ref, wv_ref, bv_ref,
                       w1_ref, b1_ref, w2_ref, b2_ref,
                       o_ref, *, num_heads, head_size):
    # Blocks: q/k/v/o are (1, R, D) with R = T*N rows ordered (t, n) row-major.
    q = q_ref[0]                       # (R, D)
    k = k_ref[0]
    v = v_ref[0]

    # Fused K/V projections (LinearNDimension 2-D path: x @ W + b).
    kp = jnp.dot(k, wk_ref[...], preferred_element_type=jnp.float32) + bk_ref[...]
    vp = jnp.dot(v, wv_ref[...], preferred_element_type=jnp.float32) + bv_ref[...]

    # Fold the 1/sqrt(head_size) scale into q once (small tensor, not scores).
    qs = q * (1.0 / math.sqrt(head_size))

    # Additive mask: -1e30 where the row's node differs from the column's node,
    # so softmax over the full R columns equals a per-node softmax over time.
    mask = mask_ref[...]               # (R, R) f32, {0, -1e30}

    trans_b = (((1,), (1,)), ((), ()))  # contract last dims: A @ B.T
    ctx_heads = []
    for h in range(num_heads):          # static unroll, K_HEADS = 8
        lo, hi = h * head_size, (h + 1) * head_size
        qh = qs[:, lo:hi]               # (R, H)
        kh = kp[:, lo:hi]
        vh = vp[:, lo:hi]
        s = jax.lax.dot_general(qh, kh, trans_b,
                                preferred_element_type=jnp.float32)   # (R, R)
        s = s + mask
        s = s - jnp.max(s, axis=-1, keepdims=True)
        p = jnp.exp(s)
        denom = jnp.sum(p, axis=-1, keepdims=True)                    # (R, 1)
        # Reciprocal on the small (R,1) tensor, then a cheap multiply
        # (approx=True would push it to the EUP; kept exact for tight checks).
        p = p * pl.reciprocal(denom, approx=False)
        ctx_heads.append(jnp.dot(p, vh, preferred_element_type=jnp.float32))

    # Heads back into feature order -> (R, D); matches torch's split/cat merge.
    x = jnp.concatenate(ctx_heads, axis=-1)

    # MLP: projection1 -> tanh -> projection2 (weights pre-transposed (in,out)).
    h1 = jnp.tanh(jnp.dot(x, w1_ref[...], preferred_element_type=jnp.float32)
                  + b1_ref[...])
    o_ref[0] = (jnp.dot(h1, w2_ref[...], preferred_element_type=jnp.float32)
                + b2_ref[...]).astype(o_ref.dtype)


# ---------------------------------------------------------------- wrapper ---

def htsa_forward(query, key, value, params):
    """params = ((wk, bk), (wv, bv), (w1, b1), (w2, b2));
    wk/wv are (D, D) used as x @ w (LinearNDimension 2-D path);
    w1/w2 are torch nn.Linear weights (out, in) -> used as x @ w.T + b."""
    (wk, bk), (wv, bv), (w1, b1), (w2, b2) = params
    B, T, N, D = query.shape
    H = D // K_HEADS
    R = T * N

    # Free, contiguous reshape: (B, T, N, D) -> (B, T*N, D); no transposes.
    q2 = query.reshape(B, R, D)
    k2 = key.reshape(B, R, D)
    v2 = value.reshape(B, R, D)

    # Node-equality additive mask (0 on same node, -1e30 otherwise). Constant,
    # tiny, and VMEM-resident via a constant-index BlockSpec.
    node_id = jnp.arange(R, dtype=jnp.int32) % N
    mask = jnp.where(node_id[:, None] == node_id[None, :],
                     jnp.float32(0.0), jnp.float32(-1e30))

    row_spec = pl.BlockSpec((1, R, D), lambda b: (b, 0, 0))
    mask_spec = pl.BlockSpec((R, R), lambda b: (0, 0))
    w_spec = pl.BlockSpec((D, D), lambda b: (0, 0))
    b_spec = pl.BlockSpec((1, D), lambda b: (0, 0))

    out = pl.pallas_call(
        partial(_htsa_fused_kernel, num_heads=K_HEADS, head_size=H),
        out_shape=jax.ShapeDtypeStruct((B, R, D), query.dtype),
        grid=(B,),
        in_specs=[row_spec, row_spec, row_spec, mask_spec,
                  w_spec, b_spec, w_spec, b_spec,
                  w_spec, b_spec, w_spec, b_spec],
        out_specs=row_spec,
        compiler_params=pltpu.CompilerParams(
            dimension_semantics=("parallel",)),
    )(q2, k2, v2, mask,
      wk, bk.reshape(1, D), wv, bv.reshape(1, D),
      w1.T, b1.reshape(1, D), w2.T, b2.reshape(1, D))

    return out.reshape(B, T, N, D)


# -------------------------------------------------------- pure-JAX reference

def htsa_reference(query, key, value, params):
    (wk, bk), (wv, bv), (w1, b1), (w2, b2) = params
    B, _, _, D = query.shape
    H = D // K_HEADS
    key = key @ wk + bk
    value = value @ wv + bv

    def split_cat(x):
        return jnp.concatenate(
            [x[..., i * H:(i + 1) * H] for i in range(K_HEADS)], axis=0)

    q = jnp.transpose(split_cat(query), (0, 2, 1, 3))
    k = jnp.transpose(split_cat(key), (0, 2, 3, 1))
    v = jnp.transpose(split_cat(value), (0, 2, 1, 3))
    att = jnp.matmul(q, k) / math.sqrt(H)
    att = jax.nn.softmax(att, axis=-1)
    x = jnp.matmul(att, v)
    x = jnp.transpose(x, (0, 2, 1, 3))
    x = jnp.concatenate([x[i * B:(i + 1) * B] for i in range(K_HEADS)], axis=-1)
    x = jnp.tanh(x @ w1.T + b1)
    return x @ w2.T + b2


# ------------------------------------------------------------------- main ---

if __name__ == "__main__":
    B, T, N, D = 2, 8, 4, 32           # D divisible by K_HEADS=8 -> head=4
    keyrng = jax.random.PRNGKey(0)
    ks = jax.random.split(keyrng, 11)

    query = jax.random.normal(ks[0], (B, T, N, D), jnp.float32)
    key = jax.random.normal(ks[1], (B, T, N, D), jnp.float32)
    value = jax.random.normal(ks[2], (B, T, N, D), jnp.float32)

    wk = jax.random.normal(ks[3], (D, D), jnp.float32) * 0.1
    bk = jax.random.normal(ks[4], (D,), jnp.float32) * 0.1
    wv = jax.random.normal(ks[5], (D, D), jnp.float32) * 0.1
    bv = jax.random.normal(ks[6], (D,), jnp.float32) * 0.1
    w1 = jax.random.normal(ks[7], (D, D), jnp.float32) * 0.1   # torch (out,in)
    b1 = jax.random.normal(ks[8], (D,), jnp.float32) * 0.1
    w2 = jax.random.normal(ks[9], (D, D), jnp.float32) * 0.1
    b2 = jax.random.normal(ks[10], (D,), jnp.float32) * 0.1

    params = ((wk, bk), (wv, bv), (w1, b1), (w2, b2))

    out = jax.jit(htsa_forward)(query, key, value, params)
    out = jax.block_until_ready(out)

    ref = htsa_reference(query, key, value, params)
    assert out.shape == (B, T, N, D)
    assert jnp.allclose(out, ref, atol=1e-4, rtol=1e-4), \
        float(jnp.max(jnp.abs(out - ref)))
    print("KERNEL_OK")
</pallas_src>

<mosaic_0001>
module attributes {stable_mosaic.version = 11 : i64} {
  func.func @_htsa_fused_kernel(%arg0: i32, %arg1: memref<1x32x32xf32, #tpu.memory_space<vmem>>, %arg2: memref<1x32x32xf32, #tpu.memory_space<vmem>>, %arg3: memref<1x32x32xf32, #tpu.memory_space<vmem>>, %arg4: memref<32x32xf32, #tpu.memory_space<vmem>>, %arg5: memref<32x32xf32, #tpu.memory_space<vmem>>, %arg6: memref<1x32xf32, #tpu.memory_space<vmem>>, %arg7: memref<32x32xf32, #tpu.memory_space<vmem>>, %arg8: memref<1x32xf32, #tpu.memory_space<vmem>>, %arg9: memref<32x32xf32, #tpu.memory_space<vmem>>, %arg10: memref<1x32xf32, #tpu.memory_space<vmem>>, %arg11: memref<32x32xf32, #tpu.memory_space<vmem>>, %arg12: memref<1x32xf32, #tpu.memory_space<vmem>>, %arg13: memref<1x32x32xf32, #tpu.memory_space<vmem>>) attributes {dimension_semantics = [#tpu.dimension_semantics<parallel>], iteration_bounds = array<i64: 2>, scalar_prefetch = 0 : i64, scratch_operands = 0 : i64, tpu.core_type = #tpu.core_type<tc>, window_params = [{transform_indices = @transform_0, window_bounds = array<i64: 1, 32, 32>}, {transform_indices = @transform_1, window_bounds = array<i64: 1, 32, 32>}, {transform_indices = @transform_2, window_bounds = array<i64: 1, 32, 32>}, {pipeline_mode = #tpu.pipeline_mode<synchronous>, transform_indices = @transform_3, window_bounds = array<i64: 32, 32>}, {pipeline_mode = #tpu.pipeline_mode<synchronous>, transform_indices = @transform_4, window_bounds = array<i64: 32, 32>}, {pipeline_mode = #tpu.pipeline_mode<synchronous>, transform_indices = @transform_5, window_bounds = array<i64: 1, 32>}, {pipeline_mode = #tpu.pipeline_mode<synchronous>, transform_indices = @transform_6, window_bounds = array<i64: 32, 32>}, {pipeline_mode = #tpu.pipeline_mode<synchronous>, transform_indices = @transform_7, window_bounds = array<i64: 1, 32>}, {pipeline_mode = #tpu.pipeline_mode<synchronous>, transform_indices = @transform_8, window_bounds = array<i64: 32, 32>}, {pipeline_mode = #tpu.pipeline_mode<synchronous>, transform_indices = @transform_9, window_bounds = array<i64: 1, 32>}, {pipeline_mode = #tpu.pipeline_mode<synchronous>, transform_indices = @transform_10, window_bounds = array<i64: 32, 32>}, {pipeline_mode = #tpu.pipeline_mode<synchronous>, transform_indices = @transform_11, window_bounds = array<i64: 1, 32>}, {transform_indices = @transform_12, window_bounds = array<i64: 1, 32, 32>}]} {
    %c0 = arith.constant 0 : index
    %c0_0 = arith.constant 0 : index
    %c0_1 = arith.constant 0 : index
    %0 = vector.load %arg1[%c0, %c0_0, %c0_1] : memref<1x32x32xf32, #tpu.memory_space<vmem>>, vector<1x32x32xf32>
    %1 = vector.shape_cast %0 : vector<1x32x32xf32> to vector<32x32xf32>
    %c0_2 = arith.constant 0 : index
    %c0_3 = arith.constant 0 : index
    %c0_4 = arith.constant 0 : index
    %2 = vector.load %arg2[%c0_2, %c0_3, %c0_4] : memref<1x32x32xf32, #tpu.memory_space<vmem>>, vector<1x32x32xf32>
    %3 = vector.shape_cast %2 : vector<1x32x32xf32> to vector<32x32xf32>
    %c0_5 = arith.constant 0 : index
    %c0_6 = arith.constant 0 : index
    %c0_7 = arith.constant 0 : index
    %4 = vector.load %arg3[%c0_5, %c0_6, %c0_7] : memref<1x32x32xf32, #tpu.memory_space<vmem>>, vector<1x32x32xf32>
    %5 = vector.shape_cast %4 : vector<1x32x32xf32> to vector<32x32xf32>
    %c0_8 = arith.constant 0 : index
    %c0_9 = arith.constant 0 : index
    %6 = vector.load %arg5[%c0_8, %c0_9] : memref<32x32xf32, #tpu.memory_space<vmem>>, vector<32x32xf32>
    %cst = arith.constant dense<0.000000e+00> : vector<32x32xf32>
    %7 = tpu.matmul %3, %6, %cst {dimension_numbers = #tpu.dot_dimension_numbers<[1], [0], [0], [1], [0, 0, 1, 1], [], []>} : vector<32x32xf32>, vector<32x32xf32>, vector<32x32xf32> -> vector<32x32xf32>
    %c0_10 = arith.constant 0 : index
    %c0_11 = arith.constant 0 : index
    %8 = vector.load %arg6[%c0_10, %c0_11] : memref<1x32xf32, #tpu.memory_space<vmem>>, vector<1x32xf32>
    %9 = vector.broadcast %8 : vector<1x32xf32> to vector<32x32xf32>
    %10 = arith.addf %7, %9 : vector<32x32xf32>
    %c0_12 = arith.constant 0 : index
    %c0_13 = arith.constant 0 : index
    %11 = vector.load %arg7[%c0_12, %c0_13] : memref<32x32xf32, #tpu.memory_space<vmem>>, vector<32x32xf32>
    %cst_14 = arith.constant dense<0.000000e+00> : vector<32x32xf32>
    %12 = tpu.matmul %5, %11, %cst_14 {dimension_numbers = #tpu.dot_dimension_numbers<[1], [0], [0], [1], [0, 0, 1, 1], [], []>} : vector<32x32xf32>, vector<32x32xf32>, vector<32x32xf32> -> vector<32x32xf32>
    %c0_15 = arith.constant 0 : index
    %c0_16 = arith.constant 0 : index
    %13 = vector.load %arg8[%c0_15, %c0_16] : memref<1x32xf32, #tpu.memory_space<vmem>>, vector<1x32xf32>
    %14 = vector.broadcast %13 : vector<1x32xf32> to vector<32x32xf32>
    %15 = arith.addf %12, %14 : vector<32x32xf32>
    %cst_17 = arith.constant 5.000000e-01 : f32
    %16 = vector.broadcast %cst_17 : f32 to vector<32x32xf32>
    %17 = arith.mulf %1, %16 : vector<32x32xf32>
    %c0_18 = arith.constant 0 : index
    %c0_19 = arith.constant 0 : index
    %18 = vector.load %arg4[%c0_18, %c0_19] : memref<32x32xf32, #tpu.memory_space<vmem>>, vector<32x32xf32>
    %19 = vector.extract_strided_slice %17 {offsets = [0, 0], sizes = [32, 4], strides = [1, 1]} : vector<32x32xf32> to vector<32x4xf32>
    %20 = vector.extract_strided_slice %10 {offsets = [0, 0], sizes = [32, 4], strides = [1, 1]} : vector<32x32xf32> to vector<32x4xf32>
    %21 = vector.extract_strided_slice %15 {offsets = [0, 0], sizes = [32, 4], strides = [1, 1]} : vector<32x32xf32> to vector<32x4xf32>
    %cst_20 = arith.constant dense<0.000000e+00> : vector<32x32xf32>
    %22 = tpu.matmul %19, %20, %cst_20 {dimension_numbers = #tpu.dot_dimension_numbers<[1], [1], [0], [0], [0, 0, 1, 0], [], []>} : vector<32x4xf32>, vector<32x4xf32>, vector<32x32xf32> -> vector<32x32xf32>
    %23 = arith.addf %22, %18 : vector<32x32xf32>
    %cst_21 = arith.constant dense<0xFF800000> : vector<32xf32>
    %24 = vector.multi_reduction <maximumf>, %23, %cst_21 [1] : vector<32x32xf32> to vector<32xf32>
    %25 = vector.shape_cast %24 : vector<32xf32> to vector<32x1xf32>
    %26 = vector.broadcast %25 : vector<32x1xf32> to vector<32x32xf32>
    %27 = arith.subf %23, %26 : vector<32x32xf32>
    %28 = math.exp %27 : vector<32x32xf32>
    %cst_22 = arith.constant dense<0.000000e+00> : vector<32xf32>
    %29 = vector.multi_reduction <add>, %28, %cst_22 [1] : vector<32x32xf32> to vector<32xf32>
    %30 = vector.shape_cast %29 : vector<32xf32> to vector<32x1xf32>
    %31 = tpu.reciprocal %30 : vector<32x1xf32> -> vector<32x1xf32>
    %32 = vector.broadcast %31 : vector<32x1xf32> to vector<32x32xf32>
    %33 = arith.mulf %28, %32 : vector<32x32xf32>
    %cst_23 = arith.constant dense<0.000000e+00> : vector<32x4xf32>
    %34 = tpu.matmul %33, %21, %cst_23 {dimension_numbers = #tpu.dot_dimension_numbers<[1], [0], [0], [1], [0, 0, 1, 1], [], []>} : vector<32x32xf32>, vector<32x4xf32>, vector<32x4xf32> -> vector<32x4xf32>
    %35 = vector.extract_strided_slice %17 {offsets = [0, 4], sizes = [32, 4], strides = [1, 1]} : vector<32x32xf32> to vector<32x4xf32>
    %36 = vector.extract_strided_slice %10 {offsets = [0, 4], sizes = [32, 4], strides = [1, 1]} : vector<32x32xf32> to vector<32x4xf32>
    %37 = vector.extract_strided_slice %15 {offsets = [0, 4], sizes = [32, 4], strides = [1, 1]} : vector<32x32xf32> to vector<32x4xf32>
    %cst_24 = arith.constant dense<0.000000e+00> : vector<32x32xf32>
    %38 = tpu.matmul %35, %36, %cst_24 {dimension_numbers = #tpu.dot_dimension_numbers<[1], [1], [0], [0], [0, 0, 1, 0], [], []>} : vector<32x4xf32>, vector<32x4xf32>, vector<32x32xf32> -> vector<32x32xf32>
    %39 = arith.addf %38, %18 : vector<32x32xf32>
    %cst_25 = arith.constant dense<0xFF800000> : vector<32xf32>
    %40 = vector.multi_reduction <maximumf>, %39, %cst_25 [1] : vector<32x32xf32> to vector<32xf32>
    %41 = vector.shape_cast %40 : vector<32xf32> to vector<32x1xf32>
    %42 = vector.broadcast %41 : vector<32x1xf32> to vector<32x32xf32>
    %43 = arith.subf %39, %42 : vector<32x32xf32>
    %44 = math.exp %43 : vector<32x32xf32>
    %cst_26 = arith.constant dense<0.000000e+00> : vector<32xf32>
    %45 = vector.multi_reduction <add>, %44, %cst_26 [1] : vector<32x32xf32> to vector<32xf32>
    %46 = vector.shape_cast %45 : vector<32xf32> to vector<32x1xf32>
    %47 = tpu.reciprocal %46 : vector<32x1xf32> -> vector<32x1xf32>
    %48 = vector.broadcast %47 : vector<32x1xf32> to vector<32x32xf32>
    %49 = arith.mulf %44, %48 : vector<32x32xf32>
    %cst_27 = arith.constant dense<0.000000e+00> : vector<32x4xf32>
    %50 = tpu.matmul %49, %37, %cst_27 {dimension_numbers = #tpu.dot_dimension_numbers<[1], [0], [0], [1], [0, 0, 1, 1], [], []>} : vector<32x32xf32>, vector<32x4xf32>, vector<32x4xf32> -> vector<32x4xf32>
    %51 = vector.extract_strided_slice %17 {offsets = [0, 8], sizes = [32, 4], strides = [1, 1]} : vector<32x32xf32> to vector<32x4xf32>
    %52 = vector.extract_strided_slice %10 {offsets = [0, 8], sizes = [32, 4], strides = [1, 1]} : vector<32x32xf32> to vector<32x4xf32>
    %53 = vector.extract_strided_slice %15 {offsets = [0, 8], sizes = [32, 4], strides = [1, 1]} : vector<32x32xf32> to vector<32x4xf32>
    %cst_28 = arith.constant dense<0.000000e+00> : vector<32x32xf32>
    %54 = tpu.matmul %51, %52, %cst_28 {dimension_numbers = #tpu.dot_dimension_numbers<[1], [1], [0], [0], [0, 0, 1, 0], [], []>} : vector<32x4xf32>, vector<32x4xf32>, vector<32x32xf32> -> vector<32x32xf32>
    %55 = arith.addf %54, %18 : vector<32x32xf32>
    %cst_29 = arith.constant dense<0xFF800000> : vector<32xf32>
    %56 = vector.multi_reduction <maximumf>, %55, %cst_29 [1] : vector<32x32xf32> to vector<32xf32>
    %57 = vector.shape_cast %56 : vector<32xf32> to vector<32x1xf32>
    %58 = vector.broadcast %57 : vector<32x1xf32> to vector<32x32xf32>
    %59 = arith.subf %55, %58 : vector<32x32xf32>
    %60 = math.exp %59 : vector<32x32xf32>
    %cst_30 = arith.constant dense<0.000000e+00> : vector<32xf32>
    %61 = vector.multi_reduction <add>, %60, %cst_30 [1] : vector<32x32xf32> to vector<32xf32>
    %62 = vector.shape_cast %61 : vector<32xf32> to vector<32x1xf32>
    %63 = tpu.reciprocal %62 : vector<32x1xf32> -> vector<32x1xf32>
    %64 = vector.broadcast %63 : vector<32x1xf32> to vector<32x32xf32>
    %65 = arith.mulf %60, %64 : vector<32x32xf32>
    %cst_31 = arith.constant dense<0.000000e+00> : vector<32x4xf32>
    %66 = tpu.matmul %65, %53, %cst_31 {dimension_numbers = #tpu.dot_dimension_numbers<[1], [0], [0], [1], [0, 0, 1, 1], [], []>} : vector<32x32xf32>, vector<32x4xf32>, vector<32x4xf32> -> vector<32x4xf32>
    %67 = vector.extract_strided_slice %17 {offsets = [0, 12], sizes = [32, 4], strides = [1, 1]} : vector<32x32xf32> to vector<32x4xf32>
    %68 = vector.extract_strided_slice %10 {offsets = [0, 12], sizes = [32, 4], strides = [1, 1]} : vector<32x32xf32> to vector<32x4xf32>
    %69 = vector.extract_strided_slice %15 {offsets = [0, 12], sizes = [32, 4], strides = [1, 1]} : vector<32x32xf32> to vector<32x4xf32>
    %cst_32 = arith.constant dense<0.000000e+00> : vector<32x32xf32>
    %70 = tpu.matmul %67, %68, %cst_32 {dimension_numbers = #tpu.dot_dimension_numbers<[1], [1], [0], [0], [0, 0, 1, 0], [], []>} : vector<32x4xf32>, vector<32x4xf32>, vector<32x32xf32> -> vector<32x32xf32>
    %71 = arith.addf %70, %18 : vector<32x32xf32>
    %cst_33 = arith.constant dense<0xFF800000> : vector<32xf32>
    %72 = vector.multi_reduction <maximumf>, %71, %cst_33 [1] : vector<32x32xf32> to vector<32xf32>
    %73 = vector.shape_cast %72 : vector<32xf32> to vector<32x1xf32>
    %74 = vector.broadcast %73 : vector<32x1xf32> to vector<32x32xf32>
    %75 = arith.subf %71, %74 : vector<32x32xf32>
    %76 = math.exp %75 : vector<32x32xf32>
    %cst_34 = arith.constant dense<0.000000e+00> : vector<32xf32>
    %77 = vector.multi_reduction <add>, %76, %cst_34 [1] : vector<32x32xf32> to vector<32xf32>
    %78 = vector.shape_cast %77 : vector<32xf32> to vector<32x1xf32>
    %79 = tpu.reciprocal %78 : vector<32x1xf32> -> vector<32x1xf32>
    %80 = vector.broadcast %79 : vector<32x1xf32> to vector<32x32xf32>
    %81 = arith.mulf %76, %80 : vector<32x32xf32>
    %cst_35 = arith.constant dense<0.000000e+00> : vector<32x4xf32>
    %82 = tpu.matmul %81, %69, %cst_35 {dimension_numbers = #tpu.dot_dimension_numbers<[1], [0], [0], [1], [0, 0, 1, 1], [], []>} : vector<32x32xf32>, vector<32x4xf32>, vector<32x4xf32> -> vector<32x4xf32>
    %83 = vector.extract_strided_slice %17 {offsets = [0, 16], sizes = [32, 4], strides = [1, 1]} : vector<32x32xf32> to vector<32x4xf32>
    %84 = vector.extract_strided_slice %10 {offsets = [0, 16], sizes = [32, 4], strides = [1, 1]} : vector<32x32xf32> to vector<32x4xf32>
    %85 = vector.extract_strided_slice %15 {offsets = [0, 16], sizes = [32, 4], strides = [1, 1]} : vector<32x32xf32> to vector<32x4xf32>
    %cst_36 = arith.constant dense<0.000000e+00> : vector<32x32xf32>
    %86 = tpu.matmul %83, %84, %cst_36 {dimension_numbers = #tpu.dot_dimension_numbers<[1], [1], [0], [0], [0, 0, 1, 0], [], []>} : vector<32x4xf32>, vector<32x4xf32>, vector<32x32xf32> -> vector<32x32xf32>
    %87 = arith.addf %86, %18 : vector<32x32xf32>
    %cst_37 = arith.constant dense<0xFF800000> : vector<32xf32>
    %88 = vector.multi_reduction <maximumf>, %87, %cst_37 [1] : vector<32x32xf32> to vector<32xf32>
    %89 = vector.shape_cast %88 : vector<32xf32> to vector<32x1xf32>
    %90 = vector.broadcast %89 : vector<32x1xf32> to vector<32x32xf32>
    %91 = arith.subf %87, %90 : vector<32x32xf32>
    %92 = math.exp %91 : vector<32x32xf32>
    %cst_38 = arith.constant dense<0.000000e+00> : vector<32xf32>
    %93 = vector.multi_reduction <add>, %92, %cst_38 [1] : vector<32x32xf32> to vector<32xf32>
    %94 = vector.shape_cast %93 : vector<32xf32> to vector<32x1xf32>
    %95 = tpu.reciprocal %94 : vector<32x1xf32> -> vector<32x1xf32>
    %96 = vector.broadcast %95 : vector<32x1xf32> to vector<32x32xf32>
    %97 = arith.mulf %92, %96 : vector<32x32xf32>
    %cst_39 = arith.constant dense<0.000000e+00> : vector<32x4xf32>
    %98 = tpu.matmul %97, %85, %cst_39 {dimension_numbers = #tpu.dot_dimension_numbers<[1], [0], [0], [1], [0, 0, 1, 1], [], []>} : vector<32x32xf32>, vector<32x4xf32>, vector<32x4xf32> -> vector<32x4xf32>
    %99 = vector.extract_strided_slice %17 {offsets = [0, 20], sizes = [32, 4], strides = [1, 1]} : vector<32x32xf32> to vector<32x4xf32>
    %100 = vector.extract_strided_slice %10 {offsets = [0, 20], sizes = [32, 4], strides = [1, 1]} : vector<32x32xf32> to vector<32x4xf32>
    %101 = vector.extract_strided_slice %15 {offsets = [0, 20], sizes = [32, 4], strides = [1, 1]} : vector<32x32xf32> to vector<32x4xf32>
    %cst_40 = arith.constant dense<0.000000e+00> : vector<32x32xf32>
    %102 = tpu.matmul %99, %100, %cst_40 {dimension_numbers = #tpu.dot_dimension_numbers<[1], [1], [0], [0], [0, 0, 1, 0], [], []>} : vector<32x4xf32>, vector<32x4xf32>, vector<32x32xf32> -> vector<32x32xf32>
    %103 = arith.addf %102, %18 : vector<32x32xf32>
    %cst_41 = arith.constant dense<0xFF800000> : vector<32xf32>
    %104 = vector.multi_reduction <maximumf>, %103, %cst_41 [1] : vector<32x32xf32> to vector<32xf32>
    %105 = vector.shape_cast %104 : vector<32xf32> to vector<32x1xf32>
    %106 = vector.broadcast %105 : vector<32x1xf32> to vector<32x32xf32>
    %107 = arith.subf %103, %106 : vector<32x32xf32>
    %108 = math.exp %107 : vector<32x32xf32>
    %cst_42 = arith.constant dense<0.000000e+00> : vector<32xf32>
    %109 = vector.multi_reduction <add>, %108, %cst_42 [1] : vector<32x32xf32> to vector<32xf32>
    %110 = vector.shape_cast %109 : vector<32xf32> to vector<32x1xf32>
    %111 = tpu.reciprocal %110 : vector<32x1xf32> -> vector<32x1xf32>
    %112 = vector.broadcast %111 : vector<32x1xf32> to vector<32x32xf32>
    %113 = arith.mulf %108, %112 : vector<32x32xf32>
    %cst_43 = arith.constant dense<0.000000e+00> : vector<32x4xf32>
    %114 = tpu.matmul %113, %101, %cst_43 {dimension_numbers = #tpu.dot_dimension_numbers<[1], [0], [0], [1], [0, 0, 1, 1], [], []>} : vector<32x32xf32>, vector<32x4xf32>, vector<32x4xf32> -> vector<32x4xf32>
    %115 = vector.extract_strided_slice %17 {offsets = [0, 24], sizes = [32, 4], strides = [1, 1]} : vector<32x32xf32> to vector<32x4xf32>
    %116 = vector.extract_strided_slice %10 {offsets = [0, 24], sizes = [32, 4], strides = [1, 1]} : vector<32x32xf32> to vector<32x4xf32>
    %117 = vector.extract_strided_slice %15 {offsets = [0, 24], sizes = [32, 4], strides = [1, 1]} : vector<32x32xf32> to vector<32x4xf32>
    %cst_44 = arith.constant dense<0.000000e+00> : vector<32x32xf32>
    %118 = tpu.matmul %115, %116, %cst_44 {dimension_numbers = #tpu.dot_dimension_numbers<[1], [1], [0], [0], [0, 0, 1, 0], [], []>} : vector<32x4xf32>, vector<32x4xf32>, vector<32x32xf32> -> vector<32x32xf32>
    %119 = arith.addf %118, %18 : vector<32x32xf32>
    %cst_45 = arith.constant dense<0xFF800000> : vector<32xf32>
    %120 = vector.multi_reduction <maximumf>, %119, %cst_45 [1] : vector<32x32xf32> to vector<32xf32>
    %121 = vector.shape_cast %120 : vector<32xf32> to vector<32x1xf32>
    %122 = vector.broadcast %121 : vector<32x1xf32> to vector<32x32xf32>
    %123 = arith.subf %119, %122 : vector<32x32xf32>
    %124 = math.exp %123 : vector<32x32xf32>
    %cst_46 = arith.constant dense<0.000000e+00> : vector<32xf32>
    %125 = vector.multi_reduction <add>, %124, %cst_46 [1] : vector<32x32xf32> to vector<32xf32>
    %126 = vector.shape_cast %125 : vector<32xf32> to vector<32x1xf32>
    %127 = tpu.reciprocal %126 : vector<32x1xf32> -> vector<32x1xf32>
    %128 = vector.broadcast %127 : vector<32x1xf32> to vector<32x32xf32>
    %129 = arith.mulf %124, %128 : vector<32x32xf32>
    %cst_47 = arith.constant dense<0.000000e+00> : vector<32x4xf32>
    %130 = tpu.matmul %129, %117, %cst_47 {dimension_numbers = #tpu.dot_dimension_numbers<[1], [0], [0], [1], [0, 0, 1, 1], [], []>} : vector<32x32xf32>, vector<32x4xf32>, vector<32x4xf32> -> vector<32x4xf32>
    %131 = vector.extract_strided_slice %17 {offsets = [0, 28], sizes = [32, 4], strides = [1, 1]} : vector<32x32xf32> to vector<32x4xf32>
    %132 = vector.extract_strided_slice %10 {offsets = [0, 28], sizes = [32, 4], strides = [1, 1]} : vector<32x32xf32> to vector<32x4xf32>
    %133 = vector.extract_strided_slice %15 {offsets = [0, 28], sizes = [32, 4], strides = [1, 1]} : vector<32x32xf32> to vector<32x4xf32>
    %cst_48 = arith.constant dense<0.000000e+00> : vector<32x32xf32>
    %134 = tpu.matmul %131, %132, %cst_48 {dimension_numbers = #tpu.dot_dimension_numbers<[1], [1], [0], [0], [0, 0, 1, 0], [], []>} : vector<32x4xf32>, vector<32x4xf32>, vector<32x32xf32> -> vector<32x32xf32>
    %135 = arith.addf %134, %18 : vector<32x32xf32>
    %cst_49 = arith.constant dense<0xFF800000> : vector<32xf32>
    %136 = vector.multi_reduction <maximumf>, %135, %cst_49 [1] : vector<32x32xf32> to vector<32xf32>
    %137 = vector.shape_cast %136 : vector<32xf32> to vector<32x1xf32>
    %138 = vector.broadcast %137 : vector<32x1xf32> to vector<32x32xf32>
    %139 = arith.subf %135, %138 : vector<32x32xf32>
    %140 = math.exp %139 : vector<32x32xf32>
    %cst_50 = arith.constant dense<0.000000e+00> : vector<32xf32>
    %141 = vector.multi_reduction <add>, %140, %cst_50 [1] : vector<32x32xf32> to vector<32xf32>
    %142 = vector.shape_cast %141 : vector<32xf32> to vector<32x1xf32>
    %143 = tpu.reciprocal %142 : vector<32x1xf32> -> vector<32x1xf32>
    %144 = vector.broadcast %143 : vector<32x1xf32> to vector<32x32xf32>
    %145 = arith.mulf %140, %144 : vector<32x32xf32>
    %cst_51 = arith.constant dense<0.000000e+00> : vector<32x4xf32>
    %146 = tpu.matmul %145, %133, %cst_51 {dimension_numbers = #tpu.dot_dimension_numbers<[1], [0], [0], [1], [0, 0, 1, 1], [], []>} : vector<32x32xf32>, vector<32x4xf32>, vector<32x4xf32> -> vector<32x4xf32>
    %147 = tpu.concatenate %34, %50, %66, %82, %98, %114, %130, %146 in 1 : vector<32x4xf32>, vector<32x4xf32>, vector<32x4xf32>, vector<32x4xf32>, vector<32x4xf32>, vector<32x4xf32>, vector<32x4xf32>, vector<32x4xf32> -> vector<32x32xf32>
    %c0_52 = arith.constant 0 : index
    %c0_53 = arith.constant 0 : index
    %148 = vector.load %arg9[%c0_52, %c0_53] : memref<32x32xf32, #tpu.memory_space<vmem>>, vector<32x32xf32>
    %cst_54 = arith.constant dense<0.000000e+00> : vector<32x32xf32>
    %149 = tpu.matmul %147, %148, %cst_54 {dimension_numbers = #tpu.dot_dimension_numbers<[1], [0], [0], [1], [0, 0, 1, 1], [], []>} : vector<32x32xf32>, vector<32x32xf32>, vector<32x32xf32> -> vector<32x32xf32>
    %c0_55 = arith.constant 0 : index
    %c0_56 = arith.constant 0 : index
    %150 = vector.load %arg10[%c0_55, %c0_56] : memref<1x32xf32, #tpu.memory_space<vmem>>, vector<1x32xf32>
    %151 = vector.broadcast %150 : vector<1x32xf32> to vector<32x32xf32>
    %152 = arith.addf %149, %151 : vector<32x32xf32>
    %153 = math.tanh %152 : vector<32x32xf32>
    %c0_57 = arith.constant 0 : index
    %c0_58 = arith.constant 0 : index
    %154 = vector.load %arg11[%c0_57, %c0_58] : memref<32x32xf32, #tpu.memory_space<vmem>>, vector<32x32xf32>
    %cst_59 = arith.constant dense<0.000000e+00> : vector<32x32xf32>
    %155 = tpu.matmul %153, %154, %cst_59 {dimension_numbers = #tpu.dot_dimension_numbers<[1], [0], [0], [1], [0, 0, 1, 1], [], []>} : vector<32x32xf32>, vector<32x32xf32>, vector<32x32xf32> -> vector<32x32xf32>
    %c0_60 = arith.constant 0 : index
    %c0_61 = arith.constant 0 : index
    %156 = vector.load %arg12[%c0_60, %c0_61] : memref<1x32xf32, #tpu.memory_space<vmem>>, vector<1x32xf32>
    %157 = vector.broadcast %156 : vector<1x32xf32> to vector<32x32xf32>
    %158 = arith.addf %155, %157 : vector<32x32xf32>
    %c0_62 = arith.constant 0 : index
    %c0_63 = arith.constant 0 : index
    %c0_64 = arith.constant 0 : index
    %159 = vector.load %arg13[%c0_62, %c0_63, %c0_64] : memref<1x32x32xf32, #tpu.memory_space<vmem>>, vector<1x32x32xf32>
    %160 = vector.shape_cast %159 : vector<1x32x32xf32> to vector<32x32xf32>
    %161 = vector.shape_cast %158 : vector<32x32xf32> to vector<1x32x32xf32>
    tpu.vector_store %arg13[%c0_62, %c0_63, %c0_64], %161 {strides = array<i32>} : memref<1x32x32xf32, #tpu.memory_space<vmem>>, vector<1x32x32xf32>,
    return
  }
  func.func @transform_0(%arg0: i32) -> (i32, i32, i32) {
    %c0_i32 = arith.constant 0 : i32
    %c0_i32_0 = arith.constant 0 : i32
    %c0_i32_1 = arith.constant 0 : i32
    return %arg0, %c0_i32, %c0_i32_0 : i32, i32, i32
  }
  func.func @transform_1(%arg0: i32) -> (i32, i32, i32) {
    %c0_i32 = arith.constant 0 : i32
    %c0_i32_0 = arith.constant 0 : i32
    %c0_i32_1 = arith.constant 0 : i32
    return %arg0, %c0_i32, %c0_i32_0 : i32, i32, i32
  }
  func.func @transform_2(%arg0: i32) -> (i32, i32, i32) {
    %c0_i32 = arith.constant 0 : i32
    %c0_i32_0 = arith.constant 0 : i32
    %c0_i32_1 = arith.constant 0 : i32
    return %arg0, %c0_i32, %c0_i32_0 : i32, i32, i32
  }
  func.func @transform_3(%arg0: i32) -> (i32, i32) {
    %c0_i32 = arith.constant 0 : i32
    %c0_i32_0 = arith.constant 0 : i32
    %c0_i32_1 = arith.constant 0 : i32
    return %c0_i32, %c0_i32_0 : i32, i32
  }
  func.func @transform_4(%arg0: i32) -> (i32, i32) {
    %c0_i32 = arith.constant 0 : i32
    %c0_i32_0 = arith.constant 0 : i32
    %c0_i32_1 = arith.constant 0 : i32
    return %c0_i32, %c0_i32_0 : i32, i32
  }
  func.func @transform_5(%arg0: i32) -> (i32, i32) {
    %c0_i32 = arith.constant 0 : i32
    %c0_i32_0 = arith.constant 0 : i32
    %c0_i32_1 = arith.constant 0 : i32
    return %c0_i32, %c0_i32_0 : i32, i32
  }
  func.func @transform_6(%arg0: i32) -> (i32, i32) {
    %c0_i32 = arith.constant 0 : i32
    %c0_i32_0 = arith.constant 0 : i32
    %c0_i32_1 = arith.constant 0 : i32
    return %c0_i32, %c0_i32_0 : i32, i32
  }
  func.func @transform_7(%arg0: i32) -> (i32, i32) {
    %c0_i32 = arith.constant 0 : i32
    %c0_i32_0 = arith.constant 0 : i32
    %c0_i32_1 = arith.constant 0 : i32
    return %c0_i32, %c0_i32_0 : i32, i32
  }
  func.func @transform_8(%arg0: i32) -> (i32, i32) {
    %c0_i32 = arith.constant 0 : i32
    %c0_i32_0 = arith.constant 0 : i32
    %c0_i32_1 = arith.constant 0 : i32
    return %c0_i32, %c0_i32_0 : i32, i32
  }
  func.func @transform_9(%arg0: i32) -> (i32, i32) {
    %c0_i32 = arith.constant 0 : i32
    %c0_i32_0 = arith.constant 0 : i32
    %c0_i32_1 = arith.constant 0 : i32
    return %c0_i32, %c0_i32_0 : i32, i32
  }
  func.func @transform_10(%arg0: i32) -> (i32, i32) {
    %c0_i32 = arith.constant 0 : i32
    %c0_i32_0 = arith.constant 0 : i32
    %c0_i32_1 = arith.constant 0 : i32
    return %c0_i32, %c0_i32_0 : i32, i32
  }
  func.func @transform_11(%arg0: i32) -> (i32, i32) {
    %c0_i32 = arith.constant 0 : i32
    %c0_i32_0 = arith.constant 0 : i32
    %c0_i32_1 = arith.constant 0 : i32
    return %c0_i32, %c0_i32_0 : i32, i32
  }
  func.func @transform_12(%arg0: i32) -> (i32, i32, i32) {
    %c0_i32 = arith.constant 0 : i32
    %c0_i32_0 = arith.constant 0 : i32
    %c0_i32_1 = arith.constant 0 : i32
    return %arg0, %c0_i32, %c0_i32_0 : i32, i32, i32
  }
}

</mosaic_0001>

<llo_original>
// kernel: htsa_forward.1
$region0: #{htsa_forward.1}
  #allocation0 [shape = 'u32[]', space=smem, size = 0x4, offset = 0x4, fixed_abs, tag = 'smem constant byte address 0x4 - core index']
  #allocation1 [shape = 'u32[144,128]{1,0:T(1,128)}', space=vmem, size = 0x12000, scoped, tag = 'internal scratch']
  %s0 = inlined_call_operand.vmem [shape: f32[2,32,32], index: 0, kind: input, shape index: {}]
  %s1 = inlined_call_operand.vmem [shape: f32[2,32,32], index: 1, kind: input, shape index: {}]
  %s2 = inlined_call_operand.vmem [shape: f32[2,32,32], index: 2, kind: input, shape index: {}]
  %s3 = inlined_call_operand.vmem [shape: f32[32,32], index: 3, kind: input, shape index: {}]
  %s4 = inlined_call_operand.hbm [shape: f32[32,32], index: 4, kind: input, shape index: {}]
  %s5 = inlined_call_operand.vmem [shape: f32[1,32], index: 5, kind: input, shape index: {}]
  %s6 = inlined_call_operand.hbm [shape: f32[32,32], index: 6, kind: input, shape index: {}]
  %s7 = inlined_call_operand.vmem [shape: f32[1,32], index: 7, kind: input, shape index: {}]
  %s8 = inlined_call_operand.vmem [shape: f32[32,32], index: 8, kind: input, shape index: {}]
  %s9 = inlined_call_operand.vmem [shape: f32[1,32], index: 9, kind: input, shape index: {}]
  %s10 = inlined_call_operand.vmem [shape: f32[32,32], index: 10, kind: input, shape index: {}]
  %s11 = inlined_call_operand.vmem [shape: f32[1,32], index: 11, kind: input, shape index: {}]
  %s12 = inlined_call_operand.hbm [shape: f32[2,32,32], index: 12, kind: output, shape index: {}]
  %s13 = sld [smem:[#allocation0]]
  $region89: #{htsa_forward.1} parent=0
    _
  %s15 = ssub.s32 1, %s13
  %s16 = scalar_select 0, %s15, %s13
  $region1: #{htsa_forward.1} parent=0
    #allocation2 [shape = 'u8[16384]{0}', space=vmem, size = 0x4000, scoped, tag = 'input window, operand 4, single buffered']
    #allocation3 [shape = 's32[2]{0}', space=sflag, size = 0x8, scoped, tag = 'scoped memory for htsa_forward.1']
    #allocation4 [shape = 's32[2]{0}', space=sflag, size = 0x8, scoped, tag = 'scoped memory for htsa_forward.1']
    #allocation5 [shape = 'u8[16384]{0}', space=vmem, size = 0x4000, scoped, tag = 'input window, operand 6, single buffered']
    #allocation6 [shape = 's32[1]{0}', space=sflag, size = 0x4, scoped, tag = 'scoped memory for htsa_forward.1']
    #allocation7 [shape = 'u8[32768]{0}', space=vmem, size = 0x8000, scoped, tag = 'output window, operand 0']
    %17 = vsyncpa [#allocation3], 0
    %18 = vsyncpa [#allocation6], 0
    %19 = vsyncpa [#allocation4], 0
    %s20 = scalar_lea.sflag [#allocation4], 1
    %21 = vsyncpa %s20, 0
    loop: start=0, step=1, limit=4
    $region2: #{htsa_forward.1} parent=1 // loop_pre_header
      _
    $region3: #{htsa_forward.1} parent=1 // loop_header
      %s23 = sphi 0, %s27
      %p24 = scmp.ge.s32.totalorder %s23, 4
      %s33 = sphi 0, %s35
      %s36 = sphi 0, %s33
      %s37 = sphi 0, %s36
      %s53 = sphi 0, %s37
      %s59 = sphi 0, %s61
      %s62 = sphi 0, %s59
      %s63 = sphi 0, %s62
      %s79 = sphi 0, %s63
      %s85 = sphi 0, %s87
      %s88 = sphi 0, %s85
      %s89 = sphi 0, %s88
      %s105 = sphi 0, %s89
      %s109 = sphi 0, %s109
      %s111 = sphi 0, %s109
      %s112 = sphi 0, %s111
      %s126 = sphi 0, %s112
      %s130 = sphi 0, %s130
      %s132 = sphi 0, %s130
      %s133 = sphi 0, %s132
      %s147 = sphi 0, %s133
      %s151 = sphi 0, %s151
      %s153 = sphi 0, %s151
      %s154 = sphi 0, %s153
      %s168 = sphi 0, %s154
      %s172 = sphi 0, %s172
      %s174 = sphi 0, %s172
      %s175 = sphi 0, %s174
      %s189 = sphi 0, %s175
      %s193 = sphi 0, %s193
      %s195 = sphi 0, %s193
      %s196 = sphi 0, %s195
      %s210 = sphi 0, %s196
      %s214 = sphi 0, %s214
      %s216 = sphi 0, %s214
      %s217 = sphi 0, %s216
      %s231 = sphi 0, %s217
      %s235 = sphi 0, %s235
      %s237 = sphi 0, %s235
      %s238 = sphi 0, %s237
      %s252 = sphi 0, %s238
      %s256 = sphi 0, %s256
      %s258 = sphi 0, %s256
      %s259 = sphi 0, %s258
      %s273 = sphi 0, %s259
      %s277 = sphi 0, %s277
      %s279 = sphi 0, %s277
      %s280 = sphi 0, %s279
      %s294 = sphi 0, %s280
      %s300 = sphi 0, %s302
      %s303 = sphi 0, %s300
      %s304 = sphi 0, %s303
      %s320 = sphi 0, %s304
    $region4: #{htsa_forward.1} parent=1 // loop_header_branch
      %26 = sbr.rel (%p24) target = $region8
    $region5: #{htsa_forward.1} parent=1 // loop_body
      %s28 = ssub.s32 %s23, 1
      %s29 = ssub.s32 %s23, 2
      %s30 = sadd.s32 %s23, 1
      %s31 = ssub.s32 %s23, %s30
      %p32 = scmp.eq.s32.totalorder %s31, 0
      %s34 = sadd.s32 %s33, 1
      %s35 = scalar_select %p32, %s33, %s34
      %p38 = pneg %p32
      %p39 = scmp.eq.s32.totalorder %s23, 1
      %p40 = por %p38, %p39
      %p41 = scmp.ne.s32.totalorder %s33, %s36
      %p42 = scmp.eq.s32.totalorder %s23, 0
      %p43 = por %p41, %p42
      %p44 = scmp.ne.s32.totalorder %s33, %s36
      %p45 = scmp.eq.s32.totalorder %s28, 1
      %p46 = por %p44, %p45
      %p47 = scmp.ne.s32.totalorder %s36, %s37
      %p48 = scmp.eq.s32.totalorder %s28, 0
      %p49 = por %p47, %p48
      %p50 = scmp.ne.s32.totalorder %s36, %s37
      %p51 = scmp.eq.s32.totalorder %s29, 1
      %p52 = por %p50, %p51
      %p54 = scmp.ne.s32.totalorder %s37, %s53
      %p55 = scmp.eq.s32.totalorder %s29, 0
      %p56 = por %p54, %p55
      %s57 = ssub.s32 %s23, %s30
      %p58 = scmp.eq.s32.totalorder %s57, 0
      %s60 = sadd.s32 %s59, 1
      %s61 = scalar_select %p58, %s59, %s60
      %p64 = pneg %p58
      %p65 = scmp.eq.s32.totalorder %s23, 1
      %p66 = por %p64, %p65
      %p67 = scmp.ne.s32.totalorder %s59, %s62
      %p68 = scmp.eq.s32.totalorder %s23, 0
      %p69 = por %p67, %p68
      %p70 = scmp.ne.s32.totalorder %s59, %s62
      %p71 = scmp.eq.s32.totalorder %s28, 1
      %p72 = por %p70, %p71
      %p73 = scmp.ne.s32.totalorder %s62, %s63
      %p74 = scmp.eq.s32.totalorder %s28, 0
      %p75 = por %p73, %p74
      %p76 = scmp.ne.s32.totalorder %s62, %s63
      %p77 = scmp.eq.s32.totalorder %s29, 1
      %p78 = por %p76, %p77
      %p80 = scmp.ne.s32.totalorder %s63, %s79
      %p81 = scmp.eq.s32.totalorder %s29, 0
      %p82 = por %p80, %p81
      %s83 = ssub.s32 %s23, %s30
      %p84 = scmp.eq.s32.totalorder %s83, 0
      %s86 = sadd.s32 %s85, 1
      %s87 = scalar_select %p84, %s85, %s86
      %p90 = pneg %p84
      %p91 = scmp.eq.s32.totalorder %s23, 1
      %p92 = por %p90, %p91
      %p93 = scmp.ne.s32.totalorder %s85, %s88
      %p94 = scmp.eq.s32.totalorder %s23, 0
      %p95 = por %p93, %p94
      %p96 = scmp.ne.s32.totalorder %s85, %s88
      %p97 = scmp.eq.s32.totalorder %s28, 1
      %p98 = por %p96, %p97
      %p99 = scmp.ne.s32.totalorder %s88, %s89
      %p100 = scmp.eq.s32.totalorder %s28, 0
      %p101 = por %p99, %p100
      %p102 = scmp.ne.s32.totalorder %s88, %s89
      %p103 = scmp.eq.s32.totalorder %s29, 1
      %p104 = por %p102, %p103
      %p106 = scmp.ne.s32.totalorder %s89, %s105
      %p107 = scmp.eq.s32.totalorder %s29, 0
      %p108 = por %p106, %p107
      %s110 = sadd.s32 %s109, 1
      %p113 = scmp.eq.s32.totalorder %s23, 1
      %p114 = scmp.ne.s32.totalorder %s109, %s111
      %p115 = scmp.eq.s32.totalorder %s23, 0
      %p116 = por %p114, %p115
      %p117 = scmp.ne.s32.totalorder %s109, %s111
      %p118 = scmp.eq.s32.totalorder %s28, 1
      %p119 = por %p117, %p118
      %p120 = scmp.ne.s32.totalorder %s111, %s112
      %p121 = scmp.eq.s32.totalorder %s28, 0
      %p122 = por %p120, %p121
      %p123 = scmp.ne.s32.totalorder %s111, %s112
      %p124 = scmp.eq.s32.totalorder %s29, 1
      %p125 = por %p123, %p124
      %p127 = scmp.ne.s32.totalorder %s112, %s126
      %p128 = scmp.eq.s32.totalorder %s29, 0
      %p129 = por %p127, %p128
      %s131 = sadd.s32 %s130, 1
      %p134 = scmp.eq.s32.totalorder %s23, 1
      %p135 = scmp.ne.s32.totalorder %s130, %s132
      %p136 = scmp.eq.s32.totalorder %s23, 0
      %p137 = por %p135, %p136
      %p138 = scmp.ne.s32.totalorder %s130, %s132
      %p139 = scmp.eq.s32.totalorder %s28, 1
      %p140 = por %p138, %p139
      %p141 = scmp.ne.s32.totalorder %s132, %s133
      %p142 = scmp.eq.s32.totalorder %s28, 0
      %p143 = por %p141, %p142
      %p144 = scmp.ne.s32.totalorder %s132, %s133
      %p145 = scmp.eq.s32.totalorder %s29, 1
      %p146 = por %p144, %p145
      %p148 = scmp.ne.s32.totalorder %s133, %s147
      %p149 = scmp.eq.s32.totalorder %s29, 0
      %p150 = por %p148, %p149
      %s152 = sadd.s32 %s151, 1
      %p155 = scmp.eq.s32.totalorder %s23, 1
      %p156 = scmp.ne.s32.totalorder %s151, %s153
      %p157 = scmp.eq.s32.totalorder %s23, 0
      %p158 = por %p156, %p157
      %p159 = scmp.ne.s32.totalorder %s151, %s153
      %p160 = scmp.eq.s32.totalorder %s28, 1
      %p161 = por %p159, %p160
      %p162 = scmp.ne.s32.totalorder %s153, %s154
      %p163 = scmp.eq.s32.totalorder %s28, 0
      %p164 = por %p162, %p163
      %p165 = scmp.ne.s32.totalorder %s153, %s154
      %p166 = scmp.eq.s32.totalorder %s29, 1
      %p167 = por %p165, %p166
      %p169 = scmp.ne.s32.totalorder %s154, %s168
      %p170 = scmp.eq.s32.totalorder %s29, 0
      %p171 = por %p169, %p170
      %s173 = sadd.s32 %s172, 1
      %p176 = scmp.eq.s32.totalorder %s23, 1
      %p177 = scmp.ne.s32.totalorder %s172, %s174
      %p178 = scmp.eq.s32.totalorder %s23, 0
      %p179 = por %p177, %p178
      %p180 = scmp.ne.s32.totalorder %s172, %s174
      %p181 = scmp.eq.s32.totalorder %s28, 1
      %p182 = por %p180, %p181
      %p183 = scmp.ne.s32.totalorder %s174, %s175
      %p184 = scmp.eq.s32.totalorder %s28, 0
      %p185 = por %p183, %p184
      %p186 = scmp.ne.s32.totalorder %s174, %s175
      %p187 = scmp.eq.s32.totalorder %s29, 1
      %p188 = por %p186, %p187
      %p190 = scmp.ne.s32.totalorder %s175, %s189
      %p191 = scmp.eq.s32.totalorder %s29, 0
      %p192 = por %p190, %p191
      %s194 = sadd.s32 %s193, 1
      %p197 = scmp.eq.s32.totalorder %s23, 1
      %p198 = scmp.ne.s32.totalorder %s193, %s195
      %p199 = scmp.eq.s32.totalorder %s23, 0
      %p200 = por %p198, %p199
      %p201 = scmp.ne.s32.totalorder %s193, %s195
      %p202 = scmp.eq.s32.totalorder %s28, 1
      %p203 = por %p201, %p202
      %p204 = scmp.ne.s32.totalorder %s195, %s196
      %p205 = scmp.eq.s32.totalorder %s28, 0
      %p206 = por %p204, %p205
      %p207 = scmp.ne.s32.totalorder %s195, %s196
      %p208 = scmp.eq.s32.totalorder %s29, 1
      %p209 = por %p207, %p208
      %p211 = scmp.ne.s32.totalorder %s196, %s210
      %p212 = scmp.eq.s32.totalorder %s29, 0
      %p213 = por %p211, %p212
      %s215 = sadd.s32 %s214, 1
      %p218 = scmp.eq.s32.totalorder %s23, 1
      %p219 = scmp.ne.s32.totalorder %s214, %s216
      %p220 = scmp.eq.s32.totalorder %s23, 0
      %p221 = por %p219, %p220
      %p222 = scmp.ne.s32.totalorder %s214, %s216
      %p223 = scmp.eq.s32.totalorder %s28, 1
      %p224 = por %p222, %p223
      %p225 = scmp.ne.s32.totalorder %s216, %s217
      %p226 = scmp.eq.s32.totalorder %s28, 0
      %p227 = por %p225, %p226
      %p228 = scmp.ne.s32.totalorder %s216, %s217
      %p229 = scmp.eq.s32.totalorder %s29, 1
      %p230 = por %p228, %p229
      %p232 = scmp.ne.s32.totalorder %s217, %s231
      %p233 = scmp.eq.s32.totalorder %s29, 0
      %p234 = por %p232, %p233
      %s236 = sadd.s32 %s235, 1
      %p239 = scmp.eq.s32.totalorder %s23, 1
      %p240 = scmp.ne.s32.totalorder %s235, %s237
      %p241 = scmp.eq.s32.totalorder %s23, 0
      %p242 = por %p240, %p241
      %p243 = scmp.ne.s32.totalorder %s235, %s237
      %p244 = scmp.eq.s32.totalorder %s28, 1
      %p245 = por %p243, %p244
      %p246 = scmp.ne.s32.totalorder %s237, %s238
      %p247 = scmp.eq.s32.totalorder %s28, 0
      %p248 = por %p246, %p247
      %p249 = scmp.ne.s32.totalorder %s237, %s238
      %p250 = scmp.eq.s32.totalorder %s29, 1
      %p251 = por %p249, %p250
      %p253 = scmp.ne.s32.totalorder %s238, %s252
      %p254 = scmp.eq.s32.totalorder %s29, 0
      %p255 = por %p253, %p254
      %s257 = sadd.s32 %s256, 1
      %p260 = scmp.eq.s32.totalorder %s23, 1
      %p261 = scmp.ne.s32.totalorder %s256, %s258
      %p262 = scmp.eq.s32.totalorder %s23, 0
      %p263 = por %p261, %p262
      %p264 = scmp.ne.s32.totalorder %s256, %s258
      %p265 = scmp.eq.s32.totalorder %s28, 1
      %p266 = por %p264, %p265
      %p267 = scmp.ne.s32.totalorder %s258, %s259
      %p268 = scmp.eq.s32.totalorder %s28, 0
      %p269 = por %p267, %p268
      %p270 = scmp.ne.s32.totalorder %s258, %s259
      %p271 = scmp.eq.s32.totalorder %s29, 1
      %p272 = por %p270, %p271
      %p274 = scmp.ne.s32.totalorder %s259, %s273
      %p275 = scmp.eq.s32.totalorder %s29, 0
      %p276 = por %p274, %p275
      %s278 = sadd.s32 %s277, 1
      %p281 = scmp.eq.s32.totalorder %s23, 1
      %p282 = scmp.ne.s32.totalorder %s277, %s279
      %p283 = scmp.eq.s32.totalorder %s23, 0
      %p284 = por %p282, %p283
      %p285 = scmp.ne.s32.totalorder %s277, %s279
      %p286 = scmp.eq.s32.totalorder %s28, 1
      %p287 = por %p285, %p286
      %p288 = scmp.ne.s32.totalorder %s279, %s280
      %p289 = scmp.eq.s32.totalorder %s28, 0
      %p290 = por %p288, %p289
      %p291 = scmp.ne.s32.totalorder %s279, %s280
      %p292 = scmp.eq.s32.totalorder %s29, 1
      %p293 = por %p291, %p292
      %p295 = scmp.ne.s32.totalorder %s280, %s294
      %p296 = scmp.eq.s32.totalorder %s29, 0
      %p297 = por %p295, %p296
      %s298 = ssub.s32 %s23, %s30
      %p299 = scmp.eq.s32.totalorder %s298, 0
      %s301 = sadd.s32 %s300, 1
      %s302 = scalar_select %p299, %s300, %s301
      %p305 = pneg %p299
      %p306 = scmp.eq.s32.totalorder %s23, 1
      %p307 = por %p305, %p306
      %p308 = scmp.ne.s32.totalorder %s300, %s303
      %p309 = scmp.eq.s32.totalorder %s23, 0
      %p310 = por %p308, %p309
      %p311 = scmp.ne.s32.totalorder %s300, %s303
      %p312 = scmp.eq.s32.totalorder %s28, 1
      %p313 = por %p311, %p312
      %p314 = scmp.ne.s32.totalorder %s303, %s304
      %p315 = scmp.eq.s32.totalorder %s28, 0
      %p316 = por %p314, %p315
      %p317 = scmp.ne.s32.totalorder %s303, %s304
      %p318 = scmp.eq.s32.totalorder %s29, 1
      %p319 = por %p317, %p318
      %p321 = scmp.ne.s32.totalorder %s304, %s320
      %p322 = scmp.eq.s32.totalorder %s29, 0
      %p323 = por %p321, %p322
      %p324 = scmp.le.s32.totalorder 1, %s23
      %p325 = scmp.lt.s32.totalorder %s23, 3
      %p326 = pnand %p324, %p325
      %p327 = pneg %p326
      // Predicated region
      $region9: #{htsa_forward.1} parent=5 // pred_check
        _
      $region10: #{htsa_forward.1} parent=5 // pred_check_branch
        %329 = sbr.rel (%p326) target = $region12
      $region11: #{htsa_forward.1} parent=5 // pred_region
        %s330 = ssub.s32 %s23, 1
        // Predicated region
        $region13: #{htsa_forward.1} parent=11 // pred_check
          %p331 = pneg %p122
        $region14: #{htsa_forward.1} parent=11 // pred_check_branch
          %333 = sbr.rel (%p331) target = $region16
        $region15: #{htsa_forward.1} parent=11 // pred_region
          _
        $region16: #{htsa_forward.1} parent=11 // pred_fallthru
          _
        // Predicated region
        $region17: #{htsa_forward.1} parent=11 // pred_check
          %p334 = pneg %p143
        $region18: #{htsa_forward.1} parent=11 // pred_check_branch
          %336 = sbr.rel (%p334) target = $region20
        $region19: #{htsa_forward.1} parent=11 // pred_region
          %s338 = ssub.s32 512, 512
          %339 = vsyncadd [#allocation3], %s338
          %s340 = sshll.u32 [#allocation2], 4
          %s341 = int_to_ptr.vmem [resolvable:$true] %s340
          %346 = dma.hbm_to_vmem [thread:$0]  %s4, 512, %s341, [#allocation3], 128, 128, 8
        $region20: #{htsa_forward.1} parent=11 // pred_fallthru
          _
        // Predicated region
        $region21: #{htsa_forward.1} parent=11 // pred_check
          %p347 = pneg %p164
        $region22: #{htsa_forward.1} parent=11 // pred_check_branch
          %349 = sbr.rel (%p347) target = $region24
        $region23: #{htsa_forward.1} parent=11 // pred_region
          _
        $region24: #{htsa_forward.1} parent=11 // pred_fallthru
          _
        // Predicated region
        $region25: #{htsa_forward.1} parent=11 // pred_check
          %p350 = pneg %p185
        $region26: #{htsa_forward.1} parent=11 // pred_check_branch
          %352 = sbr.rel (%p350) target = $region28
        $region27: #{htsa_forward.1} parent=11 // pred_region
          %s354 = ssub.s32 512, 512
          %355 = vsyncadd [#allocation6], %s354
          %s356 = sshll.u32 [#allocation5], 4
          %s357 = int_to_ptr.vmem [resolvable:$true] %s356
          %362 = dma.hbm_to_vmem [thread:$0]  %s6, 512, %s357, [#allocation6], 128, 128, 8
        $region28: #{htsa_forward.1} parent=11 // pred_fallthru
          _
        // Predicated region
        $region29: #{htsa_forward.1} parent=11 // pred_check
          %p363 = pneg %p206
        $region30: #{htsa_forward.1} parent=11 // pred_check_branch
          %365 = sbr.rel (%p363) target = $region32
        $region31: #{htsa_forward.1} parent=11 // pred_region
          _
        $region32: #{htsa_forward.1} parent=11 // pred_fallthru
          _
        // Predicated region
        $region33: #{htsa_forward.1} parent=11 // pred_check
          %p366 = pneg %p227
        $region34: #{htsa_forward.1} parent=11 // pred_check_branch
          %368 = sbr.rel (%p366) target = $region36
        $region35: #{htsa_forward.1} parent=11 // pred_region
          _
        $region36: #{htsa_forward.1} parent=11 // pred_fallthru
          _
        // Predicated region
        $region37: #{htsa_forward.1} parent=11 // pred_check
          %p369 = pneg %p248
        $region38: #{htsa_forward.1} parent=11 // pred_check_branch
          %371 = sbr.rel (%p369) target = $region40
        $region39: #{htsa_forward.1} parent=11 // pred_region
          _
        $region40: #{htsa_forward.1} parent=11 // pred_fallthru
          _
        // Predicated region
        $region41: #{htsa_forward.1} parent=11 // pred_check
          %p372 = pneg %p269
        $region42: #{htsa_forward.1} parent=11 // pred_check_branch
          %374 = sbr.rel (%p372) target = $region44
        $region43: #{htsa_forward.1} parent=11 // pred_region
          _
        $region44: #{htsa_forward.1} parent=11 // pred_fallthru
          _
        // Predicated region
        $region45: #{htsa_forward.1} parent=11 // pred_check
          %p375 = pneg %p290
        $region46: #{htsa_forward.1} parent=11 // pred_check_branch
          %377 = sbr.rel (%p375) target = $region48
        $region47: #{htsa_forward.1} parent=11 // pred_region
          _
        $region48: #{htsa_forward.1} parent=11 // pred_fallthru
          _
      $region12: #{htsa_forward.1} parent=5 // pred_fallthru
        _
      %p378 = scmp.lt.s32.totalorder %s23, 2
      // Predicated region
      $region49: #{htsa_forward.1} parent=5 // pred_check
        %p379 = pneg %p378
      $region50: #{htsa_forward.1} parent=5 // pred_check_branch
        %381 = sbr.rel (%p379) target = $region52
      $region51: #{htsa_forward.1} parent=5 // pred_region
        // Predicated region
        $region53: #{htsa_forward.1} parent=51 // pred_check
          %p382 = pneg %p43
        $region54: #{htsa_forward.1} parent=51 // pred_check_branch
          %384 = sbr.rel (%p382) target = $region56
        $region55: #{htsa_forward.1} parent=51 // pred_region
          %p385 = scmp.lt.s32.totalorder %s23, 1
          %s386 = scalar_select %p385, %s23, 1
          %s387 = smul.addr %s386, 4
          %s388 = smul.addr %s387, 8
          %s389 = scalar_lea.vmem %s0, %s388
        $region56: #{htsa_forward.1} parent=51 // pred_fallthru
          _
        // Predicated region
        $region57: #{htsa_forward.1} parent=51 // pred_check
          %p390 = pneg %p69
        $region58: #{htsa_forward.1} parent=51 // pred_check_branch
          %392 = sbr.rel (%p390) target = $region60
        $region59: #{htsa_forward.1} parent=51 // pred_region
          %p393 = scmp.lt.s32.totalorder %s23, 1
          %s394 = scalar_select %p393, %s23, 1
          %s395 = smul.addr %s394, 4
          %s396 = smul.addr %s395, 8
          %s397 = scalar_lea.vmem %s1, %s396
        $region60: #{htsa_forward.1} parent=51 // pred_fallthru
          _
        // Predicated region
        $region61: #{htsa_forward.1} parent=51 // pred_check
          %p398 = pneg %p95
        $region62: #{htsa_forward.1} parent=51 // pred_check_branch
          %400 = sbr.rel (%p398) target = $region64
        $region63: #{htsa_forward.1} parent=51 // pred_region
          %p401 = scmp.lt.s32.totalorder %s23, 1
          %s402 = scalar_select %p401, %s23, 1
          %s403 = smul.addr %s402, 4
          %s404 = smul.addr %s403, 8
          %s405 = scalar_lea.vmem %s2, %s404
        $region64: #{htsa_forward.1} parent=51 // pred_fallthru
          _
      $region52: #{htsa_forward.1} parent=5 // pred_fallthru
        _
      %p406 = scmp.le.s32.totalorder 1, %s23
      %p407 = scmp.lt.s32.totalorder %s23, 3
      %p408 = pnand %p406, %p407
      %p409 = pneg %p408
      // Predicated region
      $region65: #{htsa_forward.1} parent=5 // pred_check
        _
      $region66: #{htsa_forward.1} parent=5 // pred_check_branch
        %411 = sbr.rel (%p408) target = $region68
      $region67: #{htsa_forward.1} parent=5 // pred_region
        %s412 = ssub.s32 %s23, 1
        // Predicated region
        $region69: #{htsa_forward.1} parent=67 // pred_check
          %p413 = pneg %p143
        $region70: #{htsa_forward.1} parent=67 // pred_check_branch
          %415 = sbr.rel (%p413) target = $region72
        $region71: #{htsa_forward.1} parent=67 // pred_region
          %416 = dma.done [#allocation3], 512
        $region72: #{htsa_forward.1} parent=67 // pred_fallthru
          _
        // Predicated region
        $region73: #{htsa_forward.1} parent=67 // pred_check
          %p417 = pneg %p185
        $region74: #{htsa_forward.1} parent=67 // pred_check_branch
          %419 = sbr.rel (%p417) target = $region76
        $region75: #{htsa_forward.1} parent=67 // pred_region
          %420 = dma.done [#allocation6], 512
        $region76: #{htsa_forward.1} parent=67 // pred_fallthru
          _
        %p421 = scmp.lt.s32.totalorder %s28, 1
        %s422 = scalar_select %p421, %s28, 1
        %s423 = smul.addr %s422, 4
        %s424 = smul.addr %s423, 8
        %s425 = scalar_lea.vmem %s0, %s424
        %p426 = pneg %p49
        %p427 = pneg %p46
        %p428 = scmp.lt.s32.totalorder %s28, 1
        %s429 = scalar_select %p428, %s28, 1
        %s430 = smul.addr %s429, 4
        %s431 = smul.addr %s430, 8
        %s432 = scalar_lea.vmem %s1, %s431
        %p433 = pneg %p75
        %p434 = pneg %p72
        %p435 = scmp.lt.s32.totalorder %s28, 1
        %s436 = scalar_select %p435, %s28, 1
        %s437 = smul.addr %s436, 4
        %s438 = smul.addr %s437, 8
        %s439 = scalar_lea.vmem %s2, %s438
        %p440 = pneg %p101
        %p441 = pneg %p98
        %p442 = pneg %p122
        %p443 = pneg %p119
        %p444 = pneg %p143
        %p445 = pneg %p140
        %p446 = pneg %p164
        %p447 = pneg %p161
        %p448 = pneg %p185
        %p449 = pneg %p182
        %p450 = pneg %p206
        %p451 = pneg %p203
        %p452 = pneg %p227
        %p453 = pneg %p224
        %p454 = pneg %p248
        %p455 = pneg %p245
        %p456 = pneg %p269
        %p457 = pneg %p266
        %p458 = pneg %p290
        %p459 = pneg %p287
        %p460 = pneg %p316
        %p461 = pneg %p313
        %s462 = sand.u32 %s303, 1
        %s463 = scalar_lea.sflag [#allocation4], %s462
        %s464 = sand.u32 %s303, 1
        %s465 = smul.addr %s464, 32
        %s466 = scalar_lea.vmem [#allocation7], %s465
        %p467 = scmp.lt.s32.totalorder %s28, 1
        %s468 = scalar_select %p467, %s28, 1
        %s469 = smul.addr %s468, 4
        %s470 = smul.addr %s469, 8
        %s471 = scalar_lea.vmem %s0, %s470
        %p472 = scmp.lt.s32.totalorder %s28, 1
        %s473 = scalar_select %p472, %s28, 1
        %s474 = smul.addr %s473, 4
        %s475 = smul.addr %s474, 8
        %s476 = scalar_lea.vmem %s1, %s475
        %p477 = scmp.lt.s32.totalorder %s28, 1
        %s478 = scalar_select %p477, %s28, 1
        %s479 = smul.addr %s478, 4
        %s480 = smul.addr %s479, 8
        %s481 = scalar_lea.vmem %s2, %s480
        %v482 = vld [vmem:[%s471] sm:$0xff]
        %v483 = vld [vmem:[%s471 + $0x8] sm:$0xff]
        %v484 = vld [vmem:[%s471 + $0x10] sm:$0xff]
        %v485 = vld [vmem:[%s471 + $0x18] sm:$0xff]
        %v486 = vld [vmem:[%s476] sm:$0xff]
        %v487 = vld [vmem:[%s476 + $0x8] sm:$0xff]
        %v488 = vld [vmem:[%s476 + $0x10] sm:$0xff]
        %v489 = vld [vmem:[%s476 + $0x18] sm:$0xff]
        %v490 = vld [vmem:[%s481] sm:$0xff]
        %v491 = vld [vmem:[%s481 + $0x8] sm:$0xff]
        %v492 = vld [vmem:[%s481 + $0x10] sm:$0xff]
        %v493 = vld [vmem:[%s481 + $0x18] sm:$0xff]
        %v494 = vld [vmem:[#allocation2] sm:$0xff]
        %v495 = vld [vmem:[#allocation2 + $0x8] sm:$0xff]
        %v496 = vld [vmem:[#allocation2 + $0x10] sm:$0xff]
        %v497 = vld [vmem:[#allocation2 + $0x18] sm:$0xff]
        %v498 = vld [vmem:[%s5] sm:$0x1]
        %v500 = vlaneseq
        %v501 = vshrl.u32 %v500, 7
        %v502 = vsub.s32 0, %v501
        %v503 = vrot.slane %v498, %v502
        %vm505 = vcmask 261120
        %v507 = vsel %vm505, %v486, 0
        %v510 = vsel %vm505, %v487, 0
        %v513 = vsel %vm505, %v488, 0
        %v516 = vsel %vm505, %v489, 0
        %518 = vmatprep.subr.mxu0 0.0
        %519 = vmatpush1.msra.mxu0 %v494
        %520 = vmatprep.subr.mxu0 0.0
        %521 = vmatpush1.msra.mxu0 %v495
        %522 = vmatprep.subr.mxu0 0.0
        %523 = vmatpush1.msra.mxu0 %v496
        %524 = vmatprep.subr.mxu0 0.0
        %525 = vmatpush1.msra.mxu0 %v497
        %526 = vmatprep.subr.mxu0 0.0
        %527 = vmatpush1.msra.mxu0 0.0
        %528 = vmatprep.subr.mxu0 0.0
        %529 = vmatpush1.msra.mxu0 0.0
        %530 = vmatprep.subr.mxu0 0.0
        %531 = vmatpush1.msra.mxu0 0.0
        %532 = vmatprep.subr.mxu0 0.0
        %533 = vmatpush1.msra.mxu0 0.0
        %534 = vmatprep.subr.mxu0 0.0
        %535 = vmatpush1.msra.mxu0 0.0
        %536 = vmatprep.subr.mxu0 0.0
        %537 = vmatpush1.msra.mxu0 0.0
        %538 = vmatprep.subr.mxu0 0.0
        %539 = vmatpush1.msra.mxu0 0.0
        %540 = vmatprep.subr.mxu0 0.0
        %541 = vmatpush1.msra.mxu0 0.0
        %542 = vmatprep.subr.mxu0 0.0
        %543 = vmatpush1.msra.mxu0 0.0
        %544 = vmatprep.subr.mxu0 0.0
        %545 = vmatpush1.msra.mxu0 0.0
        %546 = vmatprep.subr.mxu0 0.0
        %547 = vmatpush1.msra.mxu0 0.0
        %548 = vmatprep.subr.mxu0 0.0
        %549 = vmatpush1.msra.mxu0 0.0
        %550 = vmatprep.subr.mxu0 0.0
        %551 = vmatpush1.msra.mxu0 0.0
        %552 = vmatprep.subr.mxu0 0.0
        %553 = vmatpush1.msra.mxu0 0.0
        %554 = vmatprep.subr.mxu0 0.0
        %555 = vmatpush1.msra.mxu0 0.0
        %556 = vmatprep.subr.mxu0 0.0
        %557 = vmatpush1.msra.mxu0 0.0
        %558 = vmatprep.subr.mxu0 0.0
        %559 = vmatpush1.msra.mxu0 0.0
        %560 = vmatprep.subr.mxu0 0.0
        %561 = vmatpush1.msra.mxu0 0.0
        %562 = vmatprep.subr.mxu0 0.0
        %563 = vmatpush1.msra.mxu0 0.0
        %564 = vmatprep.subr.mxu0 0.0
        %565 = vmatpush1.msra.mxu0 0.0
        %566 = vmatprep.subr.mxu0 0.0
        %567 = vmatpush1.msra.mxu0 0.0
        %568 = vmatprep.subr.mxu0 0.0
        %569 = vmatpush1.msra.mxu0 0.0
        %570 = vmatprep.subr.mxu0 0.0
        %571 = vmatpush1.msra.mxu0 0.0
        %572 = vmatprep.subr.mxu0 0.0
        %573 = vmatpush1.msra.mxu0 0.0
        %574 = vmatprep.subr.mxu0 0.0
        %575 = vmatpush1.msra.mxu0 0.0
        %576 = vmatprep.subr.mxu0 0.0
        %577 = vmatpush1.msra.mxu0 0.0
        %578 = vmatprep.subr.mxu0 0.0
        %579 = vmatpush1.msra.mxu0 0.0
        %580 = vmatprep.subr.mxu0 0.0
        %581 = vmatpush1.msra.mxu0 0.0
        %582 = vmatprep.mubr.f32.mxu0 0.0
        %583 = vmatmul.mubr.f32.gmra.mrb[0].mxu0 %v507
        %v584 = vpop.f32.mrb[0].mxu0
        %v585 = vadd.f32 %v503, %v584
        %v586 = vpop.f32.mrb[0].mxu0
        %587 = vmatprep.mubr.f32.mxu0 0.0
        %588 = vmatmul.mubr.f32.gmra.mrb[0].mxu0 %v510
        %v589 = vpop.f32.mrb[0].mxu0
        %v590 = vadd.f32 %v503, %v589
        %v591 = vpop.f32.mrb[0].mxu0
        %592 = vmatprep.mubr.f32.mxu0 0.0
        %593 = vmatmul.mubr.f32.gmra.mrb[0].mxu0 %v513
        %v594 = vpop.f32.mrb[0].mxu0
        %v595 = vadd.f32 %v503, %v594
        %v596 = vpop.f32.mrb[0].mxu0
        %597 = vmatprep.mubr.f32.mxu0 0.0
        %598 = vmatmul.mubr.f32.gmra.mrb[0].mxu0 %v516
        %v599 = vpop.f32.mrb[0].mxu0
        %v600 = vadd.f32 %v503, %v599
        %v601 = vpop.f32.mrb[0].mxu0
        %602 = vdwg.mxu0
        %v603 = vld [vmem:[#allocation5] sm:$0xff]
        %v604 = vld [vmem:[#allocation5 + $0x8] sm:$0xff]
        %v605 = vld [vmem:[#allocation5 + $0x10] sm:$0xff]
        %v606 = vld [vmem:[#allocation5 + $0x18] sm:$0xff]
        %v607 = vld [vmem:[%s7] sm:$0x1]
        %v609 = vlaneseq
        %v610 = vshrl.u32 %v609, 7
        %v611 = vsub.s32 0, %v610
        %v612 = vrot.slane %v607, %v611
        %v615 = vsel %vm505, %v490, 0
        %v618 = vsel %vm505, %v491, 0
        %v621 = vsel %vm505, %v492, 0
        %v624 = vsel %vm505, %v493, 0
        %626 = vmatprep.subr.mxu0 0.0
        %627 = vmatpush1.msra.mxu0 %v603
        %628 = vmatprep.subr.mxu0 0.0
        %629 = vmatpush1.msra.mxu0 %v604
        %630 = vmatprep.subr.mxu0 0.0
        %631 = vmatpush1.msra.mxu0 %v605
        %632 = vmatprep.subr.mxu0 0.0
        %633 = vmatpush1.msra.mxu0 %v606
        %634 = vmatprep.subr.mxu0 0.0
        %635 = vmatpush1.msra.mxu0 0.0
        %636 = vmatprep.subr.mxu0 0.0
        %637 = vmatpush1.msra.mxu0 0.0
        %638 = vmatprep.subr.mxu0 0.0
        %639 = vmatpush1.msra.mxu0 0.0
        %640 = vmatprep.subr.mxu0 0.0
        %641 = vmatpush1.msra.mxu0 0.0
        %642 = vmatprep.subr.mxu0 0.0
        %643 = vmatpush1.msra.mxu0 0.0
        %644 = vmatprep.subr.mxu0 0.0
        %645 = vmatpush1.msra.mxu0 0.0
        %646 = vmatprep.subr.mxu0 0.0
        %647 = vmatpush1.msra.mxu0 0.0
        %648 = vmatprep.subr.mxu0 0.0
        %649 = vmatpush1.msra.mxu0 0.0
        %650 = vmatprep.subr.mxu0 0.0
        %651 = vmatpush1.msra.mxu0 0.0
        %652 = vmatprep.subr.mxu0 0.0
        %653 = vmatpush1.msra.mxu0 0.0
        %654 = vmatprep.subr.mxu0 0.0
        %655 = vmatpush1.msra.mxu0 0.0
        %656 = vmatprep.subr.mxu0 0.0
        %657 = vmatpush1.msra.mxu0 0.0
        %658 = vmatprep.subr.mxu0 0.0
        %659 = vmatpush1.msra.mxu0 0.0
        %660 = vmatprep.subr.mxu0 0.0
        %661 = vmatpush1.msra.mxu0 0.0
        %662 = vmatprep.subr.mxu0 0.0
        %663 = vmatpush1.msra.mxu0 0.0
        %664 = vmatprep.subr.mxu0 0.0
        %665 = vmatpush1.msra.mxu0 0.0
        %666 = vmatprep.subr.mxu0 0.0
        %667 = vmatpush1.msra.mxu0 0.0
        %668 = vmatprep.subr.mxu0 0.0
        %669 = vmatpush1.msra.mxu0 0.0
        %670 = vmatprep.subr.mxu0 0.0
        %671 = vmatpush1.msra.mxu0 0.0
        %672 = vmatprep.subr.mxu0 0.0
        %673 = vmatpush1.msra.mxu0 0.0
        %674 = vmatprep.subr.mxu0 0.0
        %675 = vmatpush1.msra.mxu0 0.0
        %676 = vmatprep.subr.mxu0 0.0
        %677 = vmatpush1.msra.mxu0 0.0
        %678 = vmatprep.subr.mxu0 0.0
        %679 = vmatpush1.msra.mxu0 0.0
        %680 = vmatprep.subr.mxu0 0.0
        %681 = vmatpush1.msra.mxu0 0.0
        %682 = vmatprep.subr.mxu0 0.0
        %683 = vmatpush1.msra.mxu0 0.0
        %684 = vmatprep.subr.mxu0 0.0
        %685 = vmatpush1.msra.mxu0 0.0
        %686 = vmatprep.subr.mxu0 0.0
        %687 = vmatpush1.msra.mxu0 0.0
        %688 = vmatprep.subr.mxu0 0.0
        %689 = vmatpush1.msra.mxu0 0.0
        %690 = vmatprep.mubr.f32.mxu0 0.0
        %691 = vmatmul.mubr.f32.gmra.mrb[0].mxu0 %v615
        %v692 = vpop.f32.mrb[0].mxu0
        %v693 = vadd.f32 %v612, %v692
        %v694 = vpop.f32.mrb[0].mxu0
        %695 = vmatprep.mubr.f32.mxu0 0.0
        %696 = vmatmul.mubr.f32.gmra.mrb[0].mxu0 %v618
        %v697 = vpop.f32.mrb[0].mxu0
        %v698 = vadd.f32 %v612, %v697
        %v699 = vpop.f32.mrb[0].mxu0
        %700 = vmatprep.mubr.f32.mxu0 0.0
        %701 = vmatmul.mubr.f32.gmra.mrb[0].mxu0 %v621
        %v702 = vpop.f32.mrb[0].mxu0
        %v703 = vadd.f32 %v612, %v702
        %v704 = vpop.f32.mrb[0].mxu0
        %705 = vmatprep.mubr.f32.mxu0 0.0
        %706 = vmatmul.mubr.f32.gmra.mrb[0].mxu0 %v624
        %v707 = vpop.f32.mrb[0].mxu0
        %v708 = vadd.f32 %v612, %v707
        %v709 = vpop.f32.mrb[0].mxu0
        %710 = vdwg.mxu0
        %v711 = vmul.f32 %v482, 0.5
        %v712 = vmul.f32 %v483, 0.5
        %v713 = vmul.f32 %v484, 0.5
        %v714 = vmul.f32 %v485, 0.5
        %v715 = vld [vmem:[%s3] sm:$0xff]
        %v716 = vld [vmem:[%s3 + $0x8] sm:$0xff]
        %v717 = vld [vmem:[%s3 + $0x10] sm:$0xff]
        %v718 = vld [vmem:[%s3 + $0x18] sm:$0xff]
        %vm719 = vcmask 31744
        %v721 = vsel %vm719, %v711, 0
        %v724 = vsel %vm719, %v712, 0
        %v727 = vsel %vm719, %v713, 0
        %v730 = vsel %vm719, %v714, 0
        %v733 = vsel %vm719, %v585, 0
        %v736 = vsel %vm719, %v590, 0
        %v739 = vsel %vm719, %v595, 0
        %v742 = vsel %vm719, %v600, 0
        %744 = vmatprep.subr.mxu0 0.0
        %745 = vmatpush1.xpose.msra.mxu0 %v733
        %746 = vmatprep.subr.mxu0 0.0
        %747 = vmatpush1.xpose.msra.mxu0 %v736
        %748 = vmatprep.subr.mxu0 0.0
        %749 = vmatpush1.xpose.msra.mxu0 %v739
        %750 = vmatprep.subr.mxu0 0.0
        %751 = vmatpush1.xpose.msra.mxu0 %v742
        %752 = vmatprep.subr.mxu0 0.0
        %753 = vmatpush1.xpose.msra.mxu0 0.0
        %754 = vmatprep.subr.mxu0 0.0
        %755 = vmatpush1.xpose.msra.mxu0 0.0
        %756 = vmatprep.subr.mxu0 0.0
        %757 = vmatpush1.xpose.msra.mxu0 0.0
        %758 = vmatprep.subr.mxu0 0.0
        %759 = vmatpush1.xpose.msra.mxu0 0.0
        %760 = vmatprep.subr.mxu0 0.0
        %761 = vmatpush1.xpose.msra.mxu0 0.0
        %762 = vmatprep.subr.mxu0 0.0
        %763 = vmatpush1.xpose.msra.mxu0 0.0
        %764 = vmatprep.subr.mxu0 0.0
        %765 = vmatpush1.xpose.msra.mxu0 0.0
        %766 = vmatprep.subr.mxu0 0.0
        %767 = vmatpush1.xpose.msra.mxu0 0.0
        %768 = vmatprep.subr.mxu0 0.0
        %769 = vmatpush1.xpose.msra.mxu0 0.0
        %770 = vmatprep.subr.mxu0 0.0
        %771 = vmatpush1.xpose.msra.mxu0 0.0
        %772 = vmatprep.subr.mxu0 0.0
        %773 = vmatpush1.xpose.msra.mxu0 0.0
        %774 = vmatprep.subr.mxu0 0.0
        %775 = vmatpush1.xpose.msra.mxu0 0.0
        %776 = vmatprep.subr.mxu0 0.0
        %777 = vmatpush1.xpose.msra.mxu0 0.0
        %778 = vmatprep.subr.mxu0 0.0
        %779 = vmatpush1.xpose.msra.mxu0 0.0
        %780 = vmatprep.subr.mxu0 0.0
        %781 = vmatpush1.xpose.msra.mxu0 0.0
        %782 = vmatprep.subr.mxu0 0.0
        %783 = vmatpush1.xpose.msra.mxu0 0.0
        %784 = vmatprep.subr.mxu0 0.0
        %785 = vmatpush1.xpose.msra.mxu0 0.0
        %786 = vmatprep.subr.mxu0 0.0
        %787 = vmatpush1.xpose.msra.mxu0 0.0
        %788 = vmatprep.subr.mxu0 0.0
        %789 = vmatpush1.xpose.msra.mxu0 0.0
        %790 = vmatprep.subr.mxu0 0.0
        %791 = vmatpush1.xpose.msra.mxu0 0.0
        %792 = vmatprep.subr.mxu0 0.0
        %793 = vmatpush1.xpose.msra.mxu0 0.0
        %794 = vmatprep.subr.mxu0 0.0
        %795 = vmatpush1.xpose.msra.mxu0 0.0
        %796 = vmatprep.subr.mxu0 0.0
        %797 = vmatpush1.xpose.msra.mxu0 0.0
        %798 = vmatprep.subr.mxu0 0.0
        %799 = vmatpush1.xpose.msra.mxu0 0.0
        %800 = vmatprep.subr.mxu0 0.0
        %801 = vmatpush1.xpose.msra.mxu0 0.0
        %802 = vmatprep.subr.mxu0 0.0
        %803 = vmatpush1.xpose.msra.mxu0 0.0
        %804 = vmatprep.subr.mxu0 0.0
        %805 = vmatpush1.xpose.msra.mxu0 0.0
        %806 = vmatprep.subr.mxu0 0.0
        %807 = vmatpush1.xpose.msra.mxu0 0.0
        %808 = vmatprep.mubr.f32.mxu0 0.0
        %809 = vmatmul.mubr.f32.gmra.mrb[0].mxu0 %v721
        %v810 = vpop.f32.mrb[0].mxu0
        %v811 = vadd.f32 %v715, %v810
        %v812 = vpop.f32.mrb[0].mxu0
        %813 = vmatprep.mubr.f32.mxu0 0.0
        %814 = vmatmul.mubr.f32.gmra.mrb[0].mxu0 %v724
        %v815 = vpop.f32.mrb[0].mxu0
        %v816 = vadd.f32 %v716, %v815
        %v817 = vpop.f32.mrb[0].mxu0
        %818 = vmatprep.mubr.f32.mxu0 0.0
        %819 = vmatmul.mubr.f32.gmra.mrb[0].mxu0 %v727
        %v820 = vpop.f32.mrb[0].mxu0
        %v821 = vadd.f32 %v717, %v820
        %v822 = vpop.f32.mrb[0].mxu0
        %823 = vmatprep.mubr.f32.mxu0 0.0
        %824 = vmatmul.mubr.f32.gmra.mrb[0].mxu0 %v730
        %v825 = vpop.f32.mrb[0].mxu0
        %v826 = vadd.f32 %v718, %v825
        %v827 = vpop.f32.mrb[0].mxu0
        %828 = vdwg.mxu0
        %v829 = vsel %vm505, %v811, -inf
        %830 = vmax.xlane.f32.xlu0 %v829
        %v831 = vpop.xlane.xlu0 %830
        %v832 = vsel %vm505, %v816, -inf
        %833 = vmax.xlane.f32.xlu0 %v832
        %v834 = vpop.xlane.xlu0 %833
        %v835 = vsel %vm505, %v821, -inf
        %836 = vmax.xlane.f32.xlu0 %v835
        %v837 = vpop.xlane.xlu0 %836
        %v838 = vsel %vm505, %v826, -inf
        %839 = vmax.xlane.f32.xlu0 %v838
        %v840 = vpop.xlane.xlu0 %839
        %v841 = vsub.f32 %v811, %v831
        %v842 = vsub.f32 %v816, %v834
        %v843 = vsub.f32 %v821, %v837
        %v844 = vsub.f32 %v826, %v840
        %v845 = vmul.f32 %v841, 1.442695
        %v846 = vpow.pop %v845
        %v847 = vmul.f32 %v842, 1.442695
        %v848 = vpow.pop %v847
        %v849 = vmul.f32 %v843, 1.442695
        %v850 = vpow.pop %v849
        %v851 = vmul.f32 %v844, 1.442695
        %v852 = vpow.pop %v851
        %v853 = vsel %vm505, %v846, 0.0
        %854 = vadd.xlane.f32.xlu0 %v853
        %v855 = vpop.xlane.xlu0 %854
        %v856 = vsel %vm505, %v848, 0.0
        %857 = vadd.xlane.f32.xlu0 %v856
        %v858 = vpop.xlane.xlu0 %857
        %v859 = vsel %vm505, %v850, 0.0
        %860 = vadd.xlane.f32.xlu0 %v859
        %v861 = vpop.xlane.xlu0 %860
        %v862 = vsel %vm505, %v852, 0.0
        %863 = vadd.xlane.f32.xlu0 %v862
        %v864 = vpop.xlane.xlu0 %863
        %v865 = vrcp.pop %v855
        %v866 = vrcp.pop %v858
        %v867 = vrcp.pop %v861
        %v868 = vrcp.pop %v864
        %v869 = vmul.f32 %v846, %v865
        %v870 = vmul.f32 %v848, %v866
        %v871 = vmul.f32 %v850, %v867
        %v872 = vmul.f32 %v852, %v868
        %v874 = vsel %vm505, %v869, 0
        %v877 = vsel %vm505, %v870, 0
        %v880 = vsel %vm505, %v871, 0
        %v883 = vsel %vm505, %v872, 0
        %885 = vmatprep.subr.mxu0 0.0
        %886 = vmatpush1.msra.mxu0 %v693
        %887 = vmatprep.subr.mxu0 0.0
        %888 = vmatpush1.msra.mxu0 %v698
        %889 = vmatprep.subr.mxu0 0.0
        %890 = vmatpush1.msra.mxu0 %v703
        %891 = vmatprep.subr.mxu0 0.0
        %892 = vmatpush1.msra.mxu0 %v708
        %893 = vmatprep.subr.mxu0 0.0
        %894 = vmatpush1.msra.mxu0 0.0
        %895 = vmatprep.subr.mxu0 0.0
        %896 = vmatpush1.msra.mxu0 0.0
        %897 = vmatprep.subr.mxu0 0.0
        %898 = vmatpush1.msra.mxu0 0.0
        %899 = vmatprep.subr.mxu0 0.0
        %900 = vmatpush1.msra.mxu0 0.0
        %901 = vmatprep.subr.mxu0 0.0
        %902 = vmatpush1.msra.mxu0 0.0
        %903 = vmatprep.subr.mxu0 0.0
        %904 = vmatpush1.msra.mxu0 0.0
        %905 = vmatprep.subr.mxu0 0.0
        %906 = vmatpush1.msra.mxu0 0.0
        %907 = vmatprep.subr.mxu0 0.0
        %908 = vmatpush1.msra.mxu0 0.0
        %909 = vmatprep.subr.mxu0 0.0
        %910 = vmatpush1.msra.mxu0 0.0
        %911 = vmatprep.subr.mxu0 0.0
        %912 = vmatpush1.msra.mxu0 0.0
        %913 = vmatprep.subr.mxu0 0.0
        %914 = vmatpush1.msra.mxu0 0.0
        %915 = vmatprep.subr.mxu0 0.0
        %916 = vmatpush1.msra.mxu0 0.0
        %917 = vmatprep.subr.mxu0 0.0
        %918 = vmatpush1.msra.mxu0 0.0
        %919 = vmatprep.subr.mxu0 0.0
        %920 = vmatpush1.msra.mxu0 0.0
        %921 = vmatprep.subr.mxu0 0.0
        %922 = vmatpush1.msra.mxu0 0.0
        %923 = vmatprep.subr.mxu0 0.0
        %924 = vmatpush1.msra.mxu0 0.0
        %925 = vmatprep.subr.mxu0 0.0
        %926 = vmatpush1.msra.mxu0 0.0
        %927 = vmatprep.subr.mxu0 0.0
        %928 = vmatpush1.msra.mxu0 0.0
        %929 = vmatprep.subr.mxu0 0.0
        %930 = vmatpush1.msra.mxu0 0.0
        %931 = vmatprep.subr.mxu0 0.0
        %932 = vmatpush1.msra.mxu0 0.0
        %933 = vmatprep.subr.mxu0 0.0
        %934 = vmatpush1.msra.mxu0 0.0
        %935 = vmatprep.subr.mxu0 0.0
        %936 = vmatpush1.msra.mxu0 0.0
        %937 = vmatprep.subr.mxu0 0.0
        %938 = vmatpush1.msra.mxu0 0.0
        %939 = vmatprep.subr.mxu0 0.0
        %940 = vmatpush1.msra.mxu0 0.0
        %941 = vmatprep.subr.mxu0 0.0
        %942 = vmatpush1.msra.mxu0 0.0
        %943 = vmatprep.subr.mxu0 0.0
        %944 = vmatpush1.msra.mxu0 0.0
        %945 = vmatprep.subr.mxu0 0.0
        %946 = vmatpush1.msra.mxu0 0.0
        %947 = vmatprep.subr.mxu0 0.0
        %948 = vmatpush1.msra.mxu0 0.0
        %949 = vmatprep.mubr.f32.mxu0 0.0
        %950 = vmatmul.mubr.f32.gmra.mrb[0].mxu0 %v874
        %v951 = vpop.f32.mrb[0].mxu0
        %v952 = vadd.f32 0.0, %v951
        %v953 = vpop.f32.mrb[0].mxu0
        %954 = vmatprep.mubr.f32.mxu0 0.0
        %955 = vmatmul.mubr.f32.gmra.mrb[0].mxu0 %v877
        %v956 = vpop.f32.mrb[0].mxu0
        %v957 = vadd.f32 0.0, %v956
        %v958 = vpop.f32.mrb[0].mxu0
        %959 = vmatprep.mubr.f32.mxu0 0.0
        %960 = vmatmul.mubr.f32.gmra.mrb[0].mxu0 %v880
        %v961 = vpop.f32.mrb[0].mxu0
        %v962 = vadd.f32 0.0, %v961
        %v963 = vpop.f32.mrb[0].mxu0
        %964 = vmatprep.mubr.f32.mxu0 0.0
        %965 = vmatmul.mubr.f32.gmra.mrb[0].mxu0 %v883
        %v966 = vpop.f32.mrb[0].mxu0
        %v967 = vadd.f32 0.0, %v966
        %v968 = vpop.f32.mrb[0].mxu0
        %969 = vdwg.mxu0
        %970 = vrot.lane.b32.xlu0 %v711, 124
        %v971 = vpop.permute.xlu0 %970
        %972 = vrot.lane.b32.xlu0 %v712, 124
        %v973 = vpop.permute.xlu0 %972
        %974 = vrot.lane.b32.xlu0 %v713, 124
        %v975 = vpop.permute.xlu0 %974
        %976 = vrot.lane.b32.xlu0 %v714, 124
        %v977 = vpop.permute.xlu0 %976
        %978 = vrot.lane.b32.xlu0 %v585, 124
        %v979 = vpop.permute.xlu0 %978
        %980 = vrot.lane.b32.xlu0 %v590, 124
        %v981 = vpop.permute.xlu0 %980
        %982 = vrot.lane.b32.xlu0 %v595, 124
        %v983 = vpop.permute.xlu0 %982
        %984 = vrot.lane.b32.xlu0 %v600, 124
        %v985 = vpop.permute.xlu0 %984
        %v986 = vsel %vm719, %v971, 0
        %v988 = vsel %vm719, %v973, 0
        %v990 = vsel %vm719, %v975, 0
        %v992 = vsel %vm719, %v977, 0
        %v994 = vsel %vm719, %v979, 0
        %v996 = vsel %vm719, %v981, 0
        %v998 = vsel %vm719, %v983, 0
        %v1000 = vsel %vm719, %v985, 0
        %1002 = vmatprep.subr.mxu0 0.0
        %1003 = vmatpush1.xpose.msra.mxu0 %v994
        %1004 = vmatprep.subr.mxu0 0.0
        %1005 = vmatpush1.xpose.msra.mxu0 %v996
        %1006 = vmatprep.subr.mxu0 0.0
        %1007 = vmatpush1.xpose.msra.mxu0 %v998
        %1008 = vmatprep.subr.mxu0 0.0
        %1009 = vmatpush1.xpose.msra.mxu0 %v1000
        %1010 = vmatprep.subr.mxu0 0.0
        %1011 = vmatpush1.xpose.msra.mxu0 0.0
        %1012 = vmatprep.subr.mxu0 0.0
        %1013 = vmatpush1.xpose.msra.mxu0 0.0
        %1014 = vmatprep.subr.mxu0 0.0
        %1015 = vmatpush1.xpose.msra.mxu0 0.0
        %1016 = vmatprep.subr.mxu0 0.0
        %1017 = vmatpush1.xpose.msra.mxu0 0.0
        %1018 = vmatprep.subr.mxu0 0.0
        %1019 = vmatpush1.xpose.msra.mxu0 0.0
        %1020 = vmatprep.subr.mxu0 0.0
        %1021 = vmatpush1.xpose.msra.mxu0 0.0
        %1022 = vmatprep.subr.mxu0 0.0
        %1023 = vmatpush1.xpose.msra.mxu0 0.0
        %1024 = vmatprep.subr.mxu0 0.0
        %1025 = vmatpush1.xpose.msra.mxu0 0.0
        %1026 = vmatprep.subr.mxu0 0.0
        %1027 = vmatpush1.xpose.msra.mxu0 0.0
        %1028 = vmatprep.subr.mxu0 0.0
        %1029 = vmatpush1.xpose.msra.mxu0 0.0
        %1030 = vmatprep.subr.mxu0 0.0
        %1031 = vmatpush1.xpose.msra.mxu0 0.0
        %1032 = vmatprep.subr.mxu0 0.0
        %1033 = vmatpush1.xpose.msra.mxu0 0.0
        %1034 = vmatprep.subr.mxu0 0.0
        %1035 = vmatpush1.xpose.msra.mxu0 0.0
        %1036 = vmatprep.subr.mxu0 0.0
        %1037 = vmatpush1.xpose.msra.mxu0 0.0
        %1038 = vmatprep.subr.mxu0 0.0
        %1039 = vmatpush1.xpose.msra.mxu0 0.0
        %1040 = vmatprep.subr.mxu0 0.0
        %1041 = vmatpush1.xpose.msra.mxu0 0.0
        %1042 = vmatprep.subr.mxu0 0.0
        %1043 = vmatpush1.xpose.msra.mxu0 0.0
        %1044 = vmatprep.subr.mxu0 0.0
        %1045 = vmatpush1.xpose.msra.mxu0 0.0
        %1046 = vmatprep.subr.mxu0 0.0
        %1047 = vmatpush1.xpose.msra.mxu0 0.0
        %1048 = vmatprep.subr.mxu0 0.0
        %1049 = vmatpush1.xpose.msra.mxu0 0.0
        %1050 = vmatprep.subr.mxu0 0.0
        %1051 = vmatpush1.xpose.msra.mxu0 0.0
        %1052 = vmatprep.subr.mxu0 0.0
        %1053 = vmatpush1.xpose.msra.mxu0 0.0
        %1054 = vmatprep.subr.mxu0 0.0
        %1055 = vmatpush1.xpose.msra.mxu0 0.0
        %1056 = vmatprep.subr.mxu0 0.0
        %1057 = vmatpush1.xpose.msra.mxu0 0.0
        %1058 = vmatprep.subr.mxu0 0.0
        %1059 = vmatpush1.xpose.msra.mxu0 0.0
        %1060 = vmatprep.subr.mxu0 0.0
        %1061 = vmatpush1.xpose.msra.mxu0 0.0
        %1062 = vmatprep.subr.mxu0 0.0
        %1063 = vmatpush1.xpose.msra.mxu0 0.0
        %1064 = vmatprep.subr.mxu0 0.0
        %1065 = vmatpush1.xpose.msra.mxu0 0.0
        %1066 = vmatprep.mubr.f32.mxu0 0.0
        %1067 = vmatmul.mubr.f32.gmra.mrb[0].mxu0 %v986
        %v1068 = vpop.f32.mrb[0].mxu0
        %v1069 = vadd.f32 %v715, %v1068
        %v1070 = vpop.f32.mrb[0].mxu0
        %1071 = vmatprep.mubr.f32.mxu0 0.0
        %1072 = vmatmul.mubr.f32.gmra.mrb[0].mxu0 %v988
        %v1073 = vpop.f32.mrb[0].mxu0
        %v1074 = vadd.f32 %v716, %v1073
        %v1075 = vpop.f32.mrb[0].mxu0
        %1076 = vmatprep.mubr.f32.mxu0 0.0
        %1077 = vmatmul.mubr.f32.gmra.mrb[0].mxu0 %v990
        %v1078 = vpop.f32.mrb[0].mxu0
        %v1079 = vadd.f32 %v717, %v1078
        %v1080 = vpop.f32.mrb[0].mxu0
        %1081 = vmatprep.mubr.f32.mxu0 0.0
        %1082 = vmatmul.mubr.f32.gmra.mrb[0].mxu0 %v992
        %v1083 = vpop.f32.mrb[0].mxu0
        %v1084 = vadd.f32 %v718, %v1083
        %v1085 = vpop.f32.mrb[0].mxu0
        %1086 = vdwg.mxu0
        %v1087 = vsel %vm505, %v1069, -inf
        %1088 = vmax.xlane.f32.xlu0 %v1087
        %v1089 = vpop.xlane.xlu0 %1088
        %v1090 = vsel %vm505, %v1074, -inf
        %1091 = vmax.xlane.f32.xlu0 %v1090
        %v1092 = vpop.xlane.xlu0 %1091
        %v1093 = vsel %vm505, %v1079, -inf
        %1094 = vmax.xlane.f32.xlu0 %v1093
        %v1095 = vpop.xlane.xlu0 %1094
        %v1096 = vsel %vm505, %v1084, -inf
        %1097 = vmax.xlane.f32.xlu0 %v1096
        %v1098 = vpop.xlane.xlu0 %1097
        %v1099 = vsub.f32 %v1069, %v1089
        %v1100 = vsub.f32 %v1074, %v1092
        %v1101 = vsub.f32 %v1079, %v1095
        %v1102 = vsub.f32 %v1084, %v1098
        %v1103 = vmul.f32 %v1099, 1.442695
        %v1104 = vpow.pop %v1103
        %v1105 = vmul.f32 %v1100, 1.442695
        %v1106 = vpow.pop %v1105
        %v1107 = vmul.f32 %v1101, 1.442695
        %v1108 = vpow.pop %v1107
        %v1109 = vmul.f32 %v1102, 1.442695
        %v1110 = vpow.pop %v1109
        %v1111 = vsel %vm505, %v1104, 0.0
        %1112 = vadd.xlane.f32.xlu0 %v1111
        %v1113 = vpop.xlane.xlu0 %1112
        %v1114 = vsel %vm505, %v1106, 0.0
        %1115 = vadd.xlane.f32.xlu0 %v1114
        %v1116 = vpop.xlane.xlu0 %1115
        %v1117 = vsel %vm505, %v1108, 0.0
        %1118 = vadd.xlane.f32.xlu0 %v1117
        %v1119 = vpop.xlane.xlu0 %1118
        %v1120 = vsel %vm505, %v1110, 0.0
        %1121 = vadd.xlane.f32.xlu0 %v1120
        %v1122 = vpop.xlane.xlu0 %1121
        %v1123 = vrcp.pop %v1113
        %v1124 = vrcp.pop %v1116
        %v1125 = vrcp.pop %v1119
        %v1126 = vrcp.pop %v1122
        %v1127 = vmul.f32 %v1104, %v1123
        %v1128 = vmul.f32 %v1106, %v1124
        %v1129 = vmul.f32 %v1108, %v1125
        %v1130 = vmul.f32 %v1110, %v1126
        %1135 = vrot.lane.b32.xlu0 %v693, 124
        %v1136 = vpop.permute.xlu0 %1135
        %1137 = vrot.lane.b32.xlu0 %v698, 124
        %v1138 = vpop.permute.xlu0 %1137
        %1139 = vrot.lane.b32.xlu0 %v703, 124
        %v1140 = vpop.permute.xlu0 %1139
        %1141 = vrot.lane.b32.xlu0 %v708, 124
        %v1142 = vpop.permute.xlu0 %1141
        %v1148 = vsel %vm505, %v1127, 0
        %v1151 = vsel %vm505, %v1128, 0
        %v1154 = vsel %vm505, %v1129, 0
        %v1157 = vsel %vm505, %v1130, 0
        %1159 = vmatprep.subr.mxu0 0.0
        %1160 = vmatpush1.msra.mxu0 %v1136
        %1161 = vmatprep.subr.mxu0 0.0
        %1162 = vmatpush1.msra.mxu0 %v1138
        %1163 = vmatprep.subr.mxu0 0.0
        %1164 = vmatpush1.msra.mxu0 %v1140
        %1165 = vmatprep.subr.mxu0 0.0
        %1166 = vmatpush1.msra.mxu0 %v1142
        %1167 = vmatprep.subr.mxu0 0.0
        %1168 = vmatpush1.msra.mxu0 0.0
        %1169 = vmatprep.subr.mxu0 0.0
        %1170 = vmatpush1.msra.mxu0 0.0
        %1171 = vmatprep.subr.mxu0 0.0
        %1172 = vmatpush1.msra.mxu0 0.0
        %1173 = vmatprep.subr.mxu0 0.0
        %1174 = vmatpush1.msra.mxu0 0.0
        %1175 = vmatprep.subr.mxu0 0.0
        %1176 = vmatpush1.msra.mxu0 0.0
        %1177 = vmatprep.subr.mxu0 0.0
        %1178 = vmatpush1.msra.mxu0 0.0
        %1179 = vmatprep.subr.mxu0 0.0
        %1180 = vmatpush1.msra.mxu0 0.0
        %1181 = vmatprep.subr.mxu0 0.0
        %1182 = vmatpush1.msra.mxu0 0.0
        %1183 = vmatprep.subr.mxu0 0.0
        %1184 = vmatpush1.msra.mxu0 0.0
        %1185 = vmatprep.subr.mxu0 0.0
        %1186 = vmatpush1.msra.mxu0 0.0
        %1187 = vmatprep.subr.mxu0 0.0
        %1188 = vmatpush1.msra.mxu0 0.0
        %1189 = vmatprep.subr.mxu0 0.0
        %1190 = vmatpush1.msra.mxu0 0.0
        %1191 = vmatprep.subr.mxu0 0.0
        %1192 = vmatpush1.msra.mxu0 0.0
        %1193 = vmatprep.subr.mxu0 0.0
        %1194 = vmatpush1.msra.mxu0 0.0
        %1195 = vmatprep.subr.mxu0 0.0
        %1196 = vmatpush1.msra.mxu0 0.0
        %1197 = vmatprep.subr.mxu0 0.0
        %1198 = vmatpush1.msra.mxu0 0.0
        %1199 = vmatprep.subr.mxu0 0.0
        %1200 = vmatpush1.msra.mxu0 0.0
        %1201 = vmatprep.subr.mxu0 0.0
        %1202 = vmatpush1.msra.mxu0 0.0
        %1203 = vmatprep.subr.mxu0 0.0
        %1204 = vmatpush1.msra.mxu0 0.0
        %1205 = vmatprep.subr.mxu0 0.0
        %1206 = vmatpush1.msra.mxu0 0.0
        %1207 = vmatprep.subr.mxu0 0.0
        %1208 = vmatpush1.msra.mxu0 0.0
        %1209 = vmatprep.subr.mxu0 0.0
        %1210 = vmatpush1.msra.mxu0 0.0
        %1211 = vmatprep.subr.mxu0 0.0
        %1212 = vmatpush1.msra.mxu0 0.0
        %1213 = vmatprep.subr.mxu0 0.0
        %1214 = vmatpush1.msra.mxu0 0.0
        %1215 = vmatprep.subr.mxu0 0.0
        %1216 = vmatpush1.msra.mxu0 0.0
        %1217 = vmatprep.subr.mxu0 0.0
        %1218 = vmatpush1.msra.mxu0 0.0
        %1219 = vmatprep.subr.mxu0 0.0
        %1220 = vmatpush1.msra.mxu0 0.0
        %1221 = vmatprep.subr.mxu0 0.0
        %1222 = vmatpush1.msra.mxu0 0.0
        %1223 = vmatprep.mubr.f32.mxu0 0.0
        %1224 = vmatmul.mubr.f32.gmra.mrb[0].mxu0 %v1148
        %v1225 = vpop.f32.mrb[0].mxu0
        %v1226 = vadd.f32 0.0, %v1225
        %v1227 = vpop.f32.mrb[0].mxu0
        %1228 = vmatprep.mubr.f32.mxu0 0.0
        %1229 = vmatmul.mubr.f32.gmra.mrb[0].mxu0 %v1151
        %v1230 = vpop.f32.mrb[0].mxu0
        %v1231 = vadd.f32 0.0, %v1230
        %v1232 = vpop.f32.mrb[0].mxu0
        %1233 = vmatprep.mubr.f32.mxu0 0.0
        %1234 = vmatmul.mubr.f32.gmra.mrb[0].mxu0 %v1154
        %v1235 = vpop.f32.mrb[0].mxu0
        %v1236 = vadd.f32 0.0, %v1235
        %v1237 = vpop.f32.mrb[0].mxu0
        %1238 = vmatprep.mubr.f32.mxu0 0.0
        %1239 = vmatmul.mubr.f32.gmra.mrb[0].mxu0 %v1157
        %v1240 = vpop.f32.mrb[0].mxu0
        %v1241 = vadd.f32 0.0, %v1240
        %v1242 = vpop.f32.mrb[0].mxu0
        %1243 = vdwg.mxu0
        %1244 = vrot.lane.b32.xlu0 %v711, 120
        %v1245 = vpop.permute.xlu0 %1244
        %1246 = vrot.lane.b32.xlu0 %v712, 120
        %v1247 = vpop.permute.xlu0 %1246
        %1248 = vrot.lane.b32.xlu0 %v713, 120
        %v1249 = vpop.permute.xlu0 %1248
        %1250 = vrot.lane.b32.xlu0 %v714, 120
        %v1251 = vpop.permute.xlu0 %1250
        %1252 = vrot.lane.b32.xlu0 %v585, 120
        %v1253 = vpop.permute.xlu0 %1252
        %1254 = vrot.lane.b32.xlu0 %v590, 120
        %v1255 = vpop.permute.xlu0 %1254
        %1256 = vrot.lane.b32.xlu0 %v595, 120
        %v1257 = vpop.permute.xlu0 %1256
        %1258 = vrot.lane.b32.xlu0 %v600, 120
        %v1259 = vpop.permute.xlu0 %1258
        %v1260 = vsel %vm719, %v1245, 0
        %v1262 = vsel %vm719, %v1247, 0
        %v1264 = vsel %vm719, %v1249, 0
        %v1266 = vsel %vm719, %v1251, 0
        %v1268 = vsel %vm719, %v1253, 0
        %v1270 = vsel %vm719, %v1255, 0
        %v1272 = vsel %vm719, %v1257, 0
        %v1274 = vsel %vm719, %v1259, 0
        %1276 = vmatprep.subr.mxu0 0.0
        %1277 = vmatpush1.xpose.msra.mxu0 %v1268
        %1278 = vmatprep.subr.mxu0 0.0
        %1279 = vmatpush1.xpose.msra.mxu0 %v1270
        %1280 = vmatprep.subr.mxu0 0.0
        %1281 = vmatpush1.xpose.msra.mxu0 %v1272
        %1282 = vmatprep.subr.mxu0 0.0
        %1283 = vmatpush1.xpose.msra.mxu0 %v1274
        %1284 = vmatprep.subr.mxu0 0.0
        %1285 = vmatpush1.xpose.msra.mxu0 0.0
        %1286 = vmatprep.subr.mxu0 0.0
        %1287 = vmatpush1.xpose.msra.mxu0 0.0
        %1288 = vmatprep.subr.mxu0 0.0
        %1289 = vmatpush1.xpose.msra.mxu0 0.0
        %1290 = vmatprep.subr.mxu0 0.0
        %1291 = vmatpush1.xpose.msra.mxu0 0.0
        %1292 = vmatprep.subr.mxu0 0.0
        %1293 = vmatpush1.xpose.msra.mxu0 0.0
        %1294 = vmatprep.subr.mxu0 0.0
        %1295 = vmatpush1.xpose.msra.mxu0 0.0
        %1296 = vmatprep.subr.mxu0 0.0
        %1297 = vmatpush1.xpose.msra.mxu0 0.0
        %1298 = vmatprep.subr.mxu0 0.0
        %1299 = vmatpush1.xpose.msra.mxu0 0.0
        %1300 = vmatprep.subr.mxu0 0.0
        %1301 = vmatpush1.xpose.msra.mxu0 0.0
        %1302 = vmatprep.subr.mxu0 0.0
        %1303 = vmatpush1.xpose.msra.mxu0 0.0
        %1304 = vmatprep.subr.mxu0 0.0
        %1305 = vmatpush1.xpose.msra.mxu0 0.0
        %1306 = vmatprep.subr.mxu0 0.0
        %1307 = vmatpush1.xpose.msra.mxu0 0.0
        %1308 = vmatprep.subr.mxu0 0.0
        %1309 = vmatpush1.xpose.msra.mxu0 0.0
        %1310 = vmatprep.subr.mxu0 0.0
        %1311 = vmatpush1.xpose.msra.mxu0 0.0
        %1312 = vmatprep.subr.mxu0 0.0
        %1313 = vmatpush1.xpose.msra.mxu0 0.0
        %1314 = vmatprep.subr.mxu0 0.0
        %1315 = vmatpush1.xpose.msra.mxu0 0.0
        %1316 = vmatprep.subr.mxu0 0.0
        %1317 = vmatpush1.xpose.msra.mxu0 0.0
        %1318 = vmatprep.subr.mxu0 0.0
        %1319 = vmatpush1.xpose.msra.mxu0 0.0
        %1320 = vmatprep.subr.mxu0 0.0
        %1321 = vmatpush1.xpose.msra.mxu0 0.0
        %1322 = vmatprep.subr.mxu0 0.0
        %1323 = vmatpush1.xpose.msra.mxu0 0.0
        %1324 = vmatprep.subr.mxu0 0.0
        %1325 = vmatpush1.xpose.msra.mxu0 0.0
        %1326 = vmatprep.subr.mxu0 0.0
        %1327 = vmatpush1.xpose.msra.mxu0 0.0
        %1328 = vmatprep.subr.mxu0 0.0
        %1329 = vmatpush1.xpose.msra.mxu0 0.0
        %1330 = vmatprep.subr.mxu0 0.0
        %1331 = vmatpush1.xpose.msra.mxu0 0.0
        %1332 = vmatprep.subr.mxu0 0.0
        %1333 = vmatpush1.xpose.msra.mxu0 0.0
        %1334 = vmatprep.subr.mxu0 0.0
        %1335 = vmatpush1.xpose.msra.mxu0 0.0
        %1336 = vmatprep.subr.mxu0 0.0
        %1337 = vmatpush1.xpose.msra.mxu0 0.0
        %1338 = vmatprep.subr.mxu0 0.0
        %1339 = vmatpush1.xpose.msra.mxu0 0.0
        %1340 = vmatprep.mubr.f32.mxu0 0.0
        %1341 = vmatmul.mubr.f32.gmra.mrb[0].mxu0 %v1260
        %v1342 = vpop.f32.mrb[0].mxu0
        %v1343 = vadd.f32 %v715, %v1342
        %v1344 = vpop.f32.mrb[0].mxu0
        %1345 = vmatprep.mubr.f32.mxu0 0.0
        %1346 = vmatmul.mubr.f32.gmra.mrb[0].mxu0 %v1262
        %v1347 = vpop.f32.mrb[0].mxu0
        %v1348 = vadd.f32 %v716, %v1347
        %v1349 = vpop.f32.mrb[0].mxu0
        %1350 = vmatprep.mubr.f32.mxu0 0.0
        %1351 = vmatmul.mubr.f32.gmra.mrb[0].mxu0 %v1264
        %v1352 = vpop.f32.mrb[0].mxu0
        %v1353 = vadd.f32 %v717, %v1352
        %v1354 = vpop.f32.mrb[0].mxu0
        %1355 = vmatprep.mubr.f32.mxu0 0.0
        %1356 = vmatmul.mubr.f32.gmra.mrb[0].mxu0 %v1266
        %v1357 = vpop.f32.mrb[0].mxu0
        %v1358 = vadd.f32 %v718, %v1357
        %v1359 = vpop.f32.mrb[0].mxu0
        %1360 = vdwg.mxu0
        %v1361 = vsel %vm505, %v1343, -inf
        %1362 = vmax.xlane.f32.xlu0 %v1361
        %v1363 = vpop.xlane.xlu0 %1362
        %v1364 = vsel %vm505, %v1348, -inf
        %1365 = vmax.xlane.f32.xlu0 %v1364
        %v1366 = vpop.xlane.xlu0 %1365
        %v1367 = vsel %vm505, %v1353, -inf
        %1368 = vmax.xlane.f32.xlu0 %v1367
        %v1369 = vpop.xlane.xlu0 %1368
        %v1370 = vsel %vm505, %v1358, -inf
        %1371 = vmax.xlane.f32.xlu0 %v1370
        %v1372 = vpop.xlane.xlu0 %1371
        %v1373 = vsub.f32 %v1343, %v1363
        %v1374 = vsub.f32 %v1348, %v1366
        %v1375 = vsub.f32 %v1353, %v1369
        %v1376 = vsub.f32 %v1358, %v1372
        %v1377 = vmul.f32 %v1373, 1.442695
        %v1378 = vpow.pop %v1377
        %v1379 = vmul.f32 %v1374, 1.442695
        %v1380 = vpow.pop %v1379
        %v1381 = vmul.f32 %v1375, 1.442695
        %v1382 = vpow.pop %v1381
        %v1383 = vmul.f32 %v1376, 1.442695
        %v1384 = vpow.pop %v1383
        %v1385 = vsel %vm505, %v1378, 0.0
        %1386 = vadd.xlane.f32.xlu0 %v1385
        %v1387 = vpop.xlane.xlu0 %1386
        %v1388 = vsel %vm505, %v1380, 0.0
        %1389 = vadd.xlane.f32.xlu0 %v1388
        %v1390 = vpop.xlane.xlu0 %1389
        %v1391 = vsel %vm505, %v1382, 0.0
        %1392 = vadd.xlane.f32.xlu0 %v1391
        %v1393 = vpop.xlane.xlu0 %1392
        %v1394 = vsel %vm505, %v1384, 0.0
        %1395 = vadd.xlane.f32.xlu0 %v1394
        %v1396 = vpop.xlane.xlu0 %1395
        %v1397 = vrcp.pop %v1387
        %v1398 = vrcp.pop %v1390
        %v1399 = vrcp.pop %v1393
        %v1400 = vrcp.pop %v1396
        %v1401 = vmul.f32 %v1378, %v1397
        %v1402 = vmul.f32 %v1380, %v1398
        %v1403 = vmul.f32 %v1382, %v1399
        %v1404 = vmul.f32 %v1384, %v1400
        %1405 = vrot.lane.b32.xlu0 %v693, 120
        %v1406 = vpop.permute.xlu0 %1405
        %1407 = vrot.lane.b32.xlu0 %v698, 120
        %v1408 = vpop.permute.xlu0 %1407
        %1409 = vrot.lane.b32.xlu0 %v703, 120
        %v1410 = vpop.permute.xlu0 %1409
        %1411 = vrot.lane.b32.xlu0 %v708, 120
        %v1412 = vpop.permute.xlu0 %1411
        %v1418 = vsel %vm505, %v1401, 0
        %v1421 = vsel %vm505, %v1402, 0
        %v1424 = vsel %vm505, %v1403, 0
        %v1427 = vsel %vm505, %v1404, 0
        %1429 = vmatprep.subr.mxu0 0.0
        %1430 = vmatpush1.msra.mxu0 %v1406
        %1431 = vmatprep.subr.mxu0 0.0
        %1432 = vmatpush1.msra.mxu0 %v1408
        %1433 = vmatprep.subr.mxu0 0.0
        %1434 = vmatpush1.msra.mxu0 %v1410
        %1435 = vmatprep.subr.mxu0 0.0
        %1436 = vmatpush1.msra.mxu0 %v1412
        %1437 = vmatprep.subr.mxu0 0.0
        %1438 = vmatpush1.msra.mxu0 0.0
        %1439 = vmatprep.subr.mxu0 0.0
        %1440 = vmatpush1.msra.mxu0 0.0
        %1441 = vmatprep.subr.mxu0 0.0
        %1442 = vmatpush1.msra.mxu0 0.0
        %1443 = vmatprep.subr.mxu0 0.0
        %1444 = vmatpush1.msra.mxu0 0.0
        %1445 = vmatprep.subr.mxu0 0.0
        %1446 = vmatpush1.msra.mxu0 0.0
        %1447 = vmatprep.subr.mxu0 0.0
        %1448 = vmatpush1.msra.mxu0 0.0
        %1449 = vmatprep.subr.mxu0 0.0
        %1450 = vmatpush1.msra.mxu0 0.0
        %1451 = vmatprep.subr.mxu0 0.0
        %1452 = vmatpush1.msra.mxu0 0.0
        %1453 = vmatprep.subr.mxu0 0.0
        %1454 = vmatpush1.msra.mxu0 0.0
        %1455 = vmatprep.subr.mxu0 0.0
        %1456 = vmatpush1.msra.mxu0 0.0
        %1457 = vmatprep.subr.mxu0 0.0
        %1458 = vmatpush1.msra.mxu0 0.0
        %1459 = vmatprep.subr.mxu0 0.0
        %1460 = vmatpush1.msra.mxu0 0.0
        %1461 = vmatprep.subr.mxu0 0.0
        %1462 = vmatpush1.msra.mxu0 0.0
        %1463 = vmatprep.subr.mxu0 0.0
        %1464 = vmatpush1.msra.mxu0 0.0
        %1465 = vmatprep.subr.mxu0 0.0
        %1466 = vmatpush1.msra.mxu0 0.0
        %1467 = vmatprep.subr.mxu0 0.0
        %1468 = vmatpush1.msra.mxu0 0.0
        %1469 = vmatprep.subr.mxu0 0.0
        %1470 = vmatpush1.msra.mxu0 0.0
        %1471 = vmatprep.subr.mxu0 0.0
        %1472 = vmatpush1.msra.mxu0 0.0
        %1473 = vmatprep.subr.mxu0 0.0
        %1474 = vmatpush1.msra.mxu0 0.0
        %1475 = vmatprep.subr.mxu0 0.0
        %1476 = vmatpush1.msra.mxu0 0.0
        %1477 = vmatprep.subr.mxu0 0.0
        %1478 = vmatpush1.msra.mxu0 0.0
        %1479 = vmatprep.subr.mxu0 0.0
        %1480 = vmatpush1.msra.mxu0 0.0
        %1481 = vmatprep.subr.mxu0 0.0
        %1482 = vmatpush1.msra.mxu0 0.0
        %1483 = vmatprep.subr.mxu0 0.0
        %1484 = vmatpush1.msra.mxu0 0.0
        %1485 = vmatprep.subr.mxu0 0.0
        %1486 = vmatpush1.msra.mxu0 0.0
        %1487 = vmatprep.subr.mxu0 0.0
        %1488 = vmatpush1.msra.mxu0 0.0
        %1489 = vmatprep.subr.mxu0 0.0
        %1490 = vmatpush1.msra.mxu0 0.0
        %1491 = vmatprep.subr.mxu0 0.0
        %1492 = vmatpush1.msra.mxu0 0.0
        %1493 = vmatprep.mubr.f32.mxu0 0.0
        %1494 = vmatmul.mubr.f32.gmra.mrb[0].mxu0 %v1418
        %v1495 = vpop.f32.mrb[0].mxu0
        %v1496 = vadd.f32 0.0, %v1495
        %v1497 = vpop.f32.mrb[0].mxu0
        %1498 = vmatprep.mubr.f32.mxu0 0.0
        %1499 = vmatmul.mubr.f32.gmra.mrb[0].mxu0 %v1421
        %v1500 = vpop.f32.mrb[0].mxu0
        %v1501 = vadd.f32 0.0, %v1500
        %v1502 = vpop.f32.mrb[0].mxu0
        %1503 = vmatprep.mubr.f32.mxu0 0.0
        %1504 = vmatmul.mubr.f32.gmra.mrb[0].mxu0 %v1424
        %v1505 = vpop.f32.mrb[0].mxu0
        %v1506 = vadd.f32 0.0, %v1505
        %v1507 = vpop.f32.mrb[0].mxu0
        %1508 = vmatprep.mubr.f32.mxu0 0.0
        %1509 = vmatmul.mubr.f32.gmra.mrb[0].mxu0 %v1427
        %v1510 = vpop.f32.mrb[0].mxu0
        %v1511 = vadd.f32 0.0, %v1510
        %v1512 = vpop.f32.mrb[0].mxu0
        %1513 = vdwg.mxu0
        %1514 = vrot.lane.b32.xlu0 %v711, 116
        %v1515 = vpop.permute.xlu0 %1514
        %1516 = vrot.lane.b32.xlu0 %v712, 116
        %v1517 = vpop.permute.xlu0 %1516
        %1518 = vrot.lane.b32.xlu0 %v713, 116
        %v1519 = vpop.permute.xlu0 %1518
        %1520 = vrot.lane.b32.xlu0 %v714, 116
        %v1521 = vpop.permute.xlu0 %1520
        %1522 = vrot.lane.b32.xlu0 %v585, 116
        %v1523 = vpop.permute.xlu0 %1522
        %1524 = vrot.lane.b32.xlu0 %v590, 116
        %v1525 = vpop.permute.xlu0 %1524
        %1526 = vrot.lane.b32.xlu0 %v595, 116
        %v1527 = vpop.permute.xlu0 %1526
        %1528 = vrot.lane.b32.xlu0 %v600, 116
        %v1529 = vpop.permute.xlu0 %1528
        %v1530 = vsel %vm719, %v1515, 0
        %v1532 = vsel %vm719, %v1517, 0
        %v1534 = vsel %vm719, %v1519, 0
        %v1536 = vsel %vm719, %v1521, 0
        %v1538 = vsel %vm719, %v1523, 0
        %v1540 = vsel %vm719, %v1525, 0
        %v1542 = vsel %vm719, %v1527, 0
        %v1544 = vsel %vm719, %v1529, 0
        %1546 = vmatprep.subr.mxu0 0.0
        %1547 = vmatpush1.xpose.msra.mxu0 %v1538
        %1548 = vmatprep.subr.mxu0 0.0
        %1549 = vmatpush1.xpose.msra.mxu0 %v1540
        %1550 = vmatprep.subr.mxu0 0.0
        %1551 = vmatpush1.xpose.msra.mxu0 %v1542
        %1552 = vmatprep.subr.mxu0 0.0
        %1553 = vmatpush1.xpose.msra.mxu0 %v1544
        %1554 = vmatprep.subr.mxu0 0.0
        %1555 = vmatpush1.xpose.msra.mxu0 0.0
        %1556 = vmatprep.subr.mxu0 0.0
        %1557 = vmatpush1.xpose.msra.mxu0 0.0
        %1558 = vmatprep.subr.mxu0 0.0
        %1559 = vmatpush1.xpose.msra.mxu0 0.0
        %1560 = vmatprep.subr.mxu0 0.0
        %1561 = vmatpush1.xpose.msra.mxu0 0.0
        %1562 = vmatprep.subr.mxu0 0.0
        %1563 = vmatpush1.xpose.msra.mxu0 0.0
        %1564 = vmatprep.subr.mxu0 0.0
        %1565 = vmatpush1.xpose.msra.mxu0 0.0
        %1566 = vmatprep.subr.mxu0 0.0
        %1567 = vmatpush1.xpose.msra.mxu0 0.0
        %1568 = vmatprep.subr.mxu0 0.0
        %1569 = vmatpush1.xpose.msra.mxu0 0.0
        %1570 = vmatprep.subr.mxu0 0.0
        %1571 = vmatpush1.xpose.msra.mxu0 0.0
        %1572 = vmatprep.subr.mxu0 0.0
        %1573 = vmatpush1.xpose.msra.mxu0 0.0
        %1574 = vmatprep.subr.mxu0 0.0
        %1575 = vmatpush1.xpose.msra.mxu0 0.0
        %1576 = vmatprep.subr.mxu0 0.0
        %1577 = vmatpush1.xpose.msra.mxu0 0.0
        %1578 = vmatprep.subr.mxu0 0.0
        %1579 = vmatpush1.xpose.msra.mxu0 0.0
        %1580 = vmatprep.subr.mxu0 0.0
        %1581 = vmatpush1.xpose.msra.mxu0 0.0
        %1582 = vmatprep.subr.mxu0 0.0
        %1583 = vmatpush1.xpose.msra.mxu0 0.0
        %1584 = vmatprep.subr.mxu0 0.0
        %1585 = vmatpush1.xpose.msra.mxu0 0.0
        %1586 = vmatprep.subr.mxu0 0.0
        %1587 = vmatpush1.xpose.msra.mxu0 0.0
        %1588 = vmatprep.subr.mxu0 0.0
        %1589 = vmatpush1.xpose.msra.mxu0 0.0
        %1590 = vmatprep.subr.mxu0 0.0
        %1591 = vmatpush1.xpose.msra.mxu0 0.0
        %1592 = vmatprep.subr.mxu0 0.0
        %1593 = vmatpush1.xpose.msra.mxu0 0.0
        %1594 = vmatprep.subr.mxu0 0.0
        %1595 = vmatpush1.xpose.msra.mxu0 0.0
        %1596 = vmatprep.subr.mxu0 0.0
        %1597 = vmatpush1.xpose.msra.mxu0 0.0
        %1598 = vmatprep.subr.mxu0 0.0
        %1599 = vmatpush1.xpose.msra.mxu0 0.0
        %1600 = vmatprep.subr.mxu0 0.0
        %1601 = vmatpush1.xpose.msra.mxu0 0.0
        %1602 = vmatprep.subr.mxu0 0.0
        %1603 = vmatpush1.xpose.msra.mxu0 0.0
        %1604 = vmatprep.subr.mxu0 0.0
        %1605 = vmatpush1.xpose.msra.mxu0 0.0
        %1606 = vmatprep.subr.mxu0 0.0
        %1607 = vmatpush1.xpose.msra.mxu0 0.0
        %1608 = vmatprep.subr.mxu0 0.0
        %1609 = vmatpush1.xpose.msra.mxu0 0.0
        %1610 = vmatprep.mubr.f32.mxu0 0.0
        %1611 = vmatmul.mubr.f32.gmra.mrb[0].mxu0 %v1530
        %v1612 = vpop.f32.mrb[0].mxu0
        %v1613 = vadd.f32 %v715, %v1612
        %v1614 = vpop.f32.mrb[0].mxu0
        %1615 = vmatprep.mubr.f32.mxu0 0.0
        %1616 = vmatmul.mubr.f32.gmra.mrb[0].mxu0 %v1532
        %v1617 = vpop.f32.mrb[0].mxu0
        %v1618 = vadd.f32 %v716, %v1617
        %v1619 = vpop.f32.mrb[0].mxu0
        %1620 = vmatprep.mubr.f32.mxu0 0.0
        %1621 = vmatmul.mubr.f32.gmra.mrb[0].mxu0 %v1534
        %v1622 = vpop.f32.mrb[0].mxu0
        %v1623 = vadd.f32 %v717, %v1622
        %v1624 = vpop.f32.mrb[0].mxu0
        %1625 = vmatprep.mubr.f32.mxu0 0.0
        %1626 = vmatmul.mubr.f32.gmra.mrb[0].mxu0 %v1536
        %v1627 = vpop.f32.mrb[0].mxu0
        %v1628 = vadd.f32 %v718, %v1627
        %v1629 = vpop.f32.mrb[0].mxu0
        %1630 = vdwg.mxu0
        %v1631 = vsel %vm505, %v1613, -inf
        %1632 = vmax.xlane.f32.xlu0 %v1631
        %v1633 = vpop.xlane.xlu0 %1632
        %v1634 = vsel %vm505, %v1618, -inf
        %1635 = vmax.xlane.f32.xlu0 %v1634
        %v1636 = vpop.xlane.xlu0 %1635
        %v1637 = vsel %vm505, %v1623, -inf
        %1638 = vmax.xlane.f32.xlu0 %v1637
        %v1639 = vpop.xlane.xlu0 %1638
        %v1640 = vsel %vm505, %v1628, -inf
        %1641 = vmax.xlane.f32.xlu0 %v1640
        %v1642 = vpop.xlane.xlu0 %1641
        %v1643 = vsub.f32 %v1613, %v1633
        %v1644 = vsub.f32 %v1618, %v1636
        %v1645 = vsub.f32 %v1623, %v1639
        %v1646 = vsub.f32 %v1628, %v1642
        %v1647 = vmul.f32 %v1643, 1.442695
        %v1648 = vpow.pop %v1647
        %v1649 = vmul.f32 %v1644, 1.442695
        %v1650 = vpow.pop %v1649
        %v1651 = vmul.f32 %v1645, 1.442695
        %v1652 = vpow.pop %v1651
        %v1653 = vmul.f32 %v1646, 1.442695
        %v1654 = vpow.pop %v1653
        %v1655 = vsel %vm505, %v1648, 0.0
        %1656 = vadd.xlane.f32.xlu0 %v1655
        %v1657 = vpop.xlane.xlu0 %1656
        %v1658 = vsel %vm505, %v1650, 0.0
        %1659 = vadd.xlane.f32.xlu0 %v1658
        %v1660 = vpop.xlane.xlu0 %1659
        %v1661 = vsel %vm505, %v1652, 0.0
        %1662 = vadd.xlane.f32.xlu0 %v1661
        %v1663 = vpop.xlane.xlu0 %1662
        %v1664 = vsel %vm505, %v1654, 0.0
        %1665 = vadd.xlane.f32.xlu0 %v1664
        %v1666 = vpop.xlane.xlu0 %1665
        %v1667 = vrcp.pop %v1657
        %v1668 = vrcp.pop %v1660
        %v1669 = vrcp.pop %v1663
        %v1670 = vrcp.pop %v1666
        %v1671 = vmul.f32 %v1648, %v1667
        %v1672 = vmul.f32 %v1650, %v1668
        %v1673 = vmul.f32 %v1652, %v1669
        %v1674 = vmul.f32 %v1654, %v1670
        %1675 = vrot.lane.b32.xlu0 %v693, 116
        %v1676 = vpop.permute.xlu0 %1675
        %1677 = vrot.lane.b32.xlu0 %v698, 116
        %v1678 = vpop.permute.xlu0 %1677
        %1679 = vrot.lane.b32.xlu0 %v703, 116
        %v1680 = vpop.permute.xlu0 %1679
        %1681 = vrot.lane.b32.xlu0 %v708, 116
        %v1682 = vpop.permute.xlu0 %1681
        %v1688 = vsel %vm505, %v1671, 0
        %v1691 = vsel %vm505, %v1672, 0
        %v1694 = vsel %vm505, %v1673, 0
        %v1697 = vsel %vm505, %v1674, 0
        %1699 = vmatprep.subr.mxu0 0.0
        %1700 = vmatpush1.msra.mxu0 %v1676
        %1701 = vmatprep.subr.mxu0 0.0
        %1702 = vmatpush1.msra.mxu0 %v1678
        %1703 = vmatprep.subr.mxu0 0.0
        %1704 = vmatpush1.msra.mxu0 %v1680
        %1705 = vmatprep.subr.mxu0 0.0
        %1706 = vmatpush1.msra.mxu0 %v1682
        %1707 = vmatprep.subr.mxu0 0.0
        %1708 = vmatpush1.msra.mxu0 0.0
        %1709 = vmatprep.subr.mxu0 0.0
        %1710 = vmatpush1.msra.mxu0 0.0
        %1711 = vmatprep.subr.mxu0 0.0
        %1712 = vmatpush1.msra.mxu0 0.0
        %1713 = vmatprep.subr.mxu0 0.0
        %1714 = vmatpush1.msra.mxu0 0.0
        %1715 = vmatprep.subr.mxu0 0.0
        %1716 = vmatpush1.msra.mxu0 0.0
        %1717 = vmatprep.subr.mxu0 0.0
        %1718 = vmatpush1.msra.mxu0 0.0
        %1719 = vmatprep.subr.mxu0 0.0
        %1720 = vmatpush1.msra.mxu0 0.0
        %1721 = vmatprep.subr.mxu0 0.0
        %1722 = vmatpush1.msra.mxu0 0.0
        %1723 = vmatprep.subr.mxu0 0.0
        %1724 = vmatpush1.msra.mxu0 0.0
        %1725 = vmatprep.subr.mxu0 0.0
        %1726 = vmatpush1.msra.mxu0 0.0
        %1727 = vmatprep.subr.mxu0 0.0
        %1728 = vmatpush1.msra.mxu0 0.0
        %1729 = vmatprep.subr.mxu0 0.0
        %1730 = vmatpush1.msra.mxu0 0.0
        %1731 = vmatprep.subr.mxu0 0.0
        %1732 = vmatpush1.msra.mxu0 0.0
        %1733 = vmatprep.subr.mxu0 0.0
        %1734 = vmatpush1.msra.mxu0 0.0
        %1735 = vmatprep.subr.mxu0 0.0
        %1736 = vmatpush1.msra.mxu0 0.0
        %1737 = vmatprep.subr.mxu0 0.0
        %1738 = vmatpush1.msra.mxu0 0.0
        %1739 = vmatprep.subr.mxu0 0.0
        %1740 = vmatpush1.msra.mxu0 0.0
        %1741 = vmatprep.subr.mxu0 0.0
        %1742 = vmatpush1.msra.mxu0 0.0
        %1743 = vmatprep.subr.mxu0 0.0
        %1744 = vmatpush1.msra.mxu0 0.0
        %1745 = vmatprep.subr.mxu0 0.0
        %1746 = vmatpush1.msra.mxu0 0.0
        %1747 = vmatprep.subr.mxu0 0.0
        %1748 = vmatpush1.msra.mxu0 0.0
        %1749 = vmatprep.subr.mxu0 0.0
        %1750 = vmatpush1.msra.mxu0 0.0
        %1751 = vmatprep.subr.mxu0 0.0
        %1752 = vmatpush1.msra.mxu0 0.0
        %1753 = vmatprep.subr.mxu0 0.0
        %1754 = vmatpush1.msra.mxu0 0.0
        %1755 = vmatprep.subr.mxu0 0.0
        %1756 = vmatpush1.msra.mxu0 0.0
        %1757 = vmatprep.subr.mxu0 0.0
        %1758 = vmatpush1.msra.mxu0 0.0
        %1759 = vmatprep.subr.mxu0 0.0
        %1760 = vmatpush1.msra.mxu0 0.0
        %1761 = vmatprep.subr.mxu0 0.0
        %1762 = vmatpush1.msra.mxu0 0.0
        %1763 = vmatprep.mubr.f32.mxu0 0.0
        %1764 = vmatmul.mubr.f32.gmra.mrb[0].mxu0 %v1688
        %v1765 = vpop.f32.mrb[0].mxu0
        %v1766 = vadd.f32 0.0, %v1765
        %v1767 = vpop.f32.mrb[0].mxu0
        %1768 = vmatprep.mubr.f32.mxu0 0.0
        %1769 = vmatmul.mubr.f32.gmra.mrb[0].mxu0 %v1691
        %v1770 = vpop.f32.mrb[0].mxu0
        %v1771 = vadd.f32 0.0, %v1770
        %v1772 = vpop.f32.mrb[0].mxu0
        %1773 = vmatprep.mubr.f32.mxu0 0.0
        %1774 = vmatmul.mubr.f32.gmra.mrb[0].mxu0 %v1694
        %v1775 = vpop.f32.mrb[0].mxu0
        %v1776 = vadd.f32 0.0, %v1775
        %v1777 = vpop.f32.mrb[0].mxu0
        %1778 = vmatprep.mubr.f32.mxu0 0.0
        %1779 = vmatmul.mubr.f32.gmra.mrb[0].mxu0 %v1697
        %v1780 = vpop.f32.mrb[0].mxu0
        %v1781 = vadd.f32 0.0, %v1780
        %v1782 = vpop.f32.mrb[0].mxu0
        %1783 = vdwg.mxu0
        %1784 = vrot.lane.b32.xlu0 %v711, 112
        %v1785 = vpop.permute.xlu0 %1784
        %1786 = vrot.lane.b32.xlu0 %v712, 112
        %v1787 = vpop.permute.xlu0 %1786
        %1788 = vrot.lane.b32.xlu0 %v713, 112
        %v1789 = vpop.permute.xlu0 %1788
        %1790 = vrot.lane.b32.xlu0 %v714, 112
        %v1791 = vpop.permute.xlu0 %1790
        %1792 = vrot.lane.b32.xlu0 %v585, 112
        %v1793 = vpop.permute.xlu0 %1792
        %1794 = vrot.lane.b32.xlu0 %v590, 112
        %v1795 = vpop.permute.xlu0 %1794
        %1796 = vrot.lane.b32.xlu0 %v595, 112
        %v1797 = vpop.permute.xlu0 %1796
        %1798 = vrot.lane.b32.xlu0 %v600, 112
        %v1799 = vpop.permute.xlu0 %1798
        %v1800 = vsel %vm719, %v1785, 0
        %v1802 = vsel %vm719, %v1787, 0
        %v1804 = vsel %vm719, %v1789, 0
        %v1806 = vsel %vm719, %v1791, 0
        %v1808 = vsel %vm719, %v1793, 0
        %v1810 = vsel %vm719, %v1795, 0
        %v1812 = vsel %vm719, %v1797, 0
        %v1814 = vsel %vm719, %v1799, 0
        %1816 = vmatprep.subr.mxu0 0.0
        %1817 = vmatpush1.xpose.msra.mxu0 %v1808
        %1818 = vmatprep.subr.mxu0 0.0
        %1819 = vmatpush1.xpose.msra.mxu0 %v1810
        %1820 = vmatprep.subr.mxu0 0.0
        %1821 = vmatpush1.xpose.msra.mxu0 %v1812
        %1822 = vmatprep.subr.mxu0 0.0
        %1823 = vmatpush1.xpose.msra.mxu0 %v1814
        %1824 = vmatprep.subr.mxu0 0.0
        %1825 = vmatpush1.xpose.msra.mxu0 0.0
        %1826 = vmatprep.subr.mxu0 0.0
        %1827 = vmatpush1.xpose.msra.mxu0 0.0
        %1828 = vmatprep.subr.mxu0 0.0
        %1829 = vmatpush1.xpose.msra.mxu0 0.0
        %1830 = vmatprep.subr.mxu0 0.0
        %1831 = vmatpush1.xpose.msra.mxu0 0.0
        %1832 = vmatprep.subr.mxu0 0.0
        %1833 = vmatpush1.xpose.msra.mxu0 0.0
        %1834 = vmatprep.subr.mxu0 0.0
        %1835 = vmatpush1.xpose.msra.mxu0 0.0
        %1836 = vmatprep.subr.mxu0 0.0
        %1837 = vmatpush1.xpose.msra.mxu0 0.0
        %1838 = vmatprep.subr.mxu0 0.0
        %1839 = vmatpush1.xpose.msra.mxu0 0.0
        %1840 = vmatprep.subr.mxu0 0.0
        %1841 = vmatpush1.xpose.msra.mxu0 0.0
        %1842 = vmatprep.subr.mxu0 0.0
        %1843 = vmatpush1.xpose.msra.mxu0 0.0
        %1844 = vmatprep.subr.mxu0 0.0
        %1845 = vmatpush1.xpose.msra.mxu0 0.0
        %1846 = vmatprep.subr.mxu0 0.0
        %1847 = vmatpush1.xpose.msra.mxu0 0.0
        %1848 = vmatprep.subr.mxu0 0.0
        %1849 = vmatpush1.xpose.msra.mxu0 0.0
        %1850 = vmatprep.subr.mxu0 0.0
        %1851 = vmatpush1.xpose.msra.mxu0 0.0
        %1852 = vmatprep.subr.mxu0 0.0
        %1853 = vmatpush1.xpose.msra.mxu0 0.0
        %1854 = vmatprep.subr.mxu0 0.0
        %1855 = vmatpush1.xpose.msra.mxu0 0.0
        %1856 = vmatprep.subr.mxu0 0.0
        %1857 = vmatpush1.xpose.msra.mxu0 0.0
        %1858 = vmatprep.subr.mxu0 0.0
        %1859 = vmatpush1.xpose.msra.mxu0 0.0
        %1860 = vmatprep.subr.mxu0 0.0
        %1861 = vmatpush1.xpose.msra.mxu0 0.0
        %1862 = vmatprep.subr.mxu0 0.0
        %1863 = vmatpush1.xpose.msra.mxu0 0.0
        %1864 = vmatprep.subr.mxu0 0.0
        %1865 = vmatpush1.xpose.msra.mxu0 0.0
        %1866 = vmatprep.subr.mxu0 0.0
        %1867 = vmatpush1.xpose.msra.mxu0 0.0
        %1868 = vmatprep.subr.mxu0 0.0
        %1869 = vmatpush1.xpose.msra.mxu0 0.0
        %1870 = vmatprep.subr.mxu0 0.0
        %1871 = vmatpush1.xpose.msra.mxu0 0.0
        %1872 = vmatprep.subr.mxu0 0.0
        %1873 = vmatpush1.xpose.msra.mxu0 0.0
        %1874 = vmatprep.subr.mxu0 0.0
        %1875 = vmatpush1.xpose.msra.mxu0 0.0
        %1876 = vmatprep.subr.mxu0 0.0
        %1877 = vmatpush1.xpose.msra.mxu0 0.0
        %1878 = vmatprep.subr.mxu0 0.0
        %1879 = vmatpush1.xpose.msra.mxu0 0.0
        %1880 = vmatprep.mubr.f32.mxu0 0.0
        %1881 = vmatmul.mubr.f32.gmra.mrb[0].mxu0 %v1800
        %v1882 = vpop.f32.mrb[0].mxu0
        %v1883 = vadd.f32 %v715, %v1882
        %v1884 = vpop.f32.mrb[0].mxu0
        %1885 = vmatprep.mubr.f32.mxu0 0.0
        %1886 = vmatmul.mubr.f32.gmra.mrb[0].mxu0 %v1802
        %v1887 = vpop.f32.mrb[0].mxu0
        %v1888 = vadd.f32 %v716, %v1887
        %v1889 = vpop.f32.mrb[0].mxu0
        %1890 = vmatprep.mubr.f32.mxu0 0.0
        %1891 = vmatmul.mubr.f32.gmra.mrb[0].mxu0 %v1804
        %v1892 = vpop.f32.mrb[0].mxu0
        %v1893 = vadd.f32 %v717, %v1892
        %v1894 = vpop.f32.mrb[0].mxu0
        %1895 = vmatprep.mubr.f32.mxu0 0.0
        %1896 = vmatmul.mubr.f32.gmra.mrb[0].mxu0 %v1806
        %v1897 = vpop.f32.mrb[0].mxu0
        %v1898 = vadd.f32 %v718, %v1897
        %v1899 = vpop.f32.mrb[0].mxu0
        %1900 = vdwg.mxu0
        %v1901 = vsel %vm505, %v1883, -inf
        %1902 = vmax.xlane.f32.xlu0 %v1901
        %v1903 = vpop.xlane.xlu0 %1902
        %v1904 = vsel %vm505, %v1888, -inf
        %1905 = vmax.xlane.f32.xlu0 %v1904
        %v1906 = vpop.xlane.xlu0 %1905
        %v1907 = vsel %vm505, %v1893, -inf
        %1908 = vmax.xlane.f32.xlu0 %v1907
        %v1909 = vpop.xlane.xlu0 %1908
        %v1910 = vsel %vm505, %v1898, -inf
        %1911 = vmax.xlane.f32.xlu0 %v1910
        %v1912 = vpop.xlane.xlu0 %1911
        %v1913 = vsub.f32 %v1883, %v1903
        %v1914 = vsub.f32 %v1888, %v1906
        %v1915 = vsub.f32 %v1893, %v1909
        %v1916 = vsub.f32 %v1898, %v1912
        %v1917 = vmul.f32 %v1913, 1.442695
        %v1918 = vpow.pop %v1917
        %v1919 = vmul.f32 %v1914, 1.442695
        %v1920 = vpow.pop %v1919
        %v1921 = vmul.f32 %v1915, 1.442695
        %v1922 = vpow.pop %v1921
        %v1923 = vmul.f32 %v1916, 1.442695
        %v1924 = vpow.pop %v1923
        %v1925 = vsel %vm505, %v1918, 0.0
        %1926 = vadd.xlane.f32.xlu0 %v1925
        %v1927 = vpop.xlane.xlu0 %1926
        %v1928 = vsel %vm505, %v1920, 0.0
        %1929 = vadd.xlane.f32.xlu0 %v1928
        %v1930 = vpop.xlane.xlu0 %1929
        %v1931 = vsel %vm505, %v1922, 0.0
        %1932 = vadd.xlane.f32.xlu0 %v1931
        %v1933 = vpop.xlane.xlu0 %1932
        %v1934 = vsel %vm505, %v1924, 0.0
        %1935 = vadd.xlane.f32.xlu0 %v1934
        %v1936 = vpop.xlane.xlu0 %1935
        %v1937 = vrcp.pop %v1927
        %v1938 = vrcp.pop %v1930
        %v1939 = vrcp.pop %v1933
        %v1940 = vrcp.pop %v1936
        %v1941 = vmul.f32 %v1918, %v1937
        %v1942 = vmul.f32 %v1920, %v1938
        %v1943 = vmul.f32 %v1922, %v1939
        %v1944 = vmul.f32 %v1924, %v1940
        %1945 = vrot.lane.b32.xlu0 %v693, 112
        %v1946 = vpop.permute.xlu0 %1945
        %1947 = vrot.lane.b32.xlu0 %v698, 112
        %v1948 = vpop.permute.xlu0 %1947
        %1949 = vrot.lane.b32.xlu0 %v703, 112
        %v1950 = vpop.permute.xlu0 %1949
        %1951 = vrot.lane.b32.xlu0 %v708, 112
        %v1952 = vpop.permute.xlu0 %1951
        %v1958 = vsel %vm505, %v1941, 0
        %v1961 = vsel %vm505, %v1942, 0
        %v1964 = vsel %vm505, %v1943, 0
        %v1967 = vsel %vm505, %v1944, 0
        %1969 = vmatprep.subr.mxu0 0.0
        %1970 = vmatpush1.msra.mxu0 %v1946
        %1971 = vmatprep.subr.mxu0 0.0
        %1972 = vmatpush1.msra.mxu0 %v1948
        %1973 = vmatprep.subr.mxu0 0.0
        %1974 = vmatpush1.msra.mxu0 %v1950
        %1975 = vmatprep.subr.mxu0 0.0
        %1976 = vmatpush1.msra.mxu0 %v1952
        %1977 = vmatprep.subr.mxu0 0.0
        %1978 = vmatpush1.msra.mxu0 0.0
        %1979 = vmatprep.subr.mxu0 0.0
        %1980 = vmatpush1.msra.mxu0 0.0
        %1981 = vmatprep.subr.mxu0 0.0
        %1982 = vmatpush1.msra.mxu0 0.0
        %1983 = vmatprep.subr.mxu0 0.0
        %1984 = vmatpush1.msra.mxu0 0.0
        %1985 = vmatprep.subr.mxu0 0.0
        %1986 = vmatpush1.msra.mxu0 0.0
        %1987 = vmatprep.subr.mxu0 0.0
        %1988 = vmatpush1.msra.mxu0 0.0
        %1989 = vmatprep.subr.mxu0 0.0
        %1990 = vmatpush1.msra.mxu0 0.0
        %1991 = vmatprep.subr.mxu0 0.0
        %1992 = vmatpush1.msra.mxu0 0.0
        %1993 = vmatprep.subr.mxu0 0.0
        %1994 = vmatpush1.msra.mxu0 0.0
        %1995 = vmatprep.subr.mxu0 0.0
        %1996 = vmatpush1.msra.mxu0 0.0
        %1997 = vmatprep.subr.mxu0 0.0
        %1998 = vmatpush1.msra.mxu0 0.0
        %1999 = vmatprep.subr.mxu0 0.0
        %2000 = vmatpush1.msra.mxu0 0.0
        %2001 = vmatprep.subr.mxu0 0.0
        %2002 = vmatpush1.msra.mxu0 0.0
        %2003 = vmatprep.subr.mxu0 0.0
        %2004 = vmatpush1.msra.mxu0 0.0
        %2005 = vmatprep.subr.mxu0 0.0
        %2006 = vmatpush1.msra.mxu0 0.0
        %2007 = vmatprep.subr.mxu0 0.0
        %2008 = vmatpush1.msra.mxu0 0.0
        %2009 = vmatprep.subr.mxu0 0.0
        %2010 = vmatpush1.msra.mxu0 0.0
        %2011 = vmatprep.subr.mxu0 0.0
        %2012 = vmatpush1.msra.mxu0 0.0
        %2013 = vmatprep.subr.mxu0 0.0
        %2014 = vmatpush1.msra.mxu0 0.0
        %2015 = vmatprep.subr.mxu0 0.0
        %2016 = vmatpush1.msra.mxu0 0.0
        %2017 = vmatprep.subr.mxu0 0.0
        %2018 = vmatpush1.msra.mxu0 0.0
        %2019 = vmatprep.subr.mxu0 0.0
        %2020 = vmatpush1.msra.mxu0 0.0
        %2021 = vmatprep.subr.mxu0 0.0
        %2022 = vmatpush1.msra.mxu0 0.0
        %2023 = vmatprep.subr.mxu0 0.0
        %2024 = vmatpush1.msra.mxu0 0.0
        %2025 = vmatprep.subr.mxu0 0.0
        %2026 = vmatpush1.msra.mxu0 0.0
        %2027 = vmatprep.subr.mxu0 0.0
        %2028 = vmatpush1.msra.mxu0 0.0
        %2029 = vmatprep.subr.mxu0 0.0
        %2030 = vmatpush1.msra.mxu0 0.0
        %2031 = vmatprep.subr.mxu0 0.0
        %2032 = vmatpush1.msra.mxu0 0.0
        %2033 = vmatprep.mubr.f32.mxu0 0.0
        %2034 = vmatmul.mubr.f32.gmra.mrb[0].mxu0 %v1958
        %v2035 = vpop.f32.mrb[0].mxu0
        %v2036 = vadd.f32 0.0, %v2035
        %v2037 = vpop.f32.mrb[0].mxu0
        %2038 = vmatprep.mubr.f32.mxu0 0.0
        %2039 = vmatmul.mubr.f32.gmra.mrb[0].mxu0 %v1961
        %v2040 = vpop.f32.mrb[0].mxu0
        %v2041 = vadd.f32 0.0, %v2040
        %v2042 = vpop.f32.mrb[0].mxu0
        %2043 = vmatprep.mubr.f32.mxu0 0.0
        %2044 = vmatmul.mubr.f32.gmra.mrb[0].mxu0 %v1964
        %v2045 = vpop.f32.mrb[0].mxu0
        %v2046 = vadd.f32 0.0, %v2045
        %v2047 = vpop.f32.mrb[0].mxu0
        %2048 = vmatprep.mubr.f32.mxu0 0.0
        %2049 = vmatmul.mubr.f32.gmra.mrb[0].mxu0 %v1967
        %v2050 = vpop.f32.mrb[0].mxu0
        %v2051 = vadd.f32 0.0, %v2050
        %v2052 = vpop.f32.mrb[0].mxu0
        %2053 = vdwg.mxu0
        %2054 = vrot.lane.b32.xlu0 %v711, 108
        %v2055 = vpop.permute.xlu0 %2054
        %2056 = vrot.lane.b32.xlu0 %v712, 108
        %v2057 = vpop.permute.xlu0 %2056
        %2058 = vrot.lane.b32.xlu0 %v713, 108
        %v2059 = vpop.permute.xlu0 %2058
        %2060 = vrot.lane.b32.xlu0 %v714, 108
        %v2061 = vpop.permute.xlu0 %2060
        %2062 = vrot.lane.b32.xlu0 %v585, 108
        %v2063 = vpop.permute.xlu0 %2062
        %2064 = vrot.lane.b32.xlu0 %v590, 108
        %v2065 = vpop.permute.xlu0 %2064
        %2066 = vrot.lane.b32.xlu0 %v595, 108
        %v2067 = vpop.permute.xlu0 %2066
        %2068 = vrot.lane.b32.xlu0 %v600, 108
        %v2069 = vpop.permute.xlu0 %2068
        %v2070 = vsel %vm719, %v2055, 0
        %v2072 = vsel %vm719, %v2057, 0
        %v2074 = vsel %vm719, %v2059, 0
        %v2076 = vsel %vm719, %v2061, 0
        %v2078 = vsel %vm719, %v2063, 0
        %v2080 = vsel %vm719, %v2065, 0
        %v2082 = vsel %vm719, %v2067, 0
        %v2084 = vsel %vm719, %v2069, 0
        %2086 = vmatprep.subr.mxu0 0.0
        %2087 = vmatpush1.xpose.msra.mxu0 %v2078
        %2088 = vmatprep.subr.mxu0 0.0
        %2089 = vmatpush1.xpose.msra.mxu0 %v2080
        %2090 = vmatprep.subr.mxu0 0.0
        %2091 = vmatpush1.xpose.msra.mxu0 %v2082
        %2092 = vmatprep.subr.mxu0 0.0
        %2093 = vmatpush1.xpose.msra.mxu0 %v2084
        %2094 = vmatprep.subr.mxu0 0.0
        %2095 = vmatpush1.xpose.msra.mxu0 0.0
        %2096 = vmatprep.subr.mxu0 0.0
        %2097 = vmatpush1.xpose.msra.mxu0 0.0
        %2098 = vmatprep.subr.mxu0 0.0
        %2099 = vmatpush1.xpose.msra.mxu0 0.0
        %2100 = vmatprep.subr.mxu0 0.0
        %2101 = vmatpush1.xpose.msra.mxu0 0.0
        %2102 = vmatprep.subr.mxu0 0.0
        %2103 = vmatpush1.xpose.msra.mxu0 0.0
        %2104 = vmatprep.subr.mxu0 0.0
        %2105 = vmatpush1.xpose.msra.mxu0 0.0
        %2106 = vmatprep.subr.mxu0 0.0
        %2107 = vmatpush1.xpose.msra.mxu0 0.0
        %2108 = vmatprep.subr.mxu0 0.0
        %2109 = vmatpush1.xpose.msra.mxu0 0.0
        %2110 = vmatprep.subr.mxu0 0.0
        %2111 = vmatpush1.xpose.msra.mxu0 0.0
        %2112 = vmatprep.subr.mxu0 0.0
        %2113 = vmatpush1.xpose.msra.mxu0 0.0
        %2114 = vmatprep.subr.mxu0 0.0
        %2115 = vmatpush1.xpose.msra.mxu0 0.0
        %2116 = vmatprep.subr.mxu0 0.0
        %2117 = vmatpush1.xpose.msra.mxu0 0.0
        %2118 = vmatprep.subr.mxu0 0.0
        %2119 = vmatpush1.xpose.msra.mxu0 0.0
        %2120 = vmatprep.subr.mxu0 0.0
        %2121 = vmatpush1.xpose.msra.mxu0 0.0
        %2122 = vmatprep.subr.mxu0 0.0
        %2123 = vmatpush1.xpose.msra.mxu0 0.0
        %2124 = vmatprep.subr.mxu0 0.0
        %2125 = vmatpush1.xpose.msra.mxu0 0.0
        %2126 = vmatprep.subr.mxu0 0.0
        %2127 = vmatpush1.xpose.msra.mxu0 0.0
        %2128 = vmatprep.subr.mxu0 0.0
        %2129 = vmatpush1.xpose.msra.mxu0 0.0
        %2130 = vmatprep.subr.mxu0 0.0
        %2131 = vmatpush1.xpose.msra.mxu0 0.0
        %2132 = vmatprep.subr.mxu0 0.0
        %2133 = vmatpush1.xpose.msra.mxu0 0.0
        %2134 = vmatprep.subr.mxu0 0.0
        %2135 = vmatpush1.xpose.msra.mxu0 0.0
        %2136 = vmatprep.subr.mxu0 0.0
        %2137 = vmatpush1.xpose.msra.mxu0 0.0
        %2138 = vmatprep.subr.mxu0 0.0
        %2139 = vmatpush1.xpose.msra.mxu0 0.0
        %2140 = vmatprep.subr.mxu0 0.0
        %2141 = vmatpush1.xpose.msra.mxu0 0.0
        %2142 = vmatprep.subr.mxu0 0.0
        %2143 = vmatpush1.xpose.msra.mxu0 0.0
        %2144 = vmatprep.subr.mxu0 0.0
        %2145 = vmatpush1.xpose.msra.mxu0 0.0
        %2146 = vmatprep.subr.mxu0 0.0
        %2147 = vmatpush1.xpose.msra.mxu0 0.0
        %2148 = vmatprep.subr.mxu0 0.0
        %2149 = vmatpush1.xpose.msra.mxu0 0.0
        %2150 = vmatprep.mubr.f32.mxu0 0.0
        %2151 = vmatmul.mubr.f32.gmra.mrb[0].mxu0 %v2070
        %v2152 = vpop.f32.mrb[0].mxu0
        %v2153 = vadd.f32 %v715, %v2152
        %v2154 = vpop.f32.mrb[0].mxu0
        %2155 = vmatprep.mubr.f32.mxu0 0.0
        %2156 = vmatmul.mubr.f32.gmra.mrb[0].mxu0 %v2072
        %v2157 = vpop.f32.mrb[0].mxu0
        %v2158 = vadd.f32 %v716, %v2157
        %v2159 = vpop.f32.mrb[0].mxu0
        %2160 = vmatprep.mubr.f32.mxu0 0.0
        %2161 = vmatmul.mubr.f32.gmra.mrb[0].mxu0 %v2074
        %v2162 = vpop.f32.mrb[0].mxu0
        %v2163 = vadd.f32 %v717, %v2162
        %v2164 = vpop.f32.mrb[0].mxu0
        %2165 = vmatprep.mubr.f32.mxu0 0.0
        %2166 = vmatmul.mubr.f32.gmra.mrb[0].mxu0 %v2076
        %v2167 = vpop.f32.mrb[0].mxu0
        %v2168 = vadd.f32 %v718, %v2167
        %v2169 = vpop.f32.mrb[0].mxu0
        %2170 = vdwg.mxu0
        %v2171 = vsel %vm505, %v2153, -inf
        %2172 = vmax.xlane.f32.xlu0 %v2171
        %v2173 = vpop.xlane.xlu0 %2172
        %v2174 = vsel %vm505, %v2158, -inf
        %2175 = vmax.xlane.f32.xlu0 %v2174
        %v2176 = vpop.xlane.xlu0 %2175
        %v2177 = vsel %vm505, %v2163, -inf
        %2178 = vmax.xlane.f32.xlu0 %v2177
        %v2179 = vpop.xlane.xlu0 %2178
        %v2180 = vsel %vm505, %v2168, -inf
        %2181 = vmax.xlane.f32.xlu0 %v2180
        %v2182 = vpop.xlane.xlu0 %2181
        %v2183 = vsub.f32 %v2153, %v2173
        %v2184 = vsub.f32 %v2158, %v2176
        %v2185 = vsub.f32 %v2163, %v2179
        %v2186 = vsub.f32 %v2168, %v2182
        %v2187 = vmul.f32 %v2183, 1.442695
        %v2188 = vpow.pop %v2187
        %v2189 = vmul.f32 %v2184, 1.442695
        %v2190 = vpow.pop %v2189
        %v2191 = vmul.f32 %v2185, 1.442695
        %v2192 = vpow.pop %v2191
        %v2193 = vmul.f32 %v2186, 1.442695
        %v2194 = vpow.pop %v2193
        %v2195 = vsel %vm505, %v2188, 0.0
        %2196 = vadd.xlane.f32.xlu0 %v2195
        %v2197 = vpop.xlane.xlu0 %2196
        %v2198 = vsel %vm505, %v2190, 0.0
        %2199 = vadd.xlane.f32.xlu0 %v2198
        %v2200 = vpop.xlane.xlu0 %2199
        %v2201 = vsel %vm505, %v2192, 0.0
        %2202 = vadd.xlane.f32.xlu0 %v2201
        %v2203 = vpop.xlane.xlu0 %2202
        %v2204 = vsel %vm505, %v2194, 0.0
        %2205 = vadd.xlane.f32.xlu0 %v2204
        %v2206 = vpop.xlane.xlu0 %2205
        %v2207 = vrcp.pop %v2197
        %v2208 = vrcp.pop %v2200
        %v2209 = vrcp.pop %v2203
        %v2210 = vrcp.pop %v2206
        %v2211 = vmul.f32 %v2188, %v2207
        %v2212 = vmul.f32 %v2190, %v2208
        %v2213 = vmul.f32 %v2192, %v2209
        %v2214 = vmul.f32 %v2194, %v2210
        %2215 = vrot.lane.b32.xlu0 %v693, 108
        %v2216 = vpop.permute.xlu0 %2215
        %2217 = vrot.lane.b32.xlu0 %v698, 108
        %v2218 = vpop.permute.xlu0 %2217
        %2219 = vrot.lane.b32.xlu0 %v703, 108
        %v2220 = vpop.permute.xlu0 %2219
        %2221 = vrot.lane.b32.xlu0 %v708, 108
        %v2222 = vpop.permute.xlu0 %2221
        %v2228 = vsel %vm505, %v2211, 0
        %v2231 = vsel %vm505, %v2212, 0
        %v2234 = vsel %vm505, %v2213, 0
        %v2237 = vsel %vm505, %v2214, 0
        %2239 = vmatprep.subr.mxu0 0.0
        %2240 = vmatpush1.msra.mxu0 %v2216
        %2241 = vmatprep.subr.mxu0 0.0
        %2242 = vmatpush1.msra.mxu0 %v2218
        %2243 = vmatprep.subr.mxu0 0.0
        %2244 = vmatpush1.msra.mxu0 %v2220
        %2245 = vmatprep.subr.mxu0 0.0
        %2246 = vmatpush1.msra.mxu0 %v2222
        %2247 = vmatprep.subr.mxu0 0.0
        %2248 = vmatpush1.msra.mxu0 0.0
        %2249 = vmatprep.subr.mxu0 0.0
        %2250 = vmatpush1.msra.mxu0 0.0
        %2251 = vmatprep.subr.mxu0 0.0
        %2252 = vmatpush1.msra.mxu0 0.0
        %2253 = vmatprep.subr.mxu0 0.0
        %2254 = vmatpush1.msra.mxu0 0.0
        %2255 = vmatprep.subr.mxu0 0.0
        %2256 = vmatpush1.msra.mxu0 0.0
        %2257 = vmatprep.subr.mxu0 0.0
        %2258 = vmatpush1.msra.mxu0 0.0
        %2259 = vmatprep.subr.mxu0 0.0
        %2260 = vmatpush1.msra.mxu0 0.0
        %2261 = vmatprep.subr.mxu0 0.0
        %2262 = vmatpush1.msra.mxu0 0.0
        %2263 = vmatprep.subr.mxu0 0.0
        %2264 = vmatpush1.msra.mxu0 0.0
        %2265 = vmatprep.subr.mxu0 0.0
        %2266 = vmatpush1.msra.mxu0 0.0
        %2267 = vmatprep.subr.mxu0 0.0
        %2268 = vmatpush1.msra.mxu0 0.0
        %2269 = vmatprep.subr.mxu0 0.0
        %2270 = vmatpush1.msra.mxu0 0.0
        %2271 = vmatprep.subr.mxu0 0.0
        %2272 = vmatpush1.msra.mxu0 0.0
        %2273 = vmatprep.subr.mxu0 0.0
        %2274 = vmatpush1.msra.mxu0 0.0
        %2275 = vmatprep.subr.mxu0 0.0
        %2276 = vmatpush1.msra.mxu0 0.0
        %2277 = vmatprep.subr.mxu0 0.0
        %2278 = vmatpush1.msra.mxu0 0.0
        %2279 = vmatprep.subr.mxu0 0.0
        %2280 = vmatpush1.msra.mxu0 0.0
        %2281 = vmatprep.subr.mxu0 0.0
        %2282 = vmatpush1.msra.mxu0 0.0
        %2283 = vmatprep.subr.mxu0 0.0
        %2284 = vmatpush1.msra.mxu0 0.0
        %2285 = vmatprep.subr.mxu0 0.0
        %2286 = vmatpush1.msra.mxu0 0.0
        %2287 = vmatprep.subr.mxu0 0.0
        %2288 = vmatpush1.msra.mxu0 0.0
        %2289 = vmatprep.subr.mxu0 0.0
        %2290 = vmatpush1.msra.mxu0 0.0
        %2291 = vmatprep.subr.mxu0 0.0
        %2292 = vmatpush1.msra.mxu0 0.0
        %2293 = vmatprep.subr.mxu0 0.0
        %2294 = vmatpush1.msra.mxu0 0.0
        %2295 = vmatprep.subr.mxu0 0.0
        %2296 = vmatpush1.msra.mxu0 0.0
        %2297 = vmatprep.subr.mxu0 0.0
        %2298 = vmatpush1.msra.mxu0 0.0
        %2299 = vmatprep.subr.mxu0 0.0
        %2300 = vmatpush1.msra.mxu0 0.0
        %2301 = vmatprep.subr.mxu0 0.0
        %2302 = vmatpush1.msra.mxu0 0.0
        %2303 = vmatprep.mubr.f32.mxu0 0.0
        %2304 = vmatmul.mubr.f32.gmra.mrb[0].mxu0 %v2228
        %v2305 = vpop.f32.mrb[0].mxu0
        %v2306 = vadd.f32 0.0, %v2305
        %v2307 = vpop.f32.mrb[0].mxu0
        %2308 = vmatprep.mubr.f32.mxu0 0.0
        %2309 = vmatmul.mubr.f32.gmra.mrb[0].mxu0 %v2231
        %v2310 = vpop.f32.mrb[0].mxu0
        %v2311 = vadd.f32 0.0, %v2310
        %v2312 = vpop.f32.mrb[0].mxu0
        %2313 = vmatprep.mubr.f32.mxu0 0.0
        %2314 = vmatmul.mubr.f32.gmra.mrb[0].mxu0 %v2234
        %v2315 = vpop.f32.mrb[0].mxu0
        %v2316 = vadd.f32 0.0, %v2315
        %v2317 = vpop.f32.mrb[0].mxu0
        %2318 = vmatprep.mubr.f32.mxu0 0.0
        %2319 = vmatmul.mubr.f32.gmra.mrb[0].mxu0 %v2237
        %v2320 = vpop.f32.mrb[0].mxu0
        %v2321 = vadd.f32 0.0, %v2320
        %v2322 = vpop.f32.mrb[0].mxu0
        %2323 = vdwg.mxu0
        %2324 = vrot.lane.b32.xlu0 %v711, 104
        %v2325 = vpop.permute.xlu0 %2324
        %2326 = vrot.lane.b32.xlu0 %v712, 104
        %v2327 = vpop.permute.xlu0 %2326
        %2328 = vrot.lane.b32.xlu0 %v713, 104
        %v2329 = vpop.permute.xlu0 %2328
        %2330 = vrot.lane.b32.xlu0 %v714, 104
        %v2331 = vpop.permute.xlu0 %2330
        %2332 = vrot.lane.b32.xlu0 %v585, 104
        %v2333 = vpop.permute.xlu0 %2332
        %2334 = vrot.lane.b32.xlu0 %v590, 104
        %v2335 = vpop.permute.xlu0 %2334
        %2336 = vrot.lane.b32.xlu0 %v595, 104
        %v2337 = vpop.permute.xlu0 %2336
        %2338 = vrot.lane.b32.xlu0 %v600, 104
        %v2339 = vpop.permute.xlu0 %2338
        %v2340 = vsel %vm719, %v2325, 0
        %v2342 = vsel %vm719, %v2327, 0
        %v2344 = vsel %vm719, %v2329, 0
        %v2346 = vsel %vm719, %v2331, 0
        %v2348 = vsel %vm719, %v2333, 0
        %v2350 = vsel %vm719, %v2335, 0
        %v2352 = vsel %vm719, %v2337, 0
        %v2354 = vsel %vm719, %v2339, 0
        %2356 = vmatprep.subr.mxu0 0.0
        %2357 = vmatpush1.xpose.msra.mxu0 %v2348
        %2358 = vmatprep.subr.mxu0 0.0
        %2359 = vmatpush1.xpose.msra.mxu0 %v2350
        %2360 = vmatprep.subr.mxu0 0.0
        %2361 = vmatpush1.xpose.msra.mxu0 %v2352
        %2362 = vmatprep.subr.mxu0 0.0
        %2363 = vmatpush1.xpose.msra.mxu0 %v2354
        %2364 = vmatprep.subr.mxu0 0.0
        %2365 = vmatpush1.xpose.msra.mxu0 0.0
        %2366 = vmatprep.subr.mxu0 0.0
        %2367 = vmatpush1.xpose.msra.mxu0 0.0
        %2368 = vmatprep.subr.mxu0 0.0
        %2369 = vmatpush1.xpose.msra.mxu0 0.0
        %2370 = vmatprep.subr.mxu0 0.0
        %2371 = vmatpush1.xpose.msra.mxu0 0.0
        %2372 = vmatprep.subr.mxu0 0.0
        %2373 = vmatpush1.xpose.msra.mxu0 0.0
        %2374 = vmatprep.subr.mxu0 0.0
        %2375 = vmatpush1.xpose.msra.mxu0 0.0
        %2376 = vmatprep.subr.mxu0 0.0
        %2377 = vmatpush1.xpose.msra.mxu0 0.0
        %2378 = vmatprep.subr.mxu0 0.0
        %2379 = vmatpush1.xpose.msra.mxu0 0.0
        %2380 = vmatprep.subr.mxu0 0.0
        %2381 = vmatpush1.xpose.msra.mxu0 0.0
        %2382 = vmatprep.subr.mxu0 0.0
        %2383 = vmatpush1.xpose.msra.mxu0 0.0
        %2384 = vmatprep.subr.mxu0 0.0
        %2385 = vmatpush1.xpose.msra.mxu0 0.0
        %2386 = vmatprep.subr.mxu0 0.0
        %2387 = vmatpush1.xpose.msra.mxu0 0.0
        %2388 = vmatprep.subr.mxu0 0.0
        %2389 = vmatpush1.xpose.msra.mxu0 0.0
        %2390 = vmatprep.subr.mxu0 0.0
        %2391 = vmatpush1.xpose.msra.mxu0 0.0
        %2392 = vmatprep.subr.mxu0 0.0
        %2393 = vmatpush1.xpose.msra.mxu0 0.0
        %2394 = vmatprep.subr.mxu0 0.0
        %2395 = vmatpush1.xpose.msra.mxu0 0.0
        %2396 = vmatprep.subr.mxu0 0.0
        %2397 = vmatpush1.xpose.msra.mxu0 0.0
        %2398 = vmatprep.subr.mxu0 0.0
        %2399 = vmatpush1.xpose.msra.mxu0 0.0
        %2400 = vmatprep.subr.mxu0 0.0
        %2401 = vmatpush1.xpose.msra.mxu0 0.0
        %2402 = vmatprep.subr.mxu0 0.0
        %2403 = vmatpush1.xpose.msra.mxu0 0.0
        %2404 = vmatprep.subr.mxu0 0.0
        %2405 = vmatpush1.xpose.msra.mxu0 0.0
        %2406 = vmatprep.subr.mxu0 0.0
        %2407 = vmatpush1.xpose.msra.mxu0 0.0
        %2408 = vmatprep.subr.mxu0 0.0
        %2409 = vmatpush1.xpose.msra.mxu0 0.0
        %2410 = vmatprep.subr.mxu0 0.0
        %2411 = vmatpush1.xpose.msra.mxu0 0.0
        %2412 = vmatprep.subr.mxu0 0.0
        %2413 = vmatpush1.xpose.msra.mxu0 0.0
        %2414 = vmatprep.subr.mxu0 0.0
        %2415 = vmatpush1.xpose.msra.mxu0 0.0
        %2416 = vmatprep.subr.mxu0 0.0
        %2417 = vmatpush1.xpose.msra.mxu0 0.0
        %2418 = vmatprep.subr.mxu0 0.0
        %2419 = vmatpush1.xpose.msra.mxu0 0.0
        %2420 = vmatprep.mubr.f32.mxu0 0.0
        %2421 = vmatmul.mubr.f32.gmra.mrb[0].mxu0 %v2340
        %v2422 = vpop.f32.mrb[0].mxu0
        %v2423 = vadd.f32 %v715, %v2422
        %v2424 = vpop.f32.mrb[0].mxu0
        %2425 = vmatprep.mubr.f32.mxu0 0.0
        %2426 = vmatmul.mubr.f32.gmra.mrb[0].mxu0 %v2342
        %v2427 = vpop.f32.mrb[0].mxu0
        %v2428 = vadd.f32 %v716, %v2427
        %v2429 = vpop.f32.mrb[0].mxu0
        %2430 = vmatprep.mubr.f32.mxu0 0.0
        %2431 = vmatmul.mubr.f32.gmra.mrb[0].mxu0 %v2344
        %v2432 = vpop.f32.mrb[0].mxu0
        %v2433 = vadd.f32 %v717, %v2432
        %v2434 = vpop.f32.mrb[0].mxu0
        %2435 = vmatprep.mubr.f32.mxu0 0.0
        %2436 = vmatmul.mubr.f32.gmra.mrb[0].mxu0 %v2346
        %v2437 = vpop.f32.mrb[0].mxu0
        %v2438 = vadd.f32 %v718, %v2437
        %v2439 = vpop.f32.mrb[0].mxu0
        %2440 = vdwg.mxu0
        %v2441 = vsel %vm505, %v2423, -inf
        %2442 = vmax.xlane.f32.xlu0 %v2441
        %v2443 = vpop.xlane.xlu0 %2442
        %v2444 = vsel %vm505, %v2428, -inf
        %2445 = vmax.xlane.f32.xlu0 %v2444
        %v2446 = vpop.xlane.xlu0 %2445
        %v2447 = vsel %vm505, %v2433, -inf
        %2448 = vmax.xlane.f32.xlu0 %v2447
        %v2449 = vpop.xlane.xlu0 %2448
        %v2450 = vsel %vm505, %v2438, -inf
        %2451 = vmax.xlane.f32.xlu0 %v2450
        %v2452 = vpop.xlane.xlu0 %2451
        %v2453 = vsub.f32 %v2423, %v2443
        %v2454 = vsub.f32 %v2428, %v2446
        %v2455 = vsub.f32 %v2433, %v2449
        %v2456 = vsub.f32 %v2438, %v2452
        %v2457 = vmul.f32 %v2453, 1.442695
        %v2458 = vpow.pop %v2457
        %v2459 = vmul.f32 %v2454, 1.442695
        %v2460 = vpow.pop %v2459
        %v2461 = vmul.f32 %v2455, 1.442695
        %v2462 = vpow.pop %v2461
        %v2463 = vmul.f32 %v2456, 1.442695
        %v2464 = vpow.pop %v2463
        %v2465 = vsel %vm505, %v2458, 0.0
        %2466 = vadd.xlane.f32.xlu0 %v2465
        %v2467 = vpop.xlane.xlu0 %2466
        %v2468 = vsel %vm505, %v2460, 0.0
        %2469 = vadd.xlane.f32.xlu0 %v2468
        %v2470 = vpop.xlane.xlu0 %2469
        %v2471 = vsel %vm505, %v2462, 0.0
        %2472 = vadd.xlane.f32.xlu0 %v2471
        %v2473 = vpop.xlane.xlu0 %2472
        %v2474 = vsel %vm505, %v2464, 0.0
        %2475 = vadd.xlane.f32.xlu0 %v2474
        %v2476 = vpop.xlane.xlu0 %2475
        %v2477 = vrcp.pop %v2467
        %v2478 = vrcp.pop %v2470
        %v2479 = vrcp.pop %v2473
        %v2480 = vrcp.pop %v2476
        %v2481 = vmul.f32 %v2458, %v2477
        %v2482 = vmul.f32 %v2460, %v2478
        %v2483 = vmul.f32 %v2462, %v2479
        %v2484 = vmul.f32 %v2464, %v2480
        %2485 = vrot.lane.b32.xlu0 %v693, 104
        %v2486 = vpop.permute.xlu0 %2485
        %2487 = vrot.lane.b32.xlu0 %v698, 104
        %v2488 = vpop.permute.xlu0 %2487
        %2489 = vrot.lane.b32.xlu0 %v703, 104
        %v2490 = vpop.permute.xlu0 %2489
        %2491 = vrot.lane.b32.xlu0 %v708, 104
        %v2492 = vpop.permute.xlu0 %2491
        %v2498 = vsel %vm505, %v2481, 0
        %v2501 = vsel %vm505, %v2482, 0
        %v2504 = vsel %vm505, %v2483, 0
        %v2507 = vsel %vm505, %v2484, 0
        %2509 = vmatprep.subr.mxu0 0.0
        %2510 = vmatpush1.msra.mxu0 %v2486
        %2511 = vmatprep.subr.mxu0 0.0
        %2512 = vmatpush1.msra.mxu0 %v2488
        %2513 = vmatprep.subr.mxu0 0.0
        %2514 = vmatpush1.msra.mxu0 %v2490
        %2515 = vmatprep.subr.mxu0 0.0
        %2516 = vmatpush1.msra.mxu0 %v2492
        %2517 = vmatprep.subr.mxu0 0.0
        %2518 = vmatpush1.msra.mxu0 0.0
        %2519 = vmatprep.subr.mxu0 0.0
        %2520 = vmatpush1.msra.mxu0 0.0
        %2521 = vmatprep.subr.mxu0 0.0
        %2522 = vmatpush1.msra.mxu0 0.0
        %2523 = vmatprep.subr.mxu0 0.0
        %2524 = vmatpush1.msra.mxu0 0.0
        %2525 = vmatprep.subr.mxu0 0.0
        %2526 = vmatpush1.msra.mxu0 0.0
        %2527 = vmatprep.subr.mxu0 0.0
        %2528 = vmatpush1.msra.mxu0 0.0
        %2529 = vmatprep.subr.mxu0 0.0
        %2530 = vmatpush1.msra.mxu0 0.0
        %2531 = vmatprep.subr.mxu0 0.0
        %2532 = vmatpush1.msra.mxu0 0.0
        %2533 = vmatprep.subr.mxu0 0.0
        %2534 = vmatpush1.msra.mxu0 0.0
        %2535 = vmatprep.subr.mxu0 0.0
        %2536 = vmatpush1.msra.mxu0 0.0
        %2537 = vmatprep.subr.mxu0 0.0
        %2538 = vmatpush1.msra.mxu0 0.0
        %2539 = vmatprep.subr.mxu0 0.0
        %2540 = vmatpush1.msra.mxu0 0.0
        %2541 = vmatprep.subr.mxu0 0.0
        %2542 = vmatpush1.msra.mxu0 0.0
        %2543 = vmatprep.subr.mxu0 0.0
        %2544 = vmatpush1.msra.mxu0 0.0
        %2545 = vmatprep.subr.mxu0 0.0
        %2546 = vmatpush1.msra.mxu0 0.0
        %2547 = vmatprep.subr.mxu0 0.0
        %2548 = vmatpush1.msra.mxu0 0.0
        %2549 = vmatprep.subr.mxu0 0.0
        %2550 = vmatpush1.msra.mxu0 0.0
        %2551 = vmatprep.subr.mxu0 0.0
        %2552 = vmatpush1.msra.mxu0 0.0
        %2553 = vmatprep.subr.mxu0 0.0
        %2554 = vmatpush1.msra.mxu0 0.0
        %2555 = vmatprep.subr.mxu0 0.0
        %2556 = vmatpush1.msra.mxu0 0.0
        %2557 = vmatprep.subr.mxu0 0.0
        %2558 = vmatpush1.msra.mxu0 0.0
        %2559 = vmatprep.subr.mxu0 0.0
        %2560 = vmatpush1.msra.mxu0 0.0
        %2561 = vmatprep.subr.mxu0 0.0
        %2562 = vmatpush1.msra.mxu0 0.0
        %2563 = vmatprep.subr.mxu0 0.0
        %2564 = vmatpush1.msra.mxu0 0.0
        %2565 = vmatprep.subr.mxu0 0.0
        %2566 = vmatpush1.msra.mxu0 0.0
        %2567 = vmatprep.subr.mxu0 0.0
        %2568 = vmatpush1.msra.mxu0 0.0
        %2569 = vmatprep.subr.mxu0 0.0
        %2570 = vmatpush1.msra.mxu0 0.0
        %2571 = vmatprep.subr.mxu0 0.0
        %2572 = vmatpush1.msra.mxu0 0.0
        %2573 = vmatprep.mubr.f32.mxu0 0.0
        %2574 = vmatmul.mubr.f32.gmra.mrb[0].mxu0 %v2498
        %v2575 = vpop.f32.mrb[0].mxu0
        %v2576 = vadd.f32 0.0, %v2575
        %v2577 = vpop.f32.mrb[0].mxu0
        %2578 = vmatprep.mubr.f32.mxu0 0.0
        %2579 = vmatmul.mubr.f32.gmra.mrb[0].mxu0 %v2501
        %v2580 = vpop.f32.mrb[0].mxu0
        %v2581 = vadd.f32 0.0, %v2580
        %v2582 = vpop.f32.mrb[0].mxu0
        %2583 = vmatprep.mubr.f32.mxu0 0.0
        %2584 = vmatmul.mubr.f32.gmra.mrb[0].mxu0 %v2504
        %v2585 = vpop.f32.mrb[0].mxu0
        %v2586 = vadd.f32 0.0, %v2585
        %v2587 = vpop.f32.mrb[0].mxu0
        %2588 = vmatprep.mubr.f32.mxu0 0.0
        %2589 = vmatmul.mubr.f32.gmra.mrb[0].mxu0 %v2507
        %v2590 = vpop.f32.mrb[0].mxu0
        %v2591 = vadd.f32 0.0, %v2590
        %v2592 = vpop.f32.mrb[0].mxu0
        %2593 = vdwg.mxu0
        %2594 = vrot.lane.b32.xlu0 %v711, 100
        %v2595 = vpop.permute.xlu0 %2594
        %2596 = vrot.lane.b32.xlu0 %v712, 100
        %v2597 = vpop.permute.xlu0 %2596
        %2598 = vrot.lane.b32.xlu0 %v713, 100
        %v2599 = vpop.permute.xlu0 %2598
        %2600 = vrot.lane.b32.xlu0 %v714, 100
        %v2601 = vpop.permute.xlu0 %2600
        %2602 = vrot.lane.b32.xlu0 %v585, 100
        %v2603 = vpop.permute.xlu0 %2602
        %2604 = vrot.lane.b32.xlu0 %v590, 100
        %v2605 = vpop.permute.xlu0 %2604
        %2606 = vrot.lane.b32.xlu0 %v595, 100
        %v2607 = vpop.permute.xlu0 %2606
        %2608 = vrot.lane.b32.xlu0 %v600, 100
        %v2609 = vpop.permute.xlu0 %2608
        %v2610 = vsel %vm719, %v2595, 0
        %v2612 = vsel %vm719, %v2597, 0
        %v2614 = vsel %vm719, %v2599, 0
        %v2616 = vsel %vm719, %v2601, 0
        %v2618 = vsel %vm719, %v2603, 0
        %v2620 = vsel %vm719, %v2605, 0
        %v2622 = vsel %vm719, %v2607, 0
        %v2624 = vsel %vm719, %v2609, 0
        %2626 = vmatprep.subr.mxu0 0.0
        %2627 = vmatpush1.xpose.msra.mxu0 %v2618
        %2628 = vmatprep.subr.mxu0 0.0
        %2629 = vmatpush1.xpose.msra.mxu0 %v2620
        %2630 = vmatprep.subr.mxu0 0.0
        %2631 = vmatpush1.xpose.msra.mxu0 %v2622
        %2632 = vmatprep.subr.mxu0 0.0
        %2633 = vmatpush1.xpose.msra.mxu0 %v2624
        %2634 = vmatprep.subr.mxu0 0.0
        %2635 = vmatpush1.xpose.msra.mxu0 0.0
        %2636 = vmatprep.subr.mxu0 0.0
        %2637 = vmatpush1.xpose.msra.mxu0 0.0
        %2638 = vmatprep.subr.mxu0 0.0
        %2639 = vmatpush1.xpose.msra.mxu0 0.0
        %2640 = vmatprep.subr.mxu0 0.0
        %2641 = vmatpush1.xpose.msra.mxu0 0.0
        %2642 = vmatprep.subr.mxu0 0.0
        %2643 = vmatpush1.xpose.msra.mxu0 0.0
        %2644 = vmatprep.subr.mxu0 0.0
        %2645 = vmatpush1.xpose.msra.mxu0 0.0
        %2646 = vmatprep.subr.mxu0 0.0
        %2647 = vmatpush1.xpose.msra.mxu0 0.0
        %2648 = vmatprep.subr.mxu0 0.0
        %2649 = vmatpush1.xpose.msra.mxu0 0.0
        %2650 = vmatprep.subr.mxu0 0.0
        %2651 = vmatpush1.xpose.msra.mxu0 0.0
        %2652 = vmatprep.subr.mxu0 0.0
        %2653 = vmatpush1.xpose.msra.mxu0 0.0
        %2654 = vmatprep.subr.mxu0 0.0
        %2655 = vmatpush1.xpose.msra.mxu0 0.0
        %2656 = vmatprep.subr.mxu0 0.0
        %2657 = vmatpush1.xpose.msra.mxu0 0.0
        %2658 = vmatprep.subr.mxu0 0.0
        %2659 = vmatpush1.xpose.msra.mxu0 0.0
        %2660 = vmatprep.subr.mxu0 0.0
        %2661 = vmatpush1.xpose.msra.mxu0 0.0
        %2662 = vmatprep.subr.mxu0 0.0
        %2663 = vmatpush1.xpose.msra.mxu0 0.0
        %2664 = vmatprep.subr.mxu0 0.0
        %2665 = vmatpush1.xpose.msra.mxu0 0.0
        %2666 = vmatprep.subr.mxu0 0.0
        %2667 = vmatpush1.xpose.msra.mxu0 0.0
        %2668 = vmatprep.subr.mxu0 0.0
        %2669 = vmatpush1.xpose.msra.mxu0 0.0
        %2670 = vmatprep.subr.mxu0 0.0
        %2671 = vmatpush1.xpose.msra.mxu0 0.0
        %2672 = vmatprep.subr.mxu0 0.0
        %2673 = vmatpush1.xpose.msra.mxu0 0.0
        %2674 = vmatprep.subr.mxu0 0.0
        %2675 = vmatpush1.xpose.msra.mxu0 0.0
        %2676 = vmatprep.subr.mxu0 0.0
        %2677 = vmatpush1.xpose.msra.mxu0 0.0
        %2678 = vmatprep.subr.mxu0 0.0
        %2679 = vmatpush1.xpose.msra.mxu0 0.0
        %2680 = vmatprep.subr.mxu0 0.0
        %2681 = vmatpush1.xpose.msra.mxu0 0.0
        %2682 = vmatprep.subr.mxu0 0.0
        %2683 = vmatpush1.xpose.msra.mxu0 0.0
        %2684 = vmatprep.subr.mxu0 0.0
        %2685 = vmatpush1.xpose.msra.mxu0 0.0
        %2686 = vmatprep.subr.mxu0 0.0
        %2687 = vmatpush1.xpose.msra.mxu0 0.0
        %2688 = vmatprep.subr.mxu0 0.0
        %2689 = vmatpush1.xpose.msra.mxu0 0.0
        %2690 = vmatprep.mubr.f32.mxu0 0.0
        %2691 = vmatmul.mubr.f32.gmra.mrb[0].mxu0 %v2610
        %v2692 = vpop.f32.mrb[0].mxu0
        %v2693 = vadd.f32 %v715, %v2692
        %v2694 = vpop.f32.mrb[0].mxu0
        %2695 = vmatprep.mubr.f32.mxu0 0.0
        %2696 = vmatmul.mubr.f32.gmra.mrb[0].mxu0 %v2612
        %v2697 = vpop.f32.mrb[0].mxu0
        %v2698 = vadd.f32 %v716, %v2697
        %v2699 = vpop.f32.mrb[0].mxu0
        %2700 = vmatprep.mubr.f32.mxu0 0.0
        %2701 = vmatmul.mubr.f32.gmra.mrb[0].mxu0 %v2614
        %v2702 = vpop.f32.mrb[0].mxu0
        %v2703 = vadd.f32 %v717, %v2702
        %v2704 = vpop.f32.mrb[0].mxu0
        %2705 = vmatprep.mubr.f32.mxu0 0.0
        %2706 = vmatmul.mubr.f32.gmra.mrb[0].mxu0 %v2616
        %v2707 = vpop.f32.mrb[0].mxu0
        %v2708 = vadd.f32 %v718, %v2707
        %v2709 = vpop.f32.mrb[0].mxu0
        %2710 = vdwg.mxu0
        %v2711 = vsel %vm505, %v2693, -inf
        %2712 = vmax.xlane.f32.xlu0 %v2711
        %v2713 = vpop.xlane.xlu0 %2712
        %v2714 = vsel %vm505, %v2698, -inf
        %2715 = vmax.xlane.f32.xlu0 %v2714
        %v2716 = vpop.xlane.xlu0 %2715
        %v2717 = vsel %vm505, %v2703, -inf
        %2718 = vmax.xlane.f32.xlu0 %v2717
        %v2719 = vpop.xlane.xlu0 %2718
        %v2720 = vsel %vm505, %v2708, -inf
        %2721 = vmax.xlane.f32.xlu0 %v2720
        %v2722 = vpop.xlane.xlu0 %2721
        %v2723 = vsub.f32 %v2693, %v2713
        %v2724 = vsub.f32 %v2698, %v2716
        %v2725 = vsub.f32 %v2703, %v2719
        %v2726 = vsub.f32 %v2708, %v2722
        %v2727 = vmul.f32 %v2723, 1.442695
        %v2728 = vpow.pop %v2727
        %v2729 = vmul.f32 %v2724, 1.442695
        %v2730 = vpow.pop %v2729
        %v2731 = vmul.f32 %v2725, 1.442695
        %v2732 = vpow.pop %v2731
        %v2733 = vmul.f32 %v2726, 1.442695
        %v2734 = vpow.pop %v2733
        %v2735 = vsel %vm505, %v2728, 0.0
        %2736 = vadd.xlane.f32.xlu0 %v2735
        %v2737 = vpop.xlane.xlu0 %2736
        %v2738 = vsel %vm505, %v2730, 0.0
        %2739 = vadd.xlane.f32.xlu0 %v2738
        %v2740 = vpop.xlane.xlu0 %2739
        %v2741 = vsel %vm505, %v2732, 0.0
        %2742 = vadd.xlane.f32.xlu0 %v2741
        %v2743 = vpop.xlane.xlu0 %2742
        %v2744 = vsel %vm505, %v2734, 0.0
        %2745 = vadd.xlane.f32.xlu0 %v2744
        %v2746 = vpop.xlane.xlu0 %2745
        %v2747 = vrcp.pop %v2737
        %v2748 = vrcp.pop %v2740
        %v2749 = vrcp.pop %v2743
        %v2750 = vrcp.pop %v2746
        %v2751 = vmul.f32 %v2728, %v2747
        %v2752 = vmul.f32 %v2730, %v2748
        %v2753 = vmul.f32 %v2732, %v2749
        %v2754 = vmul.f32 %v2734, %v2750
        %2755 = vrot.lane.b32.xlu0 %v693, 100
        %v2756 = vpop.permute.xlu0 %2755
        %2757 = vrot.lane.b32.xlu0 %v698, 100
        %v2758 = vpop.permute.xlu0 %2757
        %2759 = vrot.lane.b32.xlu0 %v703, 100
        %v2760 = vpop.permute.xlu0 %2759
        %2761 = vrot.lane.b32.xlu0 %v708, 100
        %v2762 = vpop.permute.xlu0 %2761
        %v2768 = vsel %vm505, %v2751, 0
        %v2771 = vsel %vm505, %v2752, 0
        %v2774 = vsel %vm505, %v2753, 0
        %v2777 = vsel %vm505, %v2754, 0
        %2779 = vmatprep.subr.mxu0 0.0
        %2780 = vmatpush1.msra.mxu0 %v2756
        %2781 = vmatprep.subr.mxu0 0.0
        %2782 = vmatpush1.msra.mxu0 %v2758
        %2783 = vmatprep.subr.mxu0 0.0
        %2784 = vmatpush1.msra.mxu0 %v2760
        %2785 = vmatprep.subr.mxu0 0.0
        %2786 = vmatpush1.msra.mxu0 %v2762
        %2787 = vmatprep.subr.mxu0 0.0
        %2788 = vmatpush1.msra.mxu0 0.0
        %2789 = vmatprep.subr.mxu0 0.0
        %2790 = vmatpush1.msra.mxu0 0.0
        %2791 = vmatprep.subr.mxu0 0.0
        %2792 = vmatpush1.msra.mxu0 0.0
        %2793 = vmatprep.subr.mxu0 0.0
        %2794 = vmatpush1.msra.mxu0 0.0
        %2795 = vmatprep.subr.mxu0 0.0
        %2796 = vmatpush1.msra.mxu0 0.0
        %2797 = vmatprep.subr.mxu0 0.0
        %2798 = vmatpush1.msra.mxu0 0.0
        %2799 = vmatprep.subr.mxu0 0.0
        %2800 = vmatpush1.msra.mxu0 0.0
        %2801 = vmatprep.subr.mxu0 0.0
        %2802 = vmatpush1.msra.mxu0 0.0
        %2803 = vmatprep.subr.mxu0 0.0
        %2804 = vmatpush1.msra.mxu0 0.0
        %2805 = vmatprep.subr.mxu0 0.0
        %2806 = vmatpush1.msra.mxu0 0.0
        %2807 = vmatprep.subr.mxu0 0.0
        %2808 = vmatpush1.msra.mxu0 0.0
        %2809 = vmatprep.subr.mxu0 0.0
        %2810 = vmatpush1.msra.mxu0 0.0
        %2811 = vmatprep.subr.mxu0 0.0
        %2812 = vmatpush1.msra.mxu0 0.0
        %2813 = vmatprep.subr.mxu0 0.0
        %2814 = vmatpush1.msra.mxu0 0.0
        %2815 = vmatprep.subr.mxu0 0.0
        %2816 = vmatpush1.msra.mxu0 0.0
        %2817 = vmatprep.subr.mxu0 0.0
        %2818 = vmatpush1.msra.mxu0 0.0
        %2819 = vmatprep.subr.mxu0 0.0
        %2820 = vmatpush1.msra.mxu0 0.0
        %2821 = vmatprep.subr.mxu0 0.0
        %2822 = vmatpush1.msra.mxu0 0.0
        %2823 = vmatprep.subr.mxu0 0.0
        %2824 = vmatpush1.msra.mxu0 0.0
        %2825 = vmatprep.subr.mxu0 0.0
        %2826 = vmatpush1.msra.mxu0 0.0
        %2827 = vmatprep.subr.mxu0 0.0
        %2828 = vmatpush1.msra.mxu0 0.0
        %2829 = vmatprep.subr.mxu0 0.0
        %2830 = vmatpush1.msra.mxu0 0.0
        %2831 = vmatprep.subr.mxu0 0.0
        %2832 = vmatpush1.msra.mxu0 0.0
        %2833 = vmatprep.subr.mxu0 0.0
        %2834 = vmatpush1.msra.mxu0 0.0
        %2835 = vmatprep.subr.mxu0 0.0
        %2836 = vmatpush1.msra.mxu0 0.0
        %2837 = vmatprep.subr.mxu0 0.0
        %2838 = vmatpush1.msra.mxu0 0.0
        %2839 = vmatprep.subr.mxu0 0.0
        %2840 = vmatpush1.msra.mxu0 0.0
        %2841 = vmatprep.subr.mxu0 0.0
        %2842 = vmatpush1.msra.mxu0 0.0
        %2843 = vmatprep.mubr.f32.mxu0 0.0
        %2844 = vmatmul.mubr.f32.gmra.mrb[0].mxu0 %v2768
        %v2845 = vpop.f32.mrb[0].mxu0
        %v2846 = vadd.f32 0.0, %v2845
        %v2847 = vpop.f32.mrb[0].mxu0
        %2848 = vmatprep.mubr.f32.mxu0 0.0
        %2849 = vmatmul.mubr.f32.gmra.mrb[0].mxu0 %v2771
        %v2850 = vpop.f32.mrb[0].mxu0
        %v2851 = vadd.f32 0.0, %v2850
        %v2852 = vpop.f32.mrb[0].mxu0
        %2853 = vmatprep.mubr.f32.mxu0 0.0
        %2854 = vmatmul.mubr.f32.gmra.mrb[0].mxu0 %v2774
        %v2855 = vpop.f32.mrb[0].mxu0
        %v2856 = vadd.f32 0.0, %v2855
        %v2857 = vpop.f32.mrb[0].mxu0
        %2858 = vmatprep.mubr.f32.mxu0 0.0
        %2859 = vmatmul.mubr.f32.gmra.mrb[0].mxu0 %v2777
        %v2860 = vpop.f32.mrb[0].mxu0
        %v2861 = vadd.f32 0.0, %v2860
        %v2862 = vpop.f32.mrb[0].mxu0
        %2863 = vdwg.mxu0
        %2868 = vrot.lane.b32.xlu0 %v1226, 4
        %v2869 = vpop.permute.xlu0 %2868
        %2870 = vrot.lane.b32.xlu0 %v1231, 4
        %v2871 = vpop.permute.xlu0 %2870
        %2872 = vrot.lane.b32.xlu0 %v1236, 4
        %v2873 = vpop.permute.xlu0 %2872
        %2874 = vrot.lane.b32.xlu0 %v1241, 4
        %v2875 = vpop.permute.xlu0 %2874
        %2884 = vrot.lane.b32.xlu0 %v1496, 8
        %v2885 = vpop.permute.xlu0 %2884
        %2886 = vrot.lane.b32.xlu0 %v1501, 8
        %v2887 = vpop.permute.xlu0 %2886
        %2888 = vrot.lane.b32.xlu0 %v1506, 8
        %v2889 = vpop.permute.xlu0 %2888
        %2890 = vrot.lane.b32.xlu0 %v1511, 8
        %v2891 = vpop.permute.xlu0 %2890
        %2900 = vrot.lane.b32.xlu0 %v1766, 12
        %v2901 = vpop.permute.xlu0 %2900
        %2902 = vrot.lane.b32.xlu0 %v1771, 12
        %v2903 = vpop.permute.xlu0 %2902
        %2904 = vrot.lane.b32.xlu0 %v1776, 12
        %v2905 = vpop.permute.xlu0 %2904
        %2906 = vrot.lane.b32.xlu0 %v1781, 12
        %v2907 = vpop.permute.xlu0 %2906
        %2916 = vrot.lane.b32.xlu0 %v2036, 16
        %v2917 = vpop.permute.xlu0 %2916
        %2918 = vrot.lane.b32.xlu0 %v2041, 16
        %v2919 = vpop.permute.xlu0 %2918
        %2920 = vrot.lane.b32.xlu0 %v2046, 16
        %v2921 = vpop.permute.xlu0 %2920
        %2922 = vrot.lane.b32.xlu0 %v2051, 16
        %v2923 = vpop.permute.xlu0 %2922
        %2932 = vrot.lane.b32.xlu0 %v2306, 20
        %v2933 = vpop.permute.xlu0 %2932
        %2934 = vrot.lane.b32.xlu0 %v2311, 20
        %v2935 = vpop.permute.xlu0 %2934
        %2936 = vrot.lane.b32.xlu0 %v2316, 20
        %v2937 = vpop.permute.xlu0 %2936
        %2938 = vrot.lane.b32.xlu0 %v2321, 20
        %v2939 = vpop.permute.xlu0 %2938
        %2948 = vrot.lane.b32.xlu0 %v2576, 24
        %v2949 = vpop.permute.xlu0 %2948
        %2950 = vrot.lane.b32.xlu0 %v2581, 24
        %v2951 = vpop.permute.xlu0 %2950
        %2952 = vrot.lane.b32.xlu0 %v2586, 24
        %v2953 = vpop.permute.xlu0 %2952
        %2954 = vrot.lane.b32.xlu0 %v2591, 24
        %v2955 = vpop.permute.xlu0 %2954
        %2964 = vrot.lane.b32.xlu0 %v2846, 28
        %v2965 = vpop.permute.xlu0 %2964
        %2966 = vrot.lane.b32.xlu0 %v2851, 28
        %v2967 = vpop.permute.xlu0 %2966
        %2968 = vrot.lane.b32.xlu0 %v2856, 28
        %v2969 = vpop.permute.xlu0 %2968
        %2970 = vrot.lane.b32.xlu0 %v2861, 28
        %v2971 = vpop.permute.xlu0 %2970
        %v2976 = vsel %vm719, %v952, %v2869
        %v2977 = vsel %vm719, %v957, %v2871
        %v2978 = vsel %vm719, %v962, %v2873
        %v2979 = vsel %vm719, %v967, %v2875
        %vm2980 = vcmask 64512
        %v2981 = vsel %vm2980, %v2976, %v2885
        %v2982 = vsel %vm2980, %v2977, %v2887
        %v2983 = vsel %vm2980, %v2978, %v2889
        %v2984 = vsel %vm2980, %v2979, %v2891
        %vm2985 = vcmask 97280
        %v2986 = vsel %vm2985, %v2981, %v2901
        %v2987 = vsel %vm2985, %v2982, %v2903
        %v2988 = vsel %vm2985, %v2983, %v2905
        %v2989 = vsel %vm2985, %v2984, %v2907
        %vm2990 = vcmask 130048
        %v2991 = vsel %vm2990, %v2986, %v2917
        %v2992 = vsel %vm2990, %v2987, %v2919
        %v2993 = vsel %vm2990, %v2988, %v2921
        %v2994 = vsel %vm2990, %v2989, %v2923
        %vm2995 = vcmask 162816
        %v2996 = vsel %vm2995, %v2991, %v2933
        %v2997 = vsel %vm2995, %v2992, %v2935
        %v2998 = vsel %vm2995, %v2993, %v2937
        %v2999 = vsel %vm2995, %v2994, %v2939
        %vm3000 = vcmask 195584
        %v3001 = vsel %vm3000, %v2996, %v2949
        %v3002 = vsel %vm3000, %v2997, %v2951
        %v3003 = vsel %vm3000, %v2998, %v2953
        %v3004 = vsel %vm3000, %v2999, %v2955
        %vm3005 = vcmask 228352
        %v3006 = vsel %vm3005, %v3001, %v2965
        %v3007 = vsel %vm3005, %v3002, %v2967
        %v3008 = vsel %vm3005, %v3003, %v2969
        %v3009 = vsel %vm3005, %v3004, %v2971
        %v3010 = vld [vmem:[%s8] sm:$0xff]
        %v3011 = vld [vmem:[%s8 + $0x8] sm:$0xff]
        %v3012 = vld [vmem:[%s8 + $0x10] sm:$0xff]
        %v3013 = vld [vmem:[%s8 + $0x18] sm:$0xff]
        %v3014 = vld [vmem:[%s9] sm:$0x1]
        %v3016 = vlaneseq
        %v3017 = vshrl.u32 %v3016, 7
        %v3018 = vsub.s32 0, %v3017
        %v3019 = vrot.slane %v3014, %v3018
        %v3022 = vsel %vm505, %v3006, 0
        %v3025 = vsel %vm505, %v3007, 0
        %v3028 = vsel %vm505, %v3008, 0
        %v3031 = vsel %vm505, %v3009, 0
        %3033 = vmatprep.subr.mxu0 0.0
        %3034 = vmatpush1.msra.mxu0 %v3010
        %3035 = vmatprep.subr.mxu0 0.0
        %3036 = vmatpush1.msra.mxu0 %v3011
        %3037 = vmatprep.subr.mxu0 0.0
        %3038 = vmatpush1.msra.mxu0 %v3012
        %3039 = vmatprep.subr.mxu0 0.0
        %3040 = vmatpush1.msra.mxu0 %v3013
        %3041 = vmatprep.subr.mxu0 0.0
        %3042 = vmatpush1.msra.mxu0 0.0
        %3043 = vmatprep.subr.mxu0 0.0
        %3044 = vmatpush1.msra.mxu0 0.0
        %3045 = vmatprep.subr.mxu0 0.0
        %3046 = vmatpush1.msra.mxu0 0.0
        %3047 = vmatprep.subr.mxu0 0.0
        %3048 = vmatpush1.msra.mxu0 0.0
        %3049 = vmatprep.subr.mxu0 0.0
        %3050 = vmatpush1.msra.mxu0 0.0
        %3051 = vmatprep.subr.mxu0 0.0
        %3052 = vmatpush1.msra.mxu0 0.0
        %3053 = vmatprep.subr.mxu0 0.0
        %3054 = vmatpush1.msra.mxu0 0.0
        %3055 = vmatprep.subr.mxu0 0.0
        %3056 = vmatpush1.msra.mxu0 0.0
        %3057 = vmatprep.subr.mxu0 0.0
        %3058 = vmatpush1.msra.mxu0 0.0
        %3059 = vmatprep.subr.mxu0 0.0
        %3060 = vmatpush1.msra.mxu0 0.0
        %3061 = vmatprep.subr.mxu0 0.0
        %3062 = vmatpush1.msra.mxu0 0.0
        %3063 = vmatprep.subr.mxu0 0.0
        %3064 = vmatpush1.msra.mxu0 0.0
        %3065 = vmatprep.subr.mxu0 0.0
        %3066 = vmatpush1.msra.mxu0 0.0
        %3067 = vmatprep.subr.mxu0 0.0
        %3068 = vmatpush1.msra.mxu0 0.0
        %3069 = vmatprep.subr.mxu0 0.0
        %3070 = vmatpush1.msra.mxu0 0.0
        %3071 = vmatprep.subr.mxu0 0.0
        %3072 = vmatpush1.msra.mxu0 0.0
        %3073 = vmatprep.subr.mxu0 0.0
        %3074 = vmatpush1.msra.mxu0 0.0
        %3075 = vmatprep.subr.mxu0 0.0
        %3076 = vmatpush1.msra.mxu0 0.0
        %3077 = vmatprep.subr.mxu0 0.0
        %3078 = vmatpush1.msra.mxu0 0.0
        %3079 = vmatprep.subr.mxu0 0.0
        %3080 = vmatpush1.msra.mxu0 0.0
        %3081 = vmatprep.subr.mxu0 0.0
        %3082 = vmatpush1.msra.mxu0 0.0
        %3083 = vmatprep.subr.mxu0 0.0
        %3084 = vmatpush1.msra.mxu0 0.0
        %3085 = vmatprep.subr.mxu0 0.0
        %3086 = vmatpush1.msra.mxu0 0.0
        %3087 = vmatprep.subr.mxu0 0.0
        %3088 = vmatpush1.msra.mxu0 0.0
        %3089 = vmatprep.subr.mxu0 0.0
        %3090 = vmatpush1.msra.mxu0 0.0
        %3091 = vmatprep.subr.mxu0 0.0
        %3092 = vmatpush1.msra.mxu0 0.0
        %3093 = vmatprep.subr.mxu0 0.0
        %3094 = vmatpush1.msra.mxu0 0.0
        %3095 = vmatprep.subr.mxu0 0.0
        %3096 = vmatpush1.msra.mxu0 0.0
        %3097 = vmatprep.mubr.f32.mxu0 0.0
        %3098 = vmatmul.mubr.f32.gmra.mrb[0].mxu0 %v3022
        %v3099 = vpop.f32.mrb[0].mxu0
        %v3100 = vadd.f32 %v3019, %v3099
        %v3101 = vpop.f32.mrb[0].mxu0
        %3102 = vmatprep.mubr.f32.mxu0 0.0
        %3103 = vmatmul.mubr.f32.gmra.mrb[0].mxu0 %v3025
        %v3104 = vpop.f32.mrb[0].mxu0
        %v3105 = vadd.f32 %v3019, %v3104
        %v3106 = vpop.f32.mrb[0].mxu0
        %3107 = vmatprep.mubr.f32.mxu0 0.0
        %3108 = vmatmul.mubr.f32.gmra.mrb[0].mxu0 %v3028
        %v3109 = vpop.f32.mrb[0].mxu0
        %v3110 = vadd.f32 %v3019, %v3109
        %v3111 = vpop.f32.mrb[0].mxu0
        %3112 = vmatprep.mubr.f32.mxu0 0.0
        %3113 = vmatmul.mubr.f32.gmra.mrb[0].mxu0 %v3031
        %v3114 = vpop.f32.mrb[0].mxu0
        %v3115 = vadd.f32 %v3019, %v3114
        %v3116 = vpop.f32.mrb[0].mxu0
        %3117 = vdwg.mxu0
        %v3118 = vtanh.pop %v3100
        %v3119 = vtanh.pop %v3105
        %v3120 = vtanh.pop %v3110
        %v3121 = vtanh.pop %v3115
        %v3122 = vld [vmem:[%s10] sm:$0xff]
        %v3123 = vld [vmem:[%s10 + $0x8] sm:$0xff]
        %v3124 = vld [vmem:[%s10 + $0x10] sm:$0xff]
        %v3125 = vld [vmem:[%s10 + $0x18] sm:$0xff]
        %v3126 = vld [vmem:[%s11] sm:$0x1]
        %v3128 = vlaneseq
        %v3129 = vshrl.u32 %v3128, 7
        %v3130 = vsub.s32 0, %v3129
        %v3131 = vrot.slane %v3126, %v3130
        %v3134 = vsel %vm505, %v3118, 0
        %v3137 = vsel %vm505, %v3119, 0
        %v3140 = vsel %vm505, %v3120, 0
        %v3143 = vsel %vm505, %v3121, 0
        %3145 = vmatprep.subr.mxu0 0.0
        %3146 = vmatpush1.msra.mxu0 %v3122
        %3147 = vmatprep.subr.mxu0 0.0
        %3148 = vmatpush1.msra.mxu0 %v3123
        %3149 = vmatprep.subr.mxu0 0.0
        %3150 = vmatpush1.msra.mxu0 %v3124
        %3151 = vmatprep.subr.mxu0 0.0
        %3152 = vmatpush1.msra.mxu0 %v3125
        %3153 = vmatprep.subr.mxu0 0.0
        %3154 = vmatpush1.msra.mxu0 0.0
        %3155 = vmatprep.subr.mxu0 0.0
        %3156 = vmatpush1.msra.mxu0 0.0
        %3157 = vmatprep.subr.mxu0 0.0
        %3158 = vmatpush1.msra.mxu0 0.0
        %3159 = vmatprep.subr.mxu0 0.0
        %3160 = vmatpush1.msra.mxu0 0.0
        %3161 = vmatprep.subr.mxu0 0.0
        %3162 = vmatpush1.msra.mxu0 0.0
        %3163 = vmatprep.subr.mxu0 0.0
        %3164 = vmatpush1.msra.mxu0 0.0
        %3165 = vmatprep.subr.mxu0 0.0
        %3166 = vmatpush1.msra.mxu0 0.0
        %3167 = vmatprep.subr.mxu0 0.0
        %3168 = vmatpush1.msra.mxu0 0.0
        %3169 = vmatprep.subr.mxu0 0.0
        %3170 = vmatpush1.msra.mxu0 0.0
        %3171 = vmatprep.subr.mxu0 0.0
        %3172 = vmatpush1.msra.mxu0 0.0
        %3173 = vmatprep.subr.mxu0 0.0
        %3174 = vmatpush1.msra.mxu0 0.0
        %3175 = vmatprep.subr.mxu0 0.0
        %3176 = vmatpush1.msra.mxu0 0.0
        %3177 = vmatprep.subr.mxu0 0.0
        %3178 = vmatpush1.msra.mxu0 0.0
        %3179 = vmatprep.subr.mxu0 0.0
        %3180 = vmatpush1.msra.mxu0 0.0
        %3181 = vmatprep.subr.mxu0 0.0
        %3182 = vmatpush1.msra.mxu0 0.0
        %3183 = vmatprep.subr.mxu0 0.0
        %3184 = vmatpush1.msra.mxu0 0.0
        %3185 = vmatprep.subr.mxu0 0.0
        %3186 = vmatpush1.msra.mxu0 0.0
        %3187 = vmatprep.subr.mxu0 0.0
        %3188 = vmatpush1.msra.mxu0 0.0
        %3189 = vmatprep.subr.mxu0 0.0
        %3190 = vmatpush1.msra.mxu0 0.0
        %3191 = vmatprep.subr.mxu0 0.0
        %3192 = vmatpush1.msra.mxu0 0.0
        %3193 = vmatprep.subr.mxu0 0.0
        %3194 = vmatpush1.msra.mxu0 0.0
        %3195 = vmatprep.subr.mxu0 0.0
        %3196 = vmatpush1.msra.mxu0 0.0
        %3197 = vmatprep.subr.mxu0 0.0
        %3198 = vmatpush1.msra.mxu0 0.0
        %3199 = vmatprep.subr.mxu0 0.0
        %3200 = vmatpush1.msra.mxu0 0.0
        %3201 = vmatprep.subr.mxu0 0.0
        %3202 = vmatpush1.msra.mxu0 0.0
        %3203 = vmatprep.subr.mxu0 0.0
        %3204 = vmatpush1.msra.mxu0 0.0
        %3205 = vmatprep.subr.mxu0 0.0
        %3206 = vmatpush1.msra.mxu0 0.0
        %3207 = vmatprep.subr.mxu0 0.0
        %3208 = vmatpush1.msra.mxu0 0.0
        %3209 = vmatprep.mubr.f32.mxu0 0.0
        %3210 = vmatmul.mubr.f32.gmra.mrb[0].mxu0 %v3134
        %v3211 = vpop.f32.mrb[0].mxu0
        %v3212 = vadd.f32 %v3131, %v3211
        %v3213 = vpop.f32.mrb[0].mxu0
        %3214 = vmatprep.mubr.f32.mxu0 0.0
        %3215 = vmatmul.mubr.f32.gmra.mrb[0].mxu0 %v3137
        %v3216 = vpop.f32.mrb[0].mxu0
        %v3217 = vadd.f32 %v3131, %v3216
        %v3218 = vpop.f32.mrb[0].mxu0
        %3219 = vmatprep.mubr.f32.mxu0 0.0
        %3220 = vmatmul.mubr.f32.gmra.mrb[0].mxu0 %v3140
        %v3221 = vpop.f32.mrb[0].mxu0
        %v3222 = vadd.f32 %v3131, %v3221
        %v3223 = vpop.f32.mrb[0].mxu0
        %3224 = vmatprep.mubr.f32.mxu0 0.0
        %3225 = vmatmul.mubr.f32.gmra.mrb[0].mxu0 %v3143
        %v3226 = vpop.f32.mrb[0].mxu0
        %v3227 = vadd.f32 %v3131, %v3226
        %v3228 = vpop.f32.mrb[0].mxu0
        %3229 = vdwg.mxu0
        %3230 = vst.msk [vmem:[%s466] sm:$0xff] %vm505, %v3212
        %3231 = vst.msk [vmem:[%s466 + $0x8] sm:$0xff] %vm505, %v3217
        %3232 = vst.msk [vmem:[%s466 + $0x10] sm:$0xff] %vm505, %v3222
        %3233 = vst.msk [vmem:[%s466 + $0x18] sm:$0xff] %vm505, %v3227
        %s3234 = sand.u32 %s303, 1
        %s3235 = scalar_lea.sflag [#allocation4], %s3234
        %s3236 = sand.u32 %s303, 1
        %s3237 = smul.addr %s3236, 32
        %s3238 = scalar_lea.vmem [#allocation7], %s3237
        // Predicated region
        $region77: #{htsa_forward.1} parent=67 // pred_check
          %p3239 = pneg %p313
        $region78: #{htsa_forward.1} parent=67 // pred_check_branch
          %3241 = sbr.rel (%p3239) target = $region80
        $region79: #{htsa_forward.1} parent=67 // pred_region
          %s3243 = ssub.s32 512, 512
          %3244 = vsyncadd %s3235, %s3243
          %s3245 = smul.addr %s28, 4
          %s3246 = smul.addr %s3245, 128
          %s3247 = scalar_lea.hbm %s12, %s3246
          %s3248 = sshll.u32 %s3238, 4
          %s3249 = int_to_ptr.vmem [resolvable:$true] %s3248
          %3254 = dma.vmem_to_hbm [thread:$0]  %s3249, 512, %s3247, %s3235, 128, 128, 8
        $region80: #{htsa_forward.1} parent=67 // pred_fallthru
          _
      $region68: #{htsa_forward.1} parent=5 // pred_fallthru
        _
      %p3255 = scmp.le.s32.totalorder 2, %s23
      // Predicated region
      $region81: #{htsa_forward.1} parent=5 // pred_check
        %p3256 = pneg %p3255
      $region82: #{htsa_forward.1} parent=5 // pred_check_branch
        %3258 = sbr.rel (%p3256) target = $region84
      $region83: #{htsa_forward.1} parent=5 // pred_region
        %s3259 = ssub.s32 %s23, 2
        // Predicated region
        $region85: #{htsa_forward.1} parent=83 // pred_check
          %p3260 = pneg %p319
        $region86: #{htsa_forward.1} parent=83 // pred_check_branch
          %3262 = sbr.rel (%p3260) target = $region88
        $region87: #{htsa_forward.1} parent=83 // pred_region
          %s3263 = sand.u32 %s304, 1
          %s3264 = scalar_lea.sflag [#allocation4], %s3263
          %s3265 = sand.u32 %s304, 1
          %s3266 = smul.addr %s3265, 32
          %s3267 = scalar_lea.vmem [#allocation7], %s3266
          %3268 = dma.done %s3264, 512
        $region88: #{htsa_forward.1} parent=83 // pred_fallthru
          _
      $region84: #{htsa_forward.1} parent=5 // pred_fallthru
        _
    $region6: #{htsa_forward.1} parent=1 // loop_footer
      %s27 = sadd.s32 1, %s23
    $region7: #{htsa_forward.1} parent=1 // loop_footer_branch
      %22 = sbr.rel target = $region3
    $region8: #{htsa_forward.1} parent=1 // loop_exit
      _
    %3269 = vsyncpa [#allocation3], 1
    %s3270 = scalar_lea.sflag [#allocation3], 1
    %3271 = vsyncpa %s3270, 1
    %3272 = vsyncpa [#allocation6], 1
    %3273 = vsyncpa [#allocation4], 1
    %s3274 = scalar_lea.sflag [#allocation4], 1
    %3275 = vsyncpa %s3274, 1

</llo_original>
